<compile_context>
chip_gen: v7x
topology: tpu7x:2x2x1
jax: 0.10.0
libtpu: 0.0.40
codegen_flags: <defaults>
</compile_context>

<pallas_src>
import functools

import jax
import jax.numpy as jnp
from jax import lax
from jax.experimental import pallas as pl
from jax.experimental.pallas import tpu as pltpu


# ---------------------------------------------------------------------------
# Small helpers
# ---------------------------------------------------------------------------
def _round_up(n, m):
    return ((n + m - 1) // m) * m


def _pad_last(a, n_to):
    n = a.shape[-1]
    if n == n_to:
        return a
    pad = [(0, 0)] * (a.ndim - 1) + [(0, n_to - n)]
    return jnp.pad(a, pad)


def _pick_tile_m(m, cap=512):
    """Largest divisor of m that is <= cap and a multiple of 8 (or m itself)."""
    if m <= cap:
        return m
    for tm in range(cap, 0, -1):
        if m % tm == 0 and tm % 8 == 0:
            return tm
    return m


# ---------------------------------------------------------------------------
# Pallas kernels
# ---------------------------------------------------------------------------
def _mm_bias_act_kernel(x_ref, w_ref, b_ref, o_ref, *, act):
    # bf16 x bf16 -> f32 accumulate on the MXU; f32 epilogue.
    acc = jnp.dot(x_ref[...], w_ref[...], preferred_element_type=jnp.float32)
    acc = acc + b_ref[...]                  # (1, Npad) f32, broadcasts over rows
    if act == "relu":
        acc = jnp.maximum(acc, 0.0)
    elif act == "tanh":
        acc = jnp.tanh(acc)
    o_ref[...] = acc.astype(o_ref.dtype)


def _linear_pair_kernel(h_ref, wl_ref, bl_ref, wf_ref, bf_ref, o_ref):
    # encoder.linear followed by decoder.fc, latent kept on-chip.
    z = jnp.dot(h_ref[...], wl_ref[...], preferred_element_type=jnp.float32)
    z = z + bl_ref[...]
    h = jnp.dot(z.astype(jnp.bfloat16), wf_ref[...],
                preferred_element_type=jnp.float32)
    h = h + bf_ref[...]
    o_ref[...] = h.astype(o_ref.dtype)


# ---------------------------------------------------------------------------
# Pallas call wrappers
# ---------------------------------------------------------------------------
def matmul_bias_act(x, w, b, act="none", out_dtype=jnp.bfloat16):
    """x:[M,K], w:[K,N], b:[N] -> [M,N] (out_dtype). Lane-dense padded-N matmul."""
    M, K = x.shape
    K2, N = w.shape
    assert K == K2
    n_pad = max(128, _round_up(N, 128))
    w_p = _pad_last(w.astype(jnp.bfloat16), n_pad)
    b_p = _pad_last(b.reshape(1, N).astype(jnp.float32), n_pad)
    x_b = x.astype(jnp.bfloat16)

    tm = _pick_tile_m(M)
    grid = (M // tm,) if M % tm == 0 else (1,)
    if grid == (1,):
        tm = M

    y = pl.pallas_call(
        functools.partial(_mm_bias_act_kernel, act=act),
        out_shape=jax.ShapeDtypeStruct((M, n_pad), out_dtype),
        grid=grid,
        in_specs=[
            pl.BlockSpec((tm, K), lambda i: (i, 0)),
            pl.BlockSpec((K, n_pad), lambda i: (0, 0)),
            pl.BlockSpec((1, n_pad), lambda i: (0, 0)),
        ],
        out_specs=pl.BlockSpec((tm, n_pad), lambda i: (i, 0)),
        compiler_params=pltpu.CompilerParams(
            dimension_semantics=("parallel",)),
    )(x_b, w_p, b_p)
    return y[:, :N] if n_pad != N else y


def encoder_linear_decoder_fc(h_flat, wl, bl, wf, bf, out_dtype=jnp.bfloat16):
    """Fused: out = (h_flat @ wl + bl) @ wf + bf.  wl:[Din,L], wf:[L,Dout]."""
    B, Din = h_flat.shape
    L = wl.shape[1]
    Dout = wf.shape[1]
    l_pad = max(128, _round_up(L, 128))

    wl_p = _pad_last(wl.astype(jnp.bfloat16), l_pad)
    bl_p = _pad_last(bl.reshape(1, L).astype(jnp.float32), l_pad)
    wf_p = jnp.pad(wf.astype(jnp.bfloat16), ((0, l_pad - L), (0, 0)))
    bf_p = bf.reshape(1, Dout).astype(jnp.float32)

    return pl.pallas_call(
        _linear_pair_kernel,
        out_shape=jax.ShapeDtypeStruct((B, Dout), out_dtype),
        grid=(1,),
        in_specs=[
            pl.BlockSpec((B, Din), lambda i: (0, 0)),
            pl.BlockSpec((Din, l_pad), lambda i: (0, 0)),
            pl.BlockSpec((1, l_pad), lambda i: (0, 0)),
            pl.BlockSpec((l_pad, Dout), lambda i: (0, 0)),
            pl.BlockSpec((1, Dout), lambda i: (0, 0)),
        ],
        out_specs=pl.BlockSpec((B, Dout), lambda i: (0, 0)),
        compiler_params=pltpu.CompilerParams(
            dimension_semantics=("arbitrary",)),
    )(h_flat.astype(jnp.bfloat16), wl_p, bl_p, wf_p, bf_p)


# ---------------------------------------------------------------------------
# Conv plumbing (XLA glue around the Pallas matmuls), NHWC throughout.
# ---------------------------------------------------------------------------
def im2col_nhwc(x, k, stride, pad):
    """x:[B,H,W,C] -> patches [B*Ho*Wo, k*k*C] (tap-major, channel-minor)."""
    B, H, W, C = x.shape
    xp = jnp.pad(x, ((0, 0), (pad, pad), (pad, pad), (0, 0)))
    Ho = (H + 2 * pad - k) // stride + 1
    Wo = (W + 2 * pad - k) // stride + 1
    taps = []
    for kh in range(k):
        for kw in range(k):
            taps.append(lax.slice(
                xp,
                (0, kh, kw, 0),
                (B, kh + stride * (Ho - 1) + 1, kw + stride * (Wo - 1) + 1, C),
                (1, stride, stride, 1)))
    patches = jnp.stack(taps, axis=3)                # [B,Ho,Wo,k*k,C]
    return patches.reshape(B * Ho * Wo, k * k * C), Ho, Wo


def conv2d_nhwc(x, w, b, stride, pad, act="none", out_dtype=jnp.bfloat16):
    """PyTorch-style Conv2d, NHWC activations. w:[Cout,Cin,k,k]."""
    Cout, Cin, k, _ = w.shape
    B = x.shape[0]
    patches, Ho, Wo = im2col_nhwc(x, k, stride, pad)
    wm = w.transpose(2, 3, 1, 0).reshape(k * k * Cin, Cout)   # rows = (kh,kw,ci)
    y = matmul_bias_act(patches, wm, b, act=act, out_dtype=out_dtype)
    return y.reshape(B, Ho, Wo, Cout)


def conv_transpose2d_nhwc(x, w, b, stride, pad, act="none",
                          out_dtype=jnp.bfloat16):
    """PyTorch-style ConvTranspose2d, NHWC activations. w:[Cin,Cout,k,k]."""
    Cin, Cout, k, _ = w.shape
    B, H, W, _ = x.shape
    xd = jnp.zeros((B, (H - 1) * stride + 1, (W - 1) * stride + 1, Cin), x.dtype)
    xd = xd.at[:, ::stride, ::stride, :].set(x)
    w_eq = jnp.flip(w, axis=(2, 3)).transpose(1, 0, 2, 3)     # [Cout,Cin,k,k]
    return conv2d_nhwc(xd, w_eq, b, stride=1, pad=k - 1 - pad,
                       act=act, out_dtype=out_dtype)


# ---------------------------------------------------------------------------
# AutoEncoder forward (Encoder -> Decoder), matching the PyTorch module.
# ---------------------------------------------------------------------------
def autoencoder_forward(params, x_nchw, capacity):
    c = capacity
    B = x_nchw.shape[0]
    x = jnp.transpose(x_nchw, (0, 2, 3, 1))            # NHWC (C=1, free)

    # Encoder
    h = conv2d_nhwc(x, params["e_conv1_w"], params["e_conv1_b"], 2, 1, "relu")
    h = conv2d_nhwc(h, params["e_conv2_w"], params["e_conv2_b"], 2, 1, "relu")
    h = h.reshape(B, 7 * 7 * 2 * c)                    # NHWC flatten (h,w,ch)

    # Reorder Linear / FC weights (trace-time, tiny) from PyTorch's (ch,h,w)
    # flatten/view ordering to the NHWC (h,w,ch) ordering used here, so no
    # activation transposes are needed.
    ld = params["e_lin_w"].shape[0]
    wl = params["e_lin_w"].reshape(ld, 2 * c, 7, 7).transpose(0, 2, 3, 1) \
                          .reshape(ld, 2 * c * 49).T          # [392, latent]
    wf = params["d_fc_w"].reshape(2 * c, 7, 7, ld).transpose(1, 2, 0, 3) \
                         .reshape(2 * c * 49, ld).T           # [latent, 392]
    bf = params["d_fc_b"].reshape(2 * c, 7, 7).transpose(1, 2, 0).reshape(-1)

    h = encoder_linear_decoder_fc(h, wl, params["e_lin_b"], wf, bf)
    h = h.reshape(B, 7, 7, 2 * c)                      # NHWC view of fc output

    # Decoder
    h = conv_transpose2d_nhwc(h, params["d_conv2_w"], params["d_conv2_b"],
                              2, 1, "relu")
    y = conv_transpose2d_nhwc(h, params["d_conv1_w"], params["d_conv1_b"],
                              2, 1, "tanh", out_dtype=jnp.float32)
    return jnp.transpose(y, (0, 3, 1, 2))              # back to NCHW


def init_params(key, capacity, latent_dims):
    c = capacity
    ks = jax.random.split(key, 12)

    def rn(k, shape, scale=0.05):
        return scale * jax.random.normal(k, shape, jnp.float32)

    return {
        # Encoder
        "e_conv1_w": rn(ks[0], (c, 1, 4, 4)),                 # Conv2d [Cout,Cin,k,k]
        "e_conv1_b": rn(ks[1], (c,)),
        "e_conv2_w": rn(ks[2], (2 * c, c, 4, 4)),
        "e_conv2_b": rn(ks[3], (2 * c,)),
        "e_lin_w":   rn(ks[4], (latent_dims, 2 * c * 7 * 7)), # Linear [out,in]
        "e_lin_b":   rn(ks[5], (latent_dims,)),
        # Decoder
        "d_fc_w":    rn(ks[6], (2 * c * 7 * 7, latent_dims)),
        "d_fc_b":    rn(ks[7], (2 * c * 7 * 7,)),
        "d_conv2_w": rn(ks[8], (2 * c, c, 4, 4)),             # ConvT [Cin,Cout,k,k]
        "d_conv2_b": rn(ks[9], (c,)),
        "d_conv1_w": rn(ks[10], (c, 1, 4, 4)),
        "d_conv1_b": rn(ks[11], (1,)),
    }


if __name__ == "__main__":
    capacity = 4
    latent_dims = 8
    B = 2

    key = jax.random.PRNGKey(0)
    kx, kp = jax.random.split(key)
    x = jax.random.normal(kx, (B, 1, 28, 28), jnp.float32)    # NCHW, MNIST-sized
    params = init_params(kp, capacity, latent_dims)

    fwd = jax.jit(functools.partial(autoencoder_forward, capacity=capacity))
    out = jax.block_until_ready(fwd(params, x))

    assert out.shape == (B, 1, 28, 28), out.shape
    assert bool(jnp.all(jnp.isfinite(out)))
    print("KERNEL_OK")
</pallas_src>

<mosaic_0001>
module attributes {stable_mosaic.version = 11 : i64} {
  func.func @_mm_bias_act_kernel(%arg0: i32, %arg1: memref<392x16xbf16, #tpu.memory_space<vmem>>, %arg2: memref<16x128xbf16, #tpu.memory_space<vmem>>, %arg3: memref<1x128xf32, #tpu.memory_space<vmem>>, %arg4: memref<392x128xbf16, #tpu.memory_space<vmem>>) attributes {dimension_semantics = [#tpu.dimension_semantics<parallel>], iteration_bounds = array<i64: 1>, scalar_prefetch = 0 : i64, scratch_operands = 0 : i64, tpu.core_type = #tpu.core_type<tc>, window_params = [{transform_indices = @transform_0, window_bounds = array<i64: 392, 16>}, {pipeline_mode = #tpu.pipeline_mode<synchronous>, transform_indices = @transform_1, window_bounds = array<i64: 16, 128>}, {pipeline_mode = #tpu.pipeline_mode<synchronous>, transform_indices = @transform_2, window_bounds = array<i64: 1, 128>}, {transform_indices = @transform_3, window_bounds = array<i64: 392, 128>}]} {
    %c0 = arith.constant 0 : index
    %c0_0 = arith.constant 0 : index
    %0 = vector.load %arg1[%c0, %c0_0] : memref<392x16xbf16, #tpu.memory_space<vmem>>, vector<392x16xbf16>
    %c0_1 = arith.constant 0 : index
    %c0_2 = arith.constant 0 : index
    %1 = vector.load %arg2[%c0_1, %c0_2] : memref<16x128xbf16, #tpu.memory_space<vmem>>, vector<16x128xbf16>
    %cst = arith.constant dense<0.000000e+00> : vector<392x128xf32>
    %2 = tpu.matmul %0, %1, %cst {dimension_numbers = #tpu.dot_dimension_numbers<[1], [0], [0], [1], [0, 0, 1, 1], [], []>} : vector<392x16xbf16>, vector<16x128xbf16>, vector<392x128xf32> -> vector<392x128xf32>
    %c0_3 = arith.constant 0 : index
    %c0_4 = arith.constant 0 : index
    %3 = vector.load %arg3[%c0_3, %c0_4] : memref<1x128xf32, #tpu.memory_space<vmem>>, vector<1x128xf32>
    %4 = vector.broadcast %3 : vector<1x128xf32> to vector<392x128xf32>
    %5 = arith.addf %2, %4 : vector<392x128xf32>
    %cst_5 = arith.constant 0.000000e+00 : f32
    %6 = vector.broadcast %cst_5 : f32 to vector<392x128xf32>
    %7 = arith.maximumf %5, %6 : vector<392x128xf32>
    %8 = arith.truncf %7 : vector<392x128xf32> to vector<392x128xbf16>
    %c0_6 = arith.constant 0 : index
    %c0_7 = arith.constant 0 : index
    %9 = vector.load %arg4[%c0_6, %c0_7] : memref<392x128xbf16, #tpu.memory_space<vmem>>, vector<392x128xbf16>
    tpu.vector_store %arg4[%c0_6, %c0_7], %8 {strides = array<i32>} : memref<392x128xbf16, #tpu.memory_space<vmem>>, vector<392x128xbf16>,
    return
  }
  func.func @transform_0(%arg0: i32) -> (i32, i32) {
    %c0_i32 = arith.constant 0 : i32
    %c0_i32_0 = arith.constant 0 : i32
    return %arg0, %c0_i32 : i32, i32
  }
  func.func @transform_1(%arg0: i32) -> (i32, i32) {
    %c0_i32 = arith.constant 0 : i32
    %c0_i32_0 = arith.constant 0 : i32
    %c0_i32_1 = arith.constant 0 : i32
    return %c0_i32, %c0_i32_0 : i32, i32
  }
  func.func @transform_2(%arg0: i32) -> (i32, i32) {
    %c0_i32 = arith.constant 0 : i32
    %c0_i32_0 = arith.constant 0 : i32
    %c0_i32_1 = arith.constant 0 : i32
    return %c0_i32, %c0_i32_0 : i32, i32
  }
  func.func @transform_3(%arg0: i32) -> (i32, i32) {
    %c0_i32 = arith.constant 0 : i32
    %c0_i32_0 = arith.constant 0 : i32
    return %arg0, %c0_i32 : i32, i32
  }
}

module attributes {stable_mosaic.version = 11 : i64} {
  func.func @_mm_bias_act_kernel(%arg0: i32, %arg1: memref<98x64xbf16, #tpu.memory_space<vmem>>, %arg2: memref<64x128xbf16, #tpu.memory_space<vmem>>, %arg3: memref<1x128xf32, #tpu.memory_space<vmem>>, %arg4: memref<98x128xbf16, #tpu.memory_space<vmem>>) attributes {dimension_semantics = [#tpu.dimension_semantics<parallel>], iteration_bounds = array<i64: 1>, scalar_prefetch = 0 : i64, scratch_operands = 0 : i64, tpu.core_type = #tpu.core_type<tc>, window_params = [{transform_indices = @transform_0, window_bounds = array<i64: 98, 64>}, {pipeline_mode = #tpu.pipeline_mode<synchronous>, transform_indices = @transform_1, window_bounds = array<i64: 64, 128>}, {pipeline_mode = #tpu.pipeline_mode<synchronous>, transform_indices = @transform_2, window_bounds = array<i64: 1, 128>}, {transform_indices = @transform_3, window_bounds = array<i64: 98, 128>}]} {
    %c0 = arith.constant 0 : index
    %c0_0 = arith.constant 0 : index
    %0 = vector.load %arg1[%c0, %c0_0] : memref<98x64xbf16, #tpu.memory_space<vmem>>, vector<98x64xbf16>
    %c0_1 = arith.constant 0 : index
    %c0_2 = arith.constant 0 : index
    %1 = vector.load %arg2[%c0_1, %c0_2] : memref<64x128xbf16, #tpu.memory_space<vmem>>, vector<64x128xbf16>
    %cst = arith.constant dense<0.000000e+00> : vector<98x128xf32>
    %2 = tpu.matmul %0, %1, %cst {dimension_numbers = #tpu.dot_dimension_numbers<[1], [0], [0], [1], [0, 0, 1, 1], [], []>} : vector<98x64xbf16>, vector<64x128xbf16>, vector<98x128xf32> -> vector<98x128xf32>
    %c0_3 = arith.constant 0 : index
    %c0_4 = arith.constant 0 : index
    %3 = vector.load %arg3[%c0_3, %c0_4] : memref<1x128xf32, #tpu.memory_space<vmem>>, vector<1x128xf32>
    %4 = vector.broadcast %3 : vector<1x128xf32> to vector<98x128xf32>
    %5 = arith.addf %2, %4 : vector<98x128xf32>
    %cst_5 = arith.constant 0.000000e+00 : f32
    %6 = vector.broadcast %cst_5 : f32 to vector<98x128xf32>
    %7 = arith.maximumf %5, %6 : vector<98x128xf32>
    %8 = arith.truncf %7 : vector<98x128xf32> to vector<98x128xbf16>
    %c0_6 = arith.constant 0 : index
    %c0_7 = arith.constant 0 : index
    %9 = vector.load %arg4[%c0_6, %c0_7] : memref<98x128xbf16, #tpu.memory_space<vmem>>, vector<98x128xbf16>
    tpu.vector_store %arg4[%c0_6, %c0_7], %8 {strides = array<i32>} : memref<98x128xbf16, #tpu.memory_space<vmem>>, vector<98x128xbf16>,
    return
  }
  func.func @transform_0(%arg0: i32) -> (i32, i32) {
    %c0_i32 = arith.constant 0 : i32
    %c0_i32_0 = arith.constant 0 : i32
    return %arg0, %c0_i32 : i32, i32
  }
  func.func @transform_1(%arg0: i32) -> (i32, i32) {
    %c0_i32 = arith.constant 0 : i32
    %c0_i32_0 = arith.constant 0 : i32
    %c0_i32_1 = arith.constant 0 : i32
    return %c0_i32, %c0_i32_0 : i32, i32
  }
  func.func @transform_2(%arg0: i32) -> (i32, i32) {
    %c0_i32 = arith.constant 0 : i32
    %c0_i32_0 = arith.constant 0 : i32
    %c0_i32_1 = arith.constant 0 : i32
    return %c0_i32, %c0_i32_0 : i32, i32
  }
  func.func @transform_3(%arg0: i32) -> (i32, i32) {
    %c0_i32 = arith.constant 0 : i32
    %c0_i32_0 = arith.constant 0 : i32
    return %arg0, %c0_i32 : i32, i32
  }
}

module attributes {stable_mosaic.version = 11 : i64} {
  func.func @_linear_pair_kernel(%arg0: i32, %arg1: memref<2x392xbf16, #tpu.memory_space<vmem>>, %arg2: memref<392x128xbf16, #tpu.memory_space<vmem>>, %arg3: memref<1x128xf32, #tpu.memory_space<vmem>>, %arg4: memref<128x392xbf16, #tpu.memory_space<vmem>>, %arg5: memref<1x392xf32, #tpu.memory_space<vmem>>, %arg6: memref<2x392xbf16, #tpu.memory_space<vmem>>) attributes {dimension_semantics = [#tpu.dimension_semantics<arbitrary>], iteration_bounds = array<i64: 1>, scalar_prefetch = 0 : i64, scratch_operands = 0 : i64, tpu.core_type = #tpu.core_type<tc>, window_params = [{pipeline_mode = #tpu.pipeline_mode<synchronous>, transform_indices = @transform_0, window_bounds = array<i64: 2, 392>}, {pipeline_mode = #tpu.pipeline_mode<synchronous>, transform_indices = @transform_1, window_bounds = array<i64: 392, 128>}, {pipeline_mode = #tpu.pipeline_mode<synchronous>, transform_indices = @transform_2, window_bounds = array<i64: 1, 128>}, {pipeline_mode = #tpu.pipeline_mode<synchronous>, transform_indices = @transform_3, window_bounds = array<i64: 128, 392>}, {pipeline_mode = #tpu.pipeline_mode<synchronous>, transform_indices = @transform_4, window_bounds = array<i64: 1, 392>}, {pipeline_mode = #tpu.pipeline_mode<synchronous>, transform_indices = @transform_5, window_bounds = array<i64: 2, 392>}]} {
    %c0 = arith.constant 0 : index
    %c0_0 = arith.constant 0 : index
    %0 = vector.load %arg1[%c0, %c0_0] : memref<2x392xbf16, #tpu.memory_space<vmem>>, vector<2x392xbf16>
    %c0_1 = arith.constant 0 : index
    %c0_2 = arith.constant 0 : index
    %1 = vector.load %arg2[%c0_1, %c0_2] : memref<392x128xbf16, #tpu.memory_space<vmem>>, vector<392x128xbf16>
    %cst = arith.constant dense<0.000000e+00> : vector<2x128xf32>
    %2 = tpu.matmul %0, %1, %cst {dimension_numbers = #tpu.dot_dimension_numbers<[1], [0], [0], [1], [0, 0, 1, 1], [], []>} : vector<2x392xbf16>, vector<392x128xbf16>, vector<2x128xf32> -> vector<2x128xf32>
    %c0_3 = arith.constant 0 : index
    %c0_4 = arith.constant 0 : index
    %3 = vector.load %arg3[%c0_3, %c0_4] : memref<1x128xf32, #tpu.memory_space<vmem>>, vector<1x128xf32>
    %4 = vector.broadcast %3 : vector<1x128xf32> to vector<2x128xf32>
    %5 = arith.addf %2, %4 : vector<2x128xf32>
    %6 = arith.truncf %5 : vector<2x128xf32> to vector<2x128xbf16>
    %c0_5 = arith.constant 0 : index
    %c0_6 = arith.constant 0 : index
    %7 = vector.load %arg4[%c0_5, %c0_6] : memref<128x392xbf16, #tpu.memory_space<vmem>>, vector<128x392xbf16>
    %cst_7 = arith.constant dense<0.000000e+00> : vector<2x392xf32>
    %8 = tpu.matmul %6, %7, %cst_7 {dimension_numbers = #tpu.dot_dimension_numbers<[1], [0], [0], [1], [0, 0, 1, 1], [], []>} : vector<2x128xbf16>, vector<128x392xbf16>, vector<2x392xf32> -> vector<2x392xf32>
    %c0_8 = arith.constant 0 : index
    %c0_9 = arith.constant 0 : index
    %9 = vector.load %arg5[%c0_8, %c0_9] : memref<1x392xf32, #tpu.memory_space<vmem>>, vector<1x392xf32>
    %10 = vector.broadcast %9 : vector<1x392xf32> to vector<2x392xf32>
    %11 = arith.addf %8, %10 : vector<2x392xf32>
    %12 = arith.truncf %11 : vector<2x392xf32> to vector<2x392xbf16>
    %c0_10 = arith.constant 0 : index
    %c0_11 = arith.constant 0 : index
    %13 = vector.load %arg6[%c0_10, %c0_11] : memref<2x392xbf16, #tpu.memory_space<vmem>>, vector<2x392xbf16>
    tpu.vector_store %arg6[%c0_10, %c0_11], %12 {strides = array<i32>} : memref<2x392xbf16, #tpu.memory_space<vmem>>, vector<2x392xbf16>,
    return
  }
  func.func @transform_0(%arg0: i32) -> (i32, i32) {
    %c0_i32 = arith.constant 0 : i32
    %c0_i32_0 = arith.constant 0 : i32
    %c0_i32_1 = arith.constant 0 : i32
    return %c0_i32, %c0_i32_0 : i32, i32
  }
  func.func @transform_1(%arg0: i32) -> (i32, i32) {
    %c0_i32 = arith.constant 0 : i32
    %c0_i32_0 = arith.constant 0 : i32
    %c0_i32_1 = arith.constant 0 : i32
    return %c0_i32, %c0_i32_0 : i32, i32
  }
  func.func @transform_2(%arg0: i32) -> (i32, i32) {
    %c0_i32 = arith.constant 0 : i32
    %c0_i32_0 = arith.constant 0 : i32
    %c0_i32_1 = arith.constant 0 : i32
    return %c0_i32, %c0_i32_0 : i32, i32
  }
  func.func @transform_3(%arg0: i32) -> (i32, i32) {
    %c0_i32 = arith.constant 0 : i32
    %c0_i32_0 = arith.constant 0 : i32
    %c0_i32_1 = arith.constant 0 : i32
    return %c0_i32, %c0_i32_0 : i32, i32
  }
  func.func @transform_4(%arg0: i32) -> (i32, i32) {
    %c0_i32 = arith.constant 0 : i32
    %c0_i32_0 = arith.constant 0 : i32
    %c0_i32_1 = arith.constant 0 : i32
    return %c0_i32, %c0_i32_0 : i32, i32
  }
  func.func @transform_5(%arg0: i32) -> (i32, i32) {
    %c0_i32 = arith.constant 0 : i32
    %c0_i32_0 = arith.constant 0 : i32
    %c0_i32_1 = arith.constant 0 : i32
    return %c0_i32, %c0_i32_0 : i32, i32
  }
}

module attributes {stable_mosaic.version = 11 : i64} {
  func.func @_mm_bias_act_kernel(%arg0: i32, %arg1: memref<392x128xbf16, #tpu.memory_space<vmem>>, %arg2: memref<128x128xbf16, #tpu.memory_space<vmem>>, %arg3: memref<1x128xf32, #tpu.memory_space<vmem>>, %arg4: memref<392x128xbf16, #tpu.memory_space<vmem>>) attributes {dimension_semantics = [#tpu.dimension_semantics<parallel>], iteration_bounds = array<i64: 1>, scalar_prefetch = 0 : i64, scratch_operands = 0 : i64, tpu.core_type = #tpu.core_type<tc>, window_params = [{transform_indices = @transform_0, window_bounds = array<i64: 392, 128>}, {pipeline_mode = #tpu.pipeline_mode<synchronous>, transform_indices = @transform_1, window_bounds = array<i64: 128, 128>}, {pipeline_mode = #tpu.pipeline_mode<synchronous>, transform_indices = @transform_2, window_bounds = array<i64: 1, 128>}, {transform_indices = @transform_3, window_bounds = array<i64: 392, 128>}]} {
    %c0 = arith.constant 0 : index
    %c0_0 = arith.constant 0 : index
    %0 = vector.load %arg1[%c0, %c0_0] : memref<392x128xbf16, #tpu.memory_space<vmem>>, vector<392x128xbf16>
    %c0_1 = arith.constant 0 : index
    %c0_2 = arith.constant 0 : index
    %1 = vector.load %arg2[%c0_1, %c0_2] : memref<128x128xbf16, #tpu.memory_space<vmem>>, vector<128x128xbf16>
    %cst = arith.constant dense<0.000000e+00> : vector<392x128xf32>
    %2 = tpu.matmul %0, %1, %cst {dimension_numbers = #tpu.dot_dimension_numbers<[1], [0], [0], [1], [0, 0, 1, 1], [], []>} : vector<392x128xbf16>, vector<128x128xbf16>, vector<392x128xf32> -> vector<392x128xf32>
    %c0_3 = arith.constant 0 : index
    %c0_4 = arith.constant 0 : index
    %3 = vector.load %arg3[%c0_3, %c0_4] : memref<1x128xf32, #tpu.memory_space<vmem>>, vector<1x128xf32>
    %4 = vector.broadcast %3 : vector<1x128xf32> to vector<392x128xf32>
    %5 = arith.addf %2, %4 : vector<392x128xf32>
    %cst_5 = arith.constant 0.000000e+00 : f32
    %6 = vector.broadcast %cst_5 : f32 to vector<392x128xf32>
    %7 = arith.maximumf %5, %6 : vector<392x128xf32>
    %8 = arith.truncf %7 : vector<392x128xf32> to vector<392x128xbf16>
    %c0_6 = arith.constant 0 : index
    %c0_7 = arith.constant 0 : index
    %9 = vector.load %arg4[%c0_6, %c0_7] : memref<392x128xbf16, #tpu.memory_space<vmem>>, vector<392x128xbf16>
    tpu.vector_store %arg4[%c0_6, %c0_7], %8 {strides = array<i32>} : memref<392x128xbf16, #tpu.memory_space<vmem>>, vector<392x128xbf16>,
    return
  }
  func.func @transform_0(%arg0: i32) -> (i32, i32) {
    %c0_i32 = arith.constant 0 : i32
    %c0_i32_0 = arith.constant 0 : i32
    return %arg0, %c0_i32 : i32, i32
  }
  func.func @transform_1(%arg0: i32) -> (i32, i32) {
    %c0_i32 = arith.constant 0 : i32
    %c0_i32_0 = arith.constant 0 : i32
    %c0_i32_1 = arith.constant 0 : i32
    return %c0_i32, %c0_i32_0 : i32, i32
  }
  func.func @transform_2(%arg0: i32) -> (i32, i32) {
    %c0_i32 = arith.constant 0 : i32
    %c0_i32_0 = arith.constant 0 : i32
    %c0_i32_1 = arith.constant 0 : i32
    return %c0_i32, %c0_i32_0 : i32, i32
  }
  func.func @transform_3(%arg0: i32) -> (i32, i32) {
    %c0_i32 = arith.constant 0 : i32
    %c0_i32_0 = arith.constant 0 : i32
    return %arg0, %c0_i32 : i32, i32
  }
}

module attributes {stable_mosaic.version = 11 : i64} {
  func.func @_mm_bias_act_kernel(%arg0: i32, %arg1: memref<392x64xbf16, #tpu.memory_space<vmem>>, %arg2: memref<64x128xbf16, #tpu.memory_space<vmem>>, %arg3: memref<1x128xf32, #tpu.memory_space<vmem>>, %arg4: memref<392x128xf32, #tpu.memory_space<vmem>>) attributes {dimension_semantics = [#tpu.dimension_semantics<parallel>], iteration_bounds = array<i64: 4>, scalar_prefetch = 0 : i64, scratch_operands = 0 : i64, tpu.core_type = #tpu.core_type<tc>, window_params = [{transform_indices = @transform_0, window_bounds = array<i64: 392, 64>}, {pipeline_mode = #tpu.pipeline_mode<synchronous>, transform_indices = @transform_1, window_bounds = array<i64: 64, 128>}, {pipeline_mode = #tpu.pipeline_mode<synchronous>, transform_indices = @transform_2, window_bounds = array<i64: 1, 128>}, {transform_indices = @transform_3, window_bounds = array<i64: 392, 128>}]} {
    %c0 = arith.constant 0 : index
    %c0_0 = arith.constant 0 : index
    %0 = vector.load %arg1[%c0, %c0_0] : memref<392x64xbf16, #tpu.memory_space<vmem>>, vector<392x64xbf16>
    %c0_1 = arith.constant 0 : index
    %c0_2 = arith.constant 0 : index
    %1 = vector.load %arg2[%c0_1, %c0_2] : memref<64x128xbf16, #tpu.memory_space<vmem>>, vector<64x128xbf16>
    %cst = arith.constant dense<0.000000e+00> : vector<392x128xf32>
    %2 = tpu.matmul %0, %1, %cst {dimension_numbers = #tpu.dot_dimension_numbers<[1], [0], [0], [1], [0, 0, 1, 1], [], []>} : vector<392x64xbf16>, vector<64x128xbf16>, vector<392x128xf32> -> vector<392x128xf32>
    %c0_3 = arith.constant 0 : index
    %c0_4 = arith.constant 0 : index
    %3 = vector.load %arg3[%c0_3, %c0_4] : memref<1x128xf32, #tpu.memory_space<vmem>>, vector<1x128xf32>
    %4 = vector.broadcast %3 : vector<1x128xf32> to vector<392x128xf32>
    %5 = arith.addf %2, %4 : vector<392x128xf32>
    %6 = math.tanh %5 : vector<392x128xf32>
    %c0_5 = arith.constant 0 : index
    %c0_6 = arith.constant 0 : index
    %7 = vector.load %arg4[%c0_5, %c0_6] : memref<392x128xf32, #tpu.memory_space<vmem>>, vector<392x128xf32>
    tpu.vector_store %arg4[%c0_5, %c0_6], %6 {strides = array<i32>} : memref<392x128xf32, #tpu.memory_space<vmem>>, vector<392x128xf32>,
    return
  }
  func.func @transform_0(%arg0: i32) -> (i32, i32) {
    %c0_i32 = arith.constant 0 : i32
    %c0_i32_0 = arith.constant 0 : i32
    return %arg0, %c0_i32 : i32, i32
  }
  func.func @transform_1(%arg0: i32) -> (i32, i32) {
    %c0_i32 = arith.constant 0 : i32
    %c0_i32_0 = arith.constant 0 : i32
    %c0_i32_1 = arith.constant 0 : i32
    return %c0_i32, %c0_i32_0 : i32, i32
  }
  func.func @transform_2(%arg0: i32) -> (i32, i32) {
    %c0_i32 = arith.constant 0 : i32
    %c0_i32_0 = arith.constant 0 : i32
    %c0_i32_1 = arith.constant 0 : i32
    return %c0_i32, %c0_i32_0 : i32, i32
  }
  func.func @transform_3(%arg0: i32) -> (i32, i32) {
    %c0_i32 = arith.constant 0 : i32
    %c0_i32_0 = arith.constant 0 : i32
    return %arg0, %c0_i32 : i32, i32
  }
}

</mosaic_0001>

<llo_original>
// kernel: autoencoder_forward.5
$region0: #{autoencoder_forward.5}
  #allocation0 [shape = 'u32[]', space=smem, size = 0x4, offset = 0x4, fixed_abs, tag = 'smem constant byte address 0x4 - core index']
  #allocation1 [shape = 'u32[144,128]{1,0:T(1,128)}', space=vmem, size = 0x12000, scoped, tag = 'internal scratch']
  %s0 = inlined_call_operand.vmem [shape: bf16[392,16], index: 0, kind: input, shape index: {}]
  %s1 = inlined_call_operand.vmem [shape: bf16[16,128], index: 1, kind: input, shape index: {}]
  %s2 = inlined_call_operand.vmem [shape: f32[1,128], index: 2, kind: input, shape index: {}]
  %s3 = inlined_call_operand.vmem [shape: bf16[392,128], index: 3, kind: output, shape index: {}]
  %s4 = sld [smem:[#allocation0]]
  $region22: #{autoencoder_forward.5} parent=0
    _
  %s6 = ssub.s32 1, %s4
  %s7 = scalar_select 0, %s6, %s4
  // Predicated region
  $region2: #{autoencoder_forward.5} parent=0 // pred_check
    _
  $region3: #{autoencoder_forward.5} parent=0 // pred_check_branch
    %9 = sbr.rel (0) target = $region5
  $region4: #{autoencoder_forward.5} parent=0 // pred_region
    _
  $region5: #{autoencoder_forward.5} parent=0 // pred_fallthru
    _
  // Predicated region
  $region6: #{autoencoder_forward.5} parent=0 // pred_check
    _
  $region7: #{autoencoder_forward.5} parent=0 // pred_check_branch
    %11 = sbr.rel (0) target = $region9
  $region8: #{autoencoder_forward.5} parent=0 // pred_region
    _
  $region9: #{autoencoder_forward.5} parent=0 // pred_fallthru
    _
  // Predicated region
  $region10: #{autoencoder_forward.5} parent=0 // pred_check
    _
  $region11: #{autoencoder_forward.5} parent=0 // pred_check_branch
    %13 = sbr.rel (0) target = $region13
  $region12: #{autoencoder_forward.5} parent=0 // pred_region
    _
  $region13: #{autoencoder_forward.5} parent=0 // pred_fallthru
    _
  %v15 = vld [vmem:[%s0] sm:$0xf]
  %v16 = vld [vmem:[%s0 + $0x4] sm:$0xf]
  %v17 = vld [vmem:[%s0 + $0x8] sm:$0xf]
  %v18 = vld [vmem:[%s0 + $0xc] sm:$0xf]
  %v19 = vld [vmem:[%s0 + $0x10] sm:$0xf]
  %v20 = vld [vmem:[%s0 + $0x14] sm:$0xf]
  %v21 = vld [vmem:[%s0 + $0x18] sm:$0xf]
  %v22 = vld [vmem:[%s0 + $0x1c] sm:$0xf]
  %v23 = vld [vmem:[%s0 + $0x20] sm:$0xf]
  %v24 = vld [vmem:[%s0 + $0x24] sm:$0xf]
  %v25 = vld [vmem:[%s0 + $0x28] sm:$0xf]
  %v26 = vld [vmem:[%s0 + $0x2c] sm:$0xf]
  %v27 = vld [vmem:[%s0 + $0x30] sm:$0xf]
  %v28 = vld [vmem:[%s0 + $0x34] sm:$0xf]
  %v29 = vld [vmem:[%s0 + $0x38] sm:$0xf]
  %v30 = vld [vmem:[%s0 + $0x3c] sm:$0xf]
  %v31 = vld [vmem:[%s0 + $0x40] sm:$0xf]
  %v32 = vld [vmem:[%s0 + $0x44] sm:$0xf]
  %v33 = vld [vmem:[%s0 + $0x48] sm:$0xf]
  %v34 = vld [vmem:[%s0 + $0x4c] sm:$0xf]
  %v35 = vld [vmem:[%s0 + $0x50] sm:$0xf]
  %v36 = vld [vmem:[%s0 + $0x54] sm:$0xf]
  %v37 = vld [vmem:[%s0 + $0x58] sm:$0xf]
  %v38 = vld [vmem:[%s0 + $0x5c] sm:$0xf]
  %v39 = vld [vmem:[%s0 + $0x60] sm:$0xf]
  %v40 = vld [vmem:[%s0 + $0x64] sm:$0xf]
  %v41 = vld [vmem:[%s0 + $0x68] sm:$0xf]
  %v42 = vld [vmem:[%s0 + $0x6c] sm:$0xf]
  %v43 = vld [vmem:[%s0 + $0x70] sm:$0xf]
  %v44 = vld [vmem:[%s0 + $0x74] sm:$0xf]
  %v45 = vld [vmem:[%s0 + $0x78] sm:$0xf]
  %v46 = vld [vmem:[%s0 + $0x7c] sm:$0xf]
  %v47 = vld [vmem:[%s0 + $0x80] sm:$0xf]
  %v48 = vld [vmem:[%s0 + $0x84] sm:$0xf]
  %v49 = vld [vmem:[%s0 + $0x88] sm:$0xf]
  %v50 = vld [vmem:[%s0 + $0x8c] sm:$0xf]
  %v51 = vld [vmem:[%s0 + $0x90] sm:$0xf]
  %v52 = vld [vmem:[%s0 + $0x94] sm:$0xf]
  %v53 = vld [vmem:[%s0 + $0x98] sm:$0xf]
  %v54 = vld [vmem:[%s0 + $0x9c] sm:$0xf]
  %v55 = vld [vmem:[%s0 + $0xa0] sm:$0xf]
  %v56 = vld [vmem:[%s0 + $0xa4] sm:$0xf]
  %v57 = vld [vmem:[%s0 + $0xa8] sm:$0xf]
  %v58 = vld [vmem:[%s0 + $0xac] sm:$0xf]
  %v59 = vld [vmem:[%s0 + $0xb0] sm:$0xf]
  %v60 = vld [vmem:[%s0 + $0xb4] sm:$0xf]
  %v61 = vld [vmem:[%s0 + $0xb8] sm:$0xf]
  %v62 = vld [vmem:[%s0 + $0xbc] sm:$0xf]
  %v63 = vld [vmem:[%s0 + $0xc0] sm:$0xf]
  %v64 = vld [vmem:[%s1] sm:$0xf]
  %v65 = vld [vmem:[%s1 + $0x4] sm:$0xf]
  %v66 = vld [vmem:[%s2] sm:$0x1]
  %v68 = vlaneseq
  %v69 = vshrl.u32 %v68, 7
  %v70 = vsub.s32 0, %v69
  %v71 = vrot.slane %v66, %v70
  %v122 = vunpack.c.l.b16 %v15
  %v123 = vunpack.c.l.b16 %v16
  %v124 = vunpack.c.l.b16 %v17
  %v125 = vunpack.c.l.b16 %v18
  %v126 = vunpack.c.l.b16 %v19
  %v127 = vunpack.c.l.b16 %v20
  %v128 = vunpack.c.l.b16 %v21
  %v129 = vunpack.c.l.b16 %v22
  %v130 = vunpack.c.l.b16 %v23
  %v131 = vunpack.c.l.b16 %v24
  %v132 = vunpack.c.l.b16 %v25
  %v133 = vunpack.c.l.b16 %v26
  %v134 = vunpack.c.l.b16 %v27
  %v135 = vunpack.c.l.b16 %v28
  %v136 = vunpack.c.l.b16 %v29
  %v137 = vunpack.c.l.b16 %v30
  %v138 = vunpack.c.l.b16 %v31
  %v139 = vunpack.c.l.b16 %v32
  %v140 = vunpack.c.l.b16 %v33
  %v141 = vunpack.c.l.b16 %v34
  %v142 = vunpack.c.l.b16 %v35
  %v143 = vunpack.c.l.b16 %v36
  %v144 = vunpack.c.l.b16 %v37
  %v145 = vunpack.c.l.b16 %v38
  %v146 = vunpack.c.l.b16 %v39
  %v147 = vunpack.c.l.b16 %v40
  %v148 = vunpack.c.l.b16 %v41
  %v149 = vunpack.c.l.b16 %v42
  %v150 = vunpack.c.l.b16 %v43
  %v151 = vunpack.c.l.b16 %v44
  %v152 = vunpack.c.l.b16 %v45
  %v153 = vunpack.c.l.b16 %v46
  %v154 = vunpack.c.l.b16 %v47
  %v155 = vunpack.c.l.b16 %v48
  %v156 = vunpack.c.l.b16 %v49
  %v157 = vunpack.c.l.b16 %v50
  %v158 = vunpack.c.l.b16 %v51
  %v159 = vunpack.c.l.b16 %v52
  %v160 = vunpack.c.l.b16 %v53
  %v161 = vunpack.c.l.b16 %v54
  %v162 = vunpack.c.l.b16 %v55
  %v163 = vunpack.c.l.b16 %v56
  %v164 = vunpack.c.l.b16 %v57
  %v165 = vunpack.c.l.b16 %v58
  %v166 = vunpack.c.l.b16 %v59
  %v167 = vunpack.c.l.b16 %v60
  %v168 = vunpack.c.l.b16 %v61
  %v169 = vunpack.c.l.b16 %v62
  %v170 = vunpack.c.l.b16 %v63
  %v171 = vpack.c.b16 %v123, %v122
  %v172 = vpack.c.b16 %v125, %v124
  %v173 = vpack.c.b16 %v127, %v126
  %v174 = vpack.c.b16 %v129, %v128
  %v175 = vpack.c.b16 %v131, %v130
  %v176 = vpack.c.b16 %v133, %v132
  %v177 = vpack.c.b16 %v135, %v134
  %v178 = vpack.c.b16 %v137, %v136
  %v179 = vpack.c.b16 %v139, %v138
  %v180 = vpack.c.b16 %v141, %v140
  %v181 = vpack.c.b16 %v143, %v142
  %v182 = vpack.c.b16 %v145, %v144
  %v183 = vpack.c.b16 %v147, %v146
  %v184 = vpack.c.b16 %v149, %v148
  %v185 = vpack.c.b16 %v151, %v150
  %v186 = vpack.c.b16 %v153, %v152
  %v187 = vpack.c.b16 %v155, %v154
  %v188 = vpack.c.b16 %v157, %v156
  %v189 = vpack.c.b16 %v159, %v158
  %v190 = vpack.c.b16 %v161, %v160
  %v191 = vpack.c.b16 %v163, %v162
  %v192 = vpack.c.b16 %v165, %v164
  %v193 = vpack.c.b16 %v167, %v166
  %v194 = vpack.c.b16 %v169, %v168
  %v195 = vpack.c.b16 %v170, %v170
  %v198 = vunpack.c.l.b16 %v64
  %v199 = vunpack.c.l.b16 %v65
  %v200 = vpack.c.b16 %v199, %v198
  %vm202 = vcmask 130048
  %v204 = vsel %vm202, %v171, 0
  %v207 = vsel %vm202, %v172, 0
  %v210 = vsel %vm202, %v173, 0
  %v213 = vsel %vm202, %v174, 0
  %v216 = vsel %vm202, %v175, 0
  %v219 = vsel %vm202, %v176, 0
  %v222 = vsel %vm202, %v177, 0
  %v225 = vsel %vm202, %v178, 0
  %v228 = vsel %vm202, %v179, 0
  %v231 = vsel %vm202, %v180, 0
  %v234 = vsel %vm202, %v181, 0
  %v237 = vsel %vm202, %v182, 0
  %v240 = vsel %vm202, %v183, 0
  %v243 = vsel %vm202, %v184, 0
  %v246 = vsel %vm202, %v185, 0
  %v249 = vsel %vm202, %v186, 0
  %v252 = vsel %vm202, %v187, 0
  %v255 = vsel %vm202, %v188, 0
  %v258 = vsel %vm202, %v189, 0
  %v261 = vsel %vm202, %v190, 0
  %v264 = vsel %vm202, %v191, 0
  %v267 = vsel %vm202, %v192, 0
  %v270 = vsel %vm202, %v193, 0
  %v273 = vsel %vm202, %v194, 0
  %v276 = vsel %vm202, %v195, 0
  %278 = vmatprep.subr.bf16.mxu0 0
  %279 = vmatpush1.bf16.msra.mxu0 %v200
  %280 = vmatprep.subr.bf16.mxu0 0
  %281 = vmatpush1.bf16.msra.mxu0 0
  %282 = vmatprep.subr.bf16.mxu0 0
  %283 = vmatpush1.bf16.msra.mxu0 0
  %284 = vmatprep.subr.bf16.mxu0 0
  %285 = vmatpush1.bf16.msra.mxu0 0
  %286 = vmatprep.subr.bf16.mxu0 0
  %287 = vmatpush1.bf16.msra.mxu0 0
  %288 = vmatprep.subr.bf16.mxu0 0
  %289 = vmatpush1.bf16.msra.mxu0 0
  %290 = vmatprep.subr.bf16.mxu0 0
  %291 = vmatpush1.bf16.msra.mxu0 0
  %292 = vmatprep.subr.bf16.mxu0 0
  %293 = vmatpush1.bf16.msra.mxu0 0
  %294 = vmatprep.subr.bf16.mxu0 0
  %295 = vmatpush1.bf16.msra.mxu0 0
  %296 = vmatprep.subr.bf16.mxu0 0
  %297 = vmatpush1.bf16.msra.mxu0 0
  %298 = vmatprep.subr.bf16.mxu0 0
  %299 = vmatpush1.bf16.msra.mxu0 0
  %300 = vmatprep.subr.bf16.mxu0 0
  %301 = vmatpush1.bf16.msra.mxu0 0
  %302 = vmatprep.subr.bf16.mxu0 0
  %303 = vmatpush1.bf16.msra.mxu0 0
  %304 = vmatprep.subr.bf16.mxu0 0
  %305 = vmatpush1.bf16.msra.mxu0 0
  %306 = vmatprep.subr.bf16.mxu0 0
  %307 = vmatpush1.bf16.msra.mxu0 0
  %308 = vmatprep.subr.bf16.mxu0 0
  %309 = vmatpush1.bf16.msra.mxu0 0
  %310 = vmatprep.mubr.bf16.mxu0 0
  %311 = vmatmul.mubr.bf16.gmra.mrb[0].mxu0 %v204
  %v312 = vpop.f32.mrb[0].mxu0
  %v313 = vadd.f32 %v71, %v312
  %v314 = vpop.f32.mrb[0].mxu0
  %v315 = vpop.f32.mrb[0].mxu0
  %v316 = vadd.f32 %v71, %v315
  %v317 = vpop.f32.mrb[0].mxu0
  %318 = vmatprep.mubr.bf16.mxu0 0
  %319 = vmatmul.mubr.bf16.gmra.mrb[0].mxu0 %v207
  %v320 = vpop.f32.mrb[0].mxu0
  %v321 = vadd.f32 %v71, %v320
  %v322 = vpop.f32.mrb[0].mxu0
  %v323 = vpop.f32.mrb[0].mxu0
  %v324 = vadd.f32 %v71, %v323
  %v325 = vpop.f32.mrb[0].mxu0
  %326 = vmatprep.mubr.bf16.mxu0 0
  %327 = vmatmul.mubr.bf16.gmra.mrb[0].mxu0 %v210
  %v328 = vpop.f32.mrb[0].mxu0
  %v329 = vadd.f32 %v71, %v328
  %v330 = vpop.f32.mrb[0].mxu0
  %v331 = vpop.f32.mrb[0].mxu0
  %v332 = vadd.f32 %v71, %v331
  %v333 = vpop.f32.mrb[0].mxu0
  %334 = vmatprep.mubr.bf16.mxu0 0
  %335 = vmatmul.mubr.bf16.gmra.mrb[0].mxu0 %v213
  %v336 = vpop.f32.mrb[0].mxu0
  %v337 = vadd.f32 %v71, %v336
  %v338 = vpop.f32.mrb[0].mxu0
  %v339 = vpop.f32.mrb[0].mxu0
  %v340 = vadd.f32 %v71, %v339
  %v341 = vpop.f32.mrb[0].mxu0
  %342 = vmatprep.mubr.bf16.mxu0 0
  %343 = vmatmul.mubr.bf16.gmra.mrb[0].mxu0 %v216
  %v344 = vpop.f32.mrb[0].mxu0
  %v345 = vadd.f32 %v71, %v344
  %v346 = vpop.f32.mrb[0].mxu0
  %v347 = vpop.f32.mrb[0].mxu0
  %v348 = vadd.f32 %v71, %v347
  %v349 = vpop.f32.mrb[0].mxu0
  %350 = vmatprep.mubr.bf16.mxu0 0
  %351 = vmatmul.mubr.bf16.gmra.mrb[0].mxu0 %v219
  %v352 = vpop.f32.mrb[0].mxu0
  %v353 = vadd.f32 %v71, %v352
  %v354 = vpop.f32.mrb[0].mxu0
  %v355 = vpop.f32.mrb[0].mxu0
  %v356 = vadd.f32 %v71, %v355
  %v357 = vpop.f32.mrb[0].mxu0
  %358 = vmatprep.mubr.bf16.mxu0 0
  %359 = vmatmul.mubr.bf16.gmra.mrb[0].mxu0 %v222
  %v360 = vpop.f32.mrb[0].mxu0
  %v361 = vadd.f32 %v71, %v360
  %v362 = vpop.f32.mrb[0].mxu0
  %v363 = vpop.f32.mrb[0].mxu0
  %v364 = vadd.f32 %v71, %v363
  %v365 = vpop.f32.mrb[0].mxu0
  %366 = vmatprep.mubr.bf16.mxu0 0
  %367 = vmatmul.mubr.bf16.gmra.mrb[0].mxu0 %v225
  %v368 = vpop.f32.mrb[0].mxu0
  %v369 = vadd.f32 %v71, %v368
  %v370 = vpop.f32.mrb[0].mxu0
  %v371 = vpop.f32.mrb[0].mxu0
  %v372 = vadd.f32 %v71, %v371
  %v373 = vpop.f32.mrb[0].mxu0
  %374 = vmatprep.mubr.bf16.mxu0 0
  %375 = vmatmul.mubr.bf16.gmra.mrb[0].mxu0 %v228
  %v376 = vpop.f32.mrb[0].mxu0
  %v377 = vadd.f32 %v71, %v376
  %v378 = vpop.f32.mrb[0].mxu0
  %v379 = vpop.f32.mrb[0].mxu0
  %v380 = vadd.f32 %v71, %v379
  %v381 = vpop.f32.mrb[0].mxu0
  %382 = vmatprep.mubr.bf16.mxu0 0
  %383 = vmatmul.mubr.bf16.gmra.mrb[0].mxu0 %v231
  %v384 = vpop.f32.mrb[0].mxu0
  %v385 = vadd.f32 %v71, %v384
  %v386 = vpop.f32.mrb[0].mxu0
  %v387 = vpop.f32.mrb[0].mxu0
  %v388 = vadd.f32 %v71, %v387
  %v389 = vpop.f32.mrb[0].mxu0
  %390 = vmatprep.mubr.bf16.mxu0 0
  %391 = vmatmul.mubr.bf16.gmra.mrb[0].mxu0 %v234
  %v392 = vpop.f32.mrb[0].mxu0
  %v393 = vadd.f32 %v71, %v392
  %v394 = vpop.f32.mrb[0].mxu0
  %v395 = vpop.f32.mrb[0].mxu0
  %v396 = vadd.f32 %v71, %v395
  %v397 = vpop.f32.mrb[0].mxu0
  %398 = vmatprep.mubr.bf16.mxu0 0
  %399 = vmatmul.mubr.bf16.gmra.mrb[0].mxu0 %v237
  %v400 = vpop.f32.mrb[0].mxu0
  %v401 = vadd.f32 %v71, %v400
  %v402 = vpop.f32.mrb[0].mxu0
  %v403 = vpop.f32.mrb[0].mxu0
  %v404 = vadd.f32 %v71, %v403
  %v405 = vpop.f32.mrb[0].mxu0
  %406 = vmatprep.mubr.bf16.mxu0 0
  %407 = vmatmul.mubr.bf16.gmra.mrb[0].mxu0 %v240
  %v408 = vpop.f32.mrb[0].mxu0
  %v409 = vadd.f32 %v71, %v408
  %v410 = vpop.f32.mrb[0].mxu0
  %v411 = vpop.f32.mrb[0].mxu0
  %v412 = vadd.f32 %v71, %v411
  %v413 = vpop.f32.mrb[0].mxu0
  %414 = vmatprep.mubr.bf16.mxu0 0
  %415 = vmatmul.mubr.bf16.gmra.mrb[0].mxu0 %v243
  %v416 = vpop.f32.mrb[0].mxu0
  %v417 = vadd.f32 %v71, %v416
  %v418 = vpop.f32.mrb[0].mxu0
  %v419 = vpop.f32.mrb[0].mxu0
  %v420 = vadd.f32 %v71, %v419
  %v421 = vpop.f32.mrb[0].mxu0
  %422 = vmatprep.mubr.bf16.mxu0 0
  %423 = vmatmul.mubr.bf16.gmra.mrb[0].mxu0 %v246
  %v424 = vpop.f32.mrb[0].mxu0
  %v425 = vadd.f32 %v71, %v424
  %v426 = vpop.f32.mrb[0].mxu0
  %v427 = vpop.f32.mrb[0].mxu0
  %v428 = vadd.f32 %v71, %v427
  %v429 = vpop.f32.mrb[0].mxu0
  %430 = vmatprep.mubr.bf16.mxu0 0
  %431 = vmatmul.mubr.bf16.gmra.mrb[0].mxu0 %v249
  %v432 = vpop.f32.mrb[0].mxu0
  %v433 = vadd.f32 %v71, %v432
  %v434 = vpop.f32.mrb[0].mxu0
  %v435 = vpop.f32.mrb[0].mxu0
  %v436 = vadd.f32 %v71, %v435
  %v437 = vpop.f32.mrb[0].mxu0
  %438 = vmatprep.mubr.bf16.mxu0 0
  %439 = vmatmul.mubr.bf16.gmra.mrb[0].mxu0 %v252
  %v440 = vpop.f32.mrb[0].mxu0
  %v441 = vadd.f32 %v71, %v440
  %v442 = vpop.f32.mrb[0].mxu0
  %v443 = vpop.f32.mrb[0].mxu0
  %v444 = vadd.f32 %v71, %v443
  %v445 = vpop.f32.mrb[0].mxu0
  %446 = vmatprep.mubr.bf16.mxu0 0
  %447 = vmatmul.mubr.bf16.gmra.mrb[0].mxu0 %v255
  %v448 = vpop.f32.mrb[0].mxu0
  %v449 = vadd.f32 %v71, %v448
  %v450 = vpop.f32.mrb[0].mxu0
  %v451 = vpop.f32.mrb[0].mxu0
  %v452 = vadd.f32 %v71, %v451
  %v453 = vpop.f32.mrb[0].mxu0
  %454 = vmatprep.mubr.bf16.mxu0 0
  %455 = vmatmul.mubr.bf16.gmra.mrb[0].mxu0 %v258
  %v456 = vpop.f32.mrb[0].mxu0
  %v457 = vadd.f32 %v71, %v456
  %v458 = vpop.f32.mrb[0].mxu0
  %v459 = vpop.f32.mrb[0].mxu0
  %v460 = vadd.f32 %v71, %v459
  %v461 = vpop.f32.mrb[0].mxu0
  %462 = vmatprep.mubr.bf16.mxu0 0
  %463 = vmatmul.mubr.bf16.gmra.mrb[0].mxu0 %v261
  %v464 = vpop.f32.mrb[0].mxu0
  %v465 = vadd.f32 %v71, %v464
  %v466 = vpop.f32.mrb[0].mxu0
  %v467 = vpop.f32.mrb[0].mxu0
  %v468 = vadd.f32 %v71, %v467
  %v469 = vpop.f32.mrb[0].mxu0
  %470 = vmatprep.mubr.bf16.mxu0 0
  %471 = vmatmul.mubr.bf16.gmra.mrb[0].mxu0 %v264
  %v472 = vpop.f32.mrb[0].mxu0
  %v473 = vadd.f32 %v71, %v472
  %v474 = vpop.f32.mrb[0].mxu0
  %v475 = vpop.f32.mrb[0].mxu0
  %v476 = vadd.f32 %v71, %v475
  %v477 = vpop.f32.mrb[0].mxu0
  %478 = vmatprep.mubr.bf16.mxu0 0
  %479 = vmatmul.mubr.bf16.gmra.mrb[0].mxu0 %v267
  %v480 = vpop.f32.mrb[0].mxu0
  %v481 = vadd.f32 %v71, %v480
  %v482 = vpop.f32.mrb[0].mxu0
  %v483 = vpop.f32.mrb[0].mxu0
  %v484 = vadd.f32 %v71, %v483
  %v485 = vpop.f32.mrb[0].mxu0
  %486 = vmatprep.mubr.bf16.mxu0 0
  %487 = vmatmul.mubr.bf16.gmra.mrb[0].mxu0 %v270
  %v488 = vpop.f32.mrb[0].mxu0
  %v489 = vadd.f32 %v71, %v488
  %v490 = vpop.f32.mrb[0].mxu0
  %v491 = vpop.f32.mrb[0].mxu0
  %v492 = vadd.f32 %v71, %v491
  %v493 = vpop.f32.mrb[0].mxu0
  %494 = vmatprep.mubr.bf16.mxu0 0
  %495 = vmatmul.mubr.bf16.gmra.mrb[0].mxu0 %v273
  %v496 = vpop.f32.mrb[0].mxu0
  %v497 = vadd.f32 %v71, %v496
  %v498 = vpop.f32.mrb[0].mxu0
  %v499 = vpop.f32.mrb[0].mxu0
  %v500 = vadd.f32 %v71, %v499
  %v501 = vpop.f32.mrb[0].mxu0
  %502 = vmatprep.mubr.bf16.mxu0 0
  %503 = vmatmul.mubr.bf16.gmra.mrb[0].mxu0 %v276
  %v504 = vpop.f32.mrb[0].mxu0
  %v505 = vadd.f32 %v71, %v504
  %v506 = vpop.f32.mrb[0].mxu0
  %v507 = vpop.f32.mrb[0].mxu0
  %v508 = vpop.f32.mrb[0].mxu0
  %509 = vdwg.mxu0
  %v510 = vmax.f32 %v313, 0.0
  %v511 = vmax.f32 %v316, 0.0
  %v512 = vmax.f32 %v321, 0.0
  %v513 = vmax.f32 %v324, 0.0
  %v514 = vmax.f32 %v329, 0.0
  %v515 = vmax.f32 %v332, 0.0
  %v516 = vmax.f32 %v337, 0.0
  %v517 = vmax.f32 %v340, 0.0
  %v518 = vmax.f32 %v345, 0.0
  %v519 = vmax.f32 %v348, 0.0
  %v520 = vmax.f32 %v353, 0.0
  %v521 = vmax.f32 %v356, 0.0
  %v522 = vmax.f32 %v361, 0.0
  %v523 = vmax.f32 %v364, 0.0
  %v524 = vmax.f32 %v369, 0.0
  %v525 = vmax.f32 %v372, 0.0
  %v526 = vmax.f32 %v377, 0.0
  %v527 = vmax.f32 %v380, 0.0
  %v528 = vmax.f32 %v385, 0.0
  %v529 = vmax.f32 %v388, 0.0
  %v530 = vmax.f32 %v393, 0.0
  %v531 = vmax.f32 %v396, 0.0
  %v532 = vmax.f32 %v401, 0.0
  %v533 = vmax.f32 %v404, 0.0
  %v534 = vmax.f32 %v409, 0.0
  %v535 = vmax.f32 %v412, 0.0
  %v536 = vmax.f32 %v417, 0.0
  %v537 = vmax.f32 %v420, 0.0
  %v538 = vmax.f32 %v425, 0.0
  %v539 = vmax.f32 %v428, 0.0
  %v540 = vmax.f32 %v433, 0.0
  %v541 = vmax.f32 %v436, 0.0
  %v542 = vmax.f32 %v441, 0.0
  %v543 = vmax.f32 %v444, 0.0
  %v544 = vmax.f32 %v449, 0.0
  %v545 = vmax.f32 %v452, 0.0
  %v546 = vmax.f32 %v457, 0.0
  %v547 = vmax.f32 %v460, 0.0
  %v548 = vmax.f32 %v465, 0.0
  %v549 = vmax.f32 %v468, 0.0
  %v550 = vmax.f32 %v473, 0.0
  %v551 = vmax.f32 %v476, 0.0
  %v552 = vmax.f32 %v481, 0.0
  %v553 = vmax.f32 %v484, 0.0
  %v554 = vmax.f32 %v489, 0.0
  %v555 = vmax.f32 %v492, 0.0
  %v556 = vmax.f32 %v497, 0.0
  %v557 = vmax.f32 %v500, 0.0
  %v558 = vmax.f32 %v505, 0.0
  %v559 = vpack.c.bf16 %v511, %v510
  %v560 = vpack.c.bf16 %v513, %v512
  %v561 = vpack.c.bf16 %v515, %v514
  %v562 = vpack.c.bf16 %v517, %v516
  %v563 = vpack.c.bf16 %v519, %v518
  %v564 = vpack.c.bf16 %v521, %v520
  %v565 = vpack.c.bf16 %v523, %v522
  %v566 = vpack.c.bf16 %v525, %v524
  %v567 = vpack.c.bf16 %v527, %v526
  %v568 = vpack.c.bf16 %v529, %v528
  %v569 = vpack.c.bf16 %v531, %v530
  %v570 = vpack.c.bf16 %v533, %v532
  %v571 = vpack.c.bf16 %v535, %v534
  %v572 = vpack.c.bf16 %v537, %v536
  %v573 = vpack.c.bf16 %v539, %v538
  %v574 = vpack.c.bf16 %v541, %v540
  %v575 = vpack.c.bf16 %v543, %v542
  %v576 = vpack.c.bf16 %v545, %v544
  %v577 = vpack.c.bf16 %v547, %v546
  %v578 = vpack.c.bf16 %v549, %v548
  %v579 = vpack.c.bf16 %v551, %v550
  %v580 = vpack.c.bf16 %v553, %v552
  %v581 = vpack.c.bf16 %v555, %v554
  %v582 = vpack.c.bf16 %v557, %v556
  %v583 = vpack.c.bf16 %v558, %v558
  %v609 = vunpack.c.l.b16 %v559
  %v610 = vunpack.c.h.b16 %v559
  %v611 = vunpack.c.l.b16 %v560
  %v612 = vunpack.c.h.b16 %v560
  %v613 = vunpack.c.l.b16 %v561
  %v614 = vunpack.c.h.b16 %v561
  %v615 = vunpack.c.l.b16 %v562
  %v616 = vunpack.c.h.b16 %v562
  %v617 = vunpack.c.l.b16 %v563
  %v618 = vunpack.c.h.b16 %v563
  %v619 = vunpack.c.l.b16 %v564
  %v620 = vunpack.c.h.b16 %v564
  %v621 = vunpack.c.l.b16 %v565
  %v622 = vunpack.c.h.b16 %v565
  %v623 = vunpack.c.l.b16 %v566
  %v624 = vunpack.c.h.b16 %v566
  %v625 = vunpack.c.l.b16 %v567
  %v626 = vunpack.c.h.b16 %v567
  %v627 = vunpack.c.l.b16 %v568
  %v628 = vunpack.c.h.b16 %v568
  %v629 = vunpack.c.l.b16 %v569
  %v630 = vunpack.c.h.b16 %v569
  %v631 = vunpack.c.l.b16 %v570
  %v632 = vunpack.c.h.b16 %v570
  %v633 = vunpack.c.l.b16 %v571
  %v634 = vunpack.c.h.b16 %v571
  %v635 = vunpack.c.l.b16 %v572
  %v636 = vunpack.c.h.b16 %v572
  %v637 = vunpack.c.l.b16 %v573
  %v638 = vunpack.c.h.b16 %v573
  %v639 = vunpack.c.l.b16 %v574
  %v640 = vunpack.c.h.b16 %v574
  %v641 = vunpack.c.l.b16 %v575
  %v642 = vunpack.c.h.b16 %v575
  %v643 = vunpack.c.l.b16 %v576
  %v644 = vunpack.c.h.b16 %v576
  %v645 = vunpack.c.l.b16 %v577
  %v646 = vunpack.c.h.b16 %v577
  %v647 = vunpack.c.l.b16 %v578
  %v648 = vunpack.c.h.b16 %v578
  %v649 = vunpack.c.l.b16 %v579
  %v650 = vunpack.c.h.b16 %v579
  %v651 = vunpack.c.l.b16 %v580
  %v652 = vunpack.c.h.b16 %v580
  %v653 = vunpack.c.l.b16 %v581
  %v654 = vunpack.c.h.b16 %v581
  %v655 = vunpack.c.l.b16 %v582
  %v656 = vunpack.c.h.b16 %v582
  %v657 = vunpack.c.l.b16 %v583
  %v658 = vpack.c.b16 %v609, %v609
  %v659 = vpack.c.b16 %v610, %v610
  %v660 = vpack.c.b16 %v611, %v611
  %v661 = vpack.c.b16 %v612, %v612
  %v662 = vpack.c.b16 %v613, %v613
  %v663 = vpack.c.b16 %v614, %v614
  %v664 = vpack.c.b16 %v615, %v615
  %v665 = vpack.c.b16 %v616, %v616
  %v666 = vpack.c.b16 %v617, %v617
  %v667 = vpack.c.b16 %v618, %v618
  %v668 = vpack.c.b16 %v619, %v619
  %v669 = vpack.c.b16 %v620, %v620
  %v670 = vpack.c.b16 %v621, %v621
  %v671 = vpack.c.b16 %v622, %v622
  %v672 = vpack.c.b16 %v623, %v623
  %v673 = vpack.c.b16 %v624, %v624
  %v674 = vpack.c.b16 %v625, %v625
  %v675 = vpack.c.b16 %v626, %v626
  %v676 = vpack.c.b16 %v627, %v627
  %v677 = vpack.c.b16 %v628, %v628
  %v678 = vpack.c.b16 %v629, %v629
  %v679 = vpack.c.b16 %v630, %v630
  %v680 = vpack.c.b16 %v631, %v631
  %v681 = vpack.c.b16 %v632, %v632
  %v682 = vpack.c.b16 %v633, %v633
  %v683 = vpack.c.b16 %v634, %v634
  %v684 = vpack.c.b16 %v635, %v635
  %v685 = vpack.c.b16 %v636, %v636
  %v686 = vpack.c.b16 %v637, %v637
  %v687 = vpack.c.b16 %v638, %v638
  %v688 = vpack.c.b16 %v639, %v639
  %v689 = vpack.c.b16 %v640, %v640
  %v690 = vpack.c.b16 %v641, %v641
  %v691 = vpack.c.b16 %v642, %v642
  %v692 = vpack.c.b16 %v643, %v643
  %v693 = vpack.c.b16 %v644, %v644
  %v694 = vpack.c.b16 %v645, %v645
  %v695 = vpack.c.b16 %v646, %v646
  %v696 = vpack.c.b16 %v647, %v647
  %v697 = vpack.c.b16 %v648, %v648
  %v698 = vpack.c.b16 %v649, %v649
  %v699 = vpack.c.b16 %v650, %v650
  %v700 = vpack.c.b16 %v651, %v651
  %v701 = vpack.c.b16 %v652, %v652
  %v702 = vpack.c.b16 %v653, %v653
  %v703 = vpack.c.b16 %v654, %v654
  %v704 = vpack.c.b16 %v655, %v655
  %v705 = vpack.c.b16 %v656, %v656
  %v706 = vpack.c.b16 %v657, %v657
  %756 = vst [vmem:[%s3] sm:$0xf] %v658
  %757 = vst [vmem:[%s3 + $0x4] sm:$0xf] %v659
  %758 = vst [vmem:[%s3 + $0x8] sm:$0xf] %v660
  %759 = vst [vmem:[%s3 + $0xc] sm:$0xf] %v661
  %760 = vst [vmem:[%s3 + $0x10] sm:$0xf] %v662
  %761 = vst [vmem:[%s3 + $0x14] sm:$0xf] %v663
  %762 = vst [vmem:[%s3 + $0x18] sm:$0xf] %v664
  %763 = vst [vmem:[%s3 + $0x1c] sm:$0xf] %v665
  %764 = vst [vmem:[%s3 + $0x20] sm:$0xf] %v666
  %765 = vst [vmem:[%s3 + $0x24] sm:$0xf] %v667
  %766 = vst [vmem:[%s3 + $0x28] sm:$0xf] %v668
  %767 = vst [vmem:[%s3 + $0x2c] sm:$0xf] %v669
  %768 = vst [vmem:[%s3 + $0x30] sm:$0xf] %v670
  %769 = vst [vmem:[%s3 + $0x34] sm:$0xf] %v671
  %770 = vst [vmem:[%s3 + $0x38] sm:$0xf] %v672
  %771 = vst [vmem:[%s3 + $0x3c] sm:$0xf] %v673
  %772 = vst [vmem:[%s3 + $0x40] sm:$0xf] %v674
  %773 = vst [vmem:[%s3 + $0x44] sm:$0xf] %v675
  %774 = vst [vmem:[%s3 + $0x48] sm:$0xf] %v676
  %775 = vst [vmem:[%s3 + $0x4c] sm:$0xf] %v677
  %776 = vst [vmem:[%s3 + $0x50] sm:$0xf] %v678
  %777 = vst [vmem:[%s3 + $0x54] sm:$0xf] %v679
  %778 = vst [vmem:[%s3 + $0x58] sm:$0xf] %v680
  %779 = vst [vmem:[%s3 + $0x5c] sm:$0xf] %v681
  %780 = vst [vmem:[%s3 + $0x60] sm:$0xf] %v682
  %781 = vst [vmem:[%s3 + $0x64] sm:$0xf] %v683
  %782 = vst [vmem:[%s3 + $0x68] sm:$0xf] %v684
  %783 = vst [vmem:[%s3 + $0x6c] sm:$0xf] %v685
  %784 = vst [vmem:[%s3 + $0x70] sm:$0xf] %v686
  %785 = vst [vmem:[%s3 + $0x74] sm:$0xf] %v687
  %786 = vst [vmem:[%s3 + $0x78] sm:$0xf] %v688
  %787 = vst [vmem:[%s3 + $0x7c] sm:$0xf] %v689
  %788 = vst [vmem:[%s3 + $0x80] sm:$0xf] %v690
  %789 = vst [vmem:[%s3 + $0x84] sm:$0xf] %v691
  %790 = vst [vmem:[%s3 + $0x88] sm:$0xf] %v692
  %791 = vst [vmem:[%s3 + $0x8c] sm:$0xf] %v693
  %792 = vst [vmem:[%s3 + $0x90] sm:$0xf] %v694
  %793 = vst [vmem:[%s3 + $0x94] sm:$0xf] %v695
  %794 = vst [vmem:[%s3 + $0x98] sm:$0xf] %v696
  %795 = vst [vmem:[%s3 + $0x9c] sm:$0xf] %v697
  %796 = vst [vmem:[%s3 + $0xa0] sm:$0xf] %v698
  %797 = vst [vmem:[%s3 + $0xa4] sm:$0xf] %v699
  %798 = vst [vmem:[%s3 + $0xa8] sm:$0xf] %v700
  %799 = vst [vmem:[%s3 + $0xac] sm:$0xf] %v701
  %800 = vst [vmem:[%s3 + $0xb0] sm:$0xf] %v702
  %801 = vst [vmem:[%s3 + $0xb4] sm:$0xf] %v703
  %802 = vst [vmem:[%s3 + $0xb8] sm:$0xf] %v704
  %803 = vst [vmem:[%s3 + $0xbc] sm:$0xf] %v705
  %804 = vst [vmem:[%s3 + $0xc0] sm:$0xf] %v706
  // Predicated region
  $region14: #{autoencoder_forward.5} parent=0 // pred_check
    _
  $region15: #{autoencoder_forward.5} parent=0 // pred_check_branch
    %806 = sbr.rel (0) target = $region17
  $region16: #{autoencoder_forward.5} parent=0 // pred_region
    _
  $region17: #{autoencoder_forward.5} parent=0 // pred_fallthru
    _
  // Predicated region
  $region18: #{autoencoder_forward.5} parent=0 // pred_check
    _
  $region19: #{autoencoder_forward.5} parent=0 // pred_check_branch
    %808 = sbr.rel (0) target = $region21
  $region20: #{autoencoder_forward.5} parent=0 // pred_region
    _
  $region21: #{autoencoder_forward.5} parent=0 // pred_fallthru
    _

// kernel: autoencoder_forward.6
$region0: #{autoencoder_forward.6}
  #allocation0 [shape = 'u32[]', space=smem, size = 0x4, offset = 0x4, fixed_abs, tag = 'smem constant byte address 0x4 - core index']
  #allocation1 [shape = 'u32[144,128]{1,0:T(1,128)}', space=vmem, size = 0x12000, scoped, tag = 'internal scratch']
  %s0 = inlined_call_operand.vmem [shape: bf16[98,64], index: 0, kind: input, shape index: {}]
  %s1 = inlined_call_operand.vmem [shape: bf16[64,128], index: 1, kind: input, shape index: {}]
  %s2 = inlined_call_operand.vmem [shape: f32[1,128], index: 2, kind: input, shape index: {}]
  %s3 = inlined_call_operand.vmem [shape: bf16[98,128], index: 3, kind: output, shape index: {}]
  %s4 = sld [smem:[#allocation0]]
  $region22: #{autoencoder_forward.6} parent=0
    _
  %s6 = ssub.s32 1, %s4
  %s7 = scalar_select 0, %s6, %s4
  // Predicated region
  $region2: #{autoencoder_forward.6} parent=0 // pred_check
    _
  $region3: #{autoencoder_forward.6} parent=0 // pred_check_branch
    %9 = sbr.rel (0) target = $region5
  $region4: #{autoencoder_forward.6} parent=0 // pred_region
    _
  $region5: #{autoencoder_forward.6} parent=0 // pred_fallthru
    _
  // Predicated region
  $region6: #{autoencoder_forward.6} parent=0 // pred_check
    _
  $region7: #{autoencoder_forward.6} parent=0 // pred_check_branch
    %11 = sbr.rel (0) target = $region9
  $region8: #{autoencoder_forward.6} parent=0 // pred_region
    _
  $region9: #{autoencoder_forward.6} parent=0 // pred_fallthru
    _
  // Predicated region
  $region10: #{autoencoder_forward.6} parent=0 // pred_check
    _
  $region11: #{autoencoder_forward.6} parent=0 // pred_check_branch
    %13 = sbr.rel (0) target = $region13
  $region12: #{autoencoder_forward.6} parent=0 // pred_region
    _
  $region13: #{autoencoder_forward.6} parent=0 // pred_fallthru
    _
  %v15 = vld [vmem:[%s0] sm:$0xf]
  %v16 = vld [vmem:[%s0 + $0x4] sm:$0xf]
  %v17 = vld [vmem:[%s0 + $0x8] sm:$0xf]
  %v18 = vld [vmem:[%s0 + $0xc] sm:$0xf]
  %v19 = vld [vmem:[%s0 + $0x10] sm:$0xf]
  %v20 = vld [vmem:[%s0 + $0x14] sm:$0xf]
  %v21 = vld [vmem:[%s0 + $0x18] sm:$0xf]
  %v22 = vld [vmem:[%s0 + $0x1c] sm:$0xf]
  %v23 = vld [vmem:[%s0 + $0x20] sm:$0xf]
  %v24 = vld [vmem:[%s0 + $0x24] sm:$0xf]
  %v25 = vld [vmem:[%s0 + $0x28] sm:$0xf]
  %v26 = vld [vmem:[%s0 + $0x2c] sm:$0xf]
  %v27 = vld [vmem:[%s0 + $0x30] sm:$0x1]
  %v28 = vld [vmem:[%s1] sm:$0xf]
  %v29 = vld [vmem:[%s1 + $0x4] sm:$0xf]
  %v30 = vld [vmem:[%s1 + $0x8] sm:$0xf]
  %v31 = vld [vmem:[%s1 + $0xc] sm:$0xf]
  %v32 = vld [vmem:[%s1 + $0x10] sm:$0xf]
  %v33 = vld [vmem:[%s1 + $0x14] sm:$0xf]
  %v34 = vld [vmem:[%s1 + $0x18] sm:$0xf]
  %v35 = vld [vmem:[%s1 + $0x1c] sm:$0xf]
  %v36 = vld [vmem:[%s2] sm:$0x1]
  %v38 = vlaneseq
  %v39 = vshrl.u32 %v38, 7
  %v40 = vsub.s32 0, %v39
  %v41 = vrot.slane %v36, %v40
  %v56 = vunpack.c.l.b16 %v15
  %v57 = vunpack.c.l.b16 %v16
  %v58 = vunpack.c.l.b16 %v17
  %v59 = vunpack.c.l.b16 %v18
  %v60 = vunpack.c.l.b16 %v19
  %v61 = vunpack.c.l.b16 %v20
  %v62 = vunpack.c.l.b16 %v21
  %v63 = vunpack.c.l.b16 %v22
  %v64 = vunpack.c.l.b16 %v23
  %v65 = vunpack.c.l.b16 %v24
  %v66 = vunpack.c.l.b16 %v25
  %v67 = vunpack.c.l.b16 %v26
  %v68 = vunpack.c.l.b16 %v27
  %v69 = vpack.c.b16 %v57, %v56
  %v70 = vpack.c.b16 %v59, %v58
  %v71 = vpack.c.b16 %v61, %v60
  %v72 = vpack.c.b16 %v63, %v62
  %v73 = vpack.c.b16 %v65, %v64
  %v74 = vpack.c.b16 %v67, %v66
  %v75 = vpack.c.b16 %v68, %v68
  %v84 = vunpack.c.l.b16 %v28
  %v85 = vunpack.c.l.b16 %v29
  %v86 = vunpack.c.l.b16 %v30
  %v87 = vunpack.c.l.b16 %v31
  %v88 = vunpack.c.l.b16 %v32
  %v89 = vunpack.c.l.b16 %v33
  %v90 = vunpack.c.l.b16 %v34
  %v91 = vunpack.c.l.b16 %v35
  %v92 = vpack.c.b16 %v85, %v84
  %v93 = vpack.c.b16 %v87, %v86
  %v94 = vpack.c.b16 %v89, %v88
  %v95 = vpack.c.b16 %v91, %v90
  %vm100 = vcmask 523264
  %v102 = vsel %vm100, %v69, 0
  %v105 = vsel %vm100, %v70, 0
  %v108 = vsel %vm100, %v71, 0
  %v111 = vsel %vm100, %v72, 0
  %v114 = vsel %vm100, %v73, 0
  %v117 = vsel %vm100, %v74, 0
  %v120 = vsel %vm100, %v75, 0
  %122 = vmatprep.subr.bf16.mxu0 0
  %123 = vmatpush1.bf16.msra.mxu0 %v92
  %124 = vmatprep.subr.bf16.mxu0 0
  %125 = vmatpush1.bf16.msra.mxu0 %v93
  %126 = vmatprep.subr.bf16.mxu0 0
  %127 = vmatpush1.bf16.msra.mxu0 %v94
  %128 = vmatprep.subr.bf16.mxu0 0
  %129 = vmatpush1.bf16.msra.mxu0 %v95
  %130 = vmatprep.subr.bf16.mxu0 0
  %131 = vmatpush1.bf16.msra.mxu0 0
  %132 = vmatprep.subr.bf16.mxu0 0
  %133 = vmatpush1.bf16.msra.mxu0 0
  %134 = vmatprep.subr.bf16.mxu0 0
  %135 = vmatpush1.bf16.msra.mxu0 0
  %136 = vmatprep.subr.bf16.mxu0 0
  %137 = vmatpush1.bf16.msra.mxu0 0
  %138 = vmatprep.subr.bf16.mxu0 0
  %139 = vmatpush1.bf16.msra.mxu0 0
  %140 = vmatprep.subr.bf16.mxu0 0
  %141 = vmatpush1.bf16.msra.mxu0 0
  %142 = vmatprep.subr.bf16.mxu0 0
  %143 = vmatpush1.bf16.msra.mxu0 0
  %144 = vmatprep.subr.bf16.mxu0 0
  %145 = vmatpush1.bf16.msra.mxu0 0
  %146 = vmatprep.subr.bf16.mxu0 0
  %147 = vmatpush1.bf16.msra.mxu0 0
  %148 = vmatprep.subr.bf16.mxu0 0
  %149 = vmatpush1.bf16.msra.mxu0 0
  %150 = vmatprep.subr.bf16.mxu0 0
  %151 = vmatpush1.bf16.msra.mxu0 0
  %152 = vmatprep.subr.bf16.mxu0 0
  %153 = vmatpush1.bf16.msra.mxu0 0
  %154 = vmatprep.mubr.bf16.mxu0 0
  %155 = vmatmul.mubr.bf16.gmra.mrb[0].mxu0 %v102
  %v156 = vpop.f32.mrb[0].mxu0
  %v157 = vadd.f32 %v41, %v156
  %v158 = vpop.f32.mrb[0].mxu0
  %v159 = vpop.f32.mrb[0].mxu0
  %v160 = vadd.f32 %v41, %v159
  %v161 = vpop.f32.mrb[0].mxu0
  %162 = vmatprep.mubr.bf16.mxu0 0
  %163 = vmatmul.mubr.bf16.gmra.mrb[0].mxu0 %v105
  %v164 = vpop.f32.mrb[0].mxu0
  %v165 = vadd.f32 %v41, %v164
  %v166 = vpop.f32.mrb[0].mxu0
  %v167 = vpop.f32.mrb[0].mxu0
  %v168 = vadd.f32 %v41, %v167
  %v169 = vpop.f32.mrb[0].mxu0
  %170 = vmatprep.mubr.bf16.mxu0 0
  %171 = vmatmul.mubr.bf16.gmra.mrb[0].mxu0 %v108
  %v172 = vpop.f32.mrb[0].mxu0
  %v173 = vadd.f32 %v41, %v172
  %v174 = vpop.f32.mrb[0].mxu0
  %v175 = vpop.f32.mrb[0].mxu0
  %v176 = vadd.f32 %v41, %v175
  %v177 = vpop.f32.mrb[0].mxu0
  %178 = vmatprep.mubr.bf16.mxu0 0
  %179 = vmatmul.mubr.bf16.gmra.mrb[0].mxu0 %v111
  %v180 = vpop.f32.mrb[0].mxu0
  %v181 = vadd.f32 %v41, %v180
  %v182 = vpop.f32.mrb[0].mxu0
  %v183 = vpop.f32.mrb[0].mxu0
  %v184 = vadd.f32 %v41, %v183
  %v185 = vpop.f32.mrb[0].mxu0
  %186 = vmatprep.mubr.bf16.mxu0 0
  %187 = vmatmul.mubr.bf16.gmra.mrb[0].mxu0 %v114
  %v188 = vpop.f32.mrb[0].mxu0
  %v189 = vadd.f32 %v41, %v188
  %v190 = vpop.f32.mrb[0].mxu0
  %v191 = vpop.f32.mrb[0].mxu0
  %v192 = vadd.f32 %v41, %v191
  %v193 = vpop.f32.mrb[0].mxu0
  %194 = vmatprep.mubr.bf16.mxu0 0
  %195 = vmatmul.mubr.bf16.gmra.mrb[0].mxu0 %v117
  %v196 = vpop.f32.mrb[0].mxu0
  %v197 = vadd.f32 %v41, %v196
  %v198 = vpop.f32.mrb[0].mxu0
  %v199 = vpop.f32.mrb[0].mxu0
  %v200 = vadd.f32 %v41, %v199
  %v201 = vpop.f32.mrb[0].mxu0
  %202 = vmatprep.mubr.bf16.mxu0 0
  %203 = vmatmul.mubr.bf16.gmra.mrb[0].mxu0 %v120
  %v204 = vpop.f32.mrb[0].mxu0
  %v205 = vadd.f32 %v41, %v204
  %v206 = vpop.f32.mrb[0].mxu0
  %v207 = vpop.f32.mrb[0].mxu0
  %v208 = vpop.f32.mrb[0].mxu0
  %209 = vdwg.mxu0
  %v210 = vmax.f32 %v157, 0.0
  %v211 = vmax.f32 %v160, 0.0
  %v212 = vmax.f32 %v165, 0.0
  %v213 = vmax.f32 %v168, 0.0
  %v214 = vmax.f32 %v173, 0.0
  %v215 = vmax.f32 %v176, 0.0
  %v216 = vmax.f32 %v181, 0.0
  %v217 = vmax.f32 %v184, 0.0
  %v218 = vmax.f32 %v189, 0.0
  %v219 = vmax.f32 %v192, 0.0
  %v220 = vmax.f32 %v197, 0.0
  %v221 = vmax.f32 %v200, 0.0
  %v222 = vmax.f32 %v205, 0.0
  %v223 = vpack.c.bf16 %v211, %v210
  %v224 = vpack.c.bf16 %v213, %v212
  %v225 = vpack.c.bf16 %v215, %v214
  %v226 = vpack.c.bf16 %v217, %v216
  %v227 = vpack.c.bf16 %v219, %v218
  %v228 = vpack.c.bf16 %v221, %v220
  %v229 = vpack.c.bf16 %v222, %v222
  %v237 = vunpack.c.l.b16 %v223
  %v238 = vunpack.c.h.b16 %v223
  %v239 = vunpack.c.l.b16 %v224
  %v240 = vunpack.c.h.b16 %v224
  %v241 = vunpack.c.l.b16 %v225
  %v242 = vunpack.c.h.b16 %v225
  %v243 = vunpack.c.l.b16 %v226
  %v244 = vunpack.c.h.b16 %v226
  %v245 = vunpack.c.l.b16 %v227
  %v246 = vunpack.c.h.b16 %v227
  %v247 = vunpack.c.l.b16 %v228
  %v248 = vunpack.c.h.b16 %v228
  %v249 = vunpack.c.l.b16 %v229
  %v250 = vpack.c.b16 %v237, %v237
  %v251 = vpack.c.b16 %v238, %v238
  %v252 = vpack.c.b16 %v239, %v239
  %v253 = vpack.c.b16 %v240, %v240
  %v254 = vpack.c.b16 %v241, %v241
  %v255 = vpack.c.b16 %v242, %v242
  %v256 = vpack.c.b16 %v243, %v243
  %v257 = vpack.c.b16 %v244, %v244
  %v258 = vpack.c.b16 %v245, %v245
  %v259 = vpack.c.b16 %v246, %v246
  %v260 = vpack.c.b16 %v247, %v247
  %v261 = vpack.c.b16 %v248, %v248
  %v262 = vpack.c.b16 %v249, %v249
  %276 = vst [vmem:[%s3] sm:$0xf] %v250
  %277 = vst [vmem:[%s3 + $0x4] sm:$0xf] %v251
  %278 = vst [vmem:[%s3 + $0x8] sm:$0xf] %v252
  %279 = vst [vmem:[%s3 + $0xc] sm:$0xf] %v253
  %280 = vst [vmem:[%s3 + $0x10] sm:$0xf] %v254
  %281 = vst [vmem:[%s3 + $0x14] sm:$0xf] %v255
  %282 = vst [vmem:[%s3 + $0x18] sm:$0xf] %v256
  %283 = vst [vmem:[%s3 + $0x1c] sm:$0xf] %v257
  %284 = vst [vmem:[%s3 + $0x20] sm:$0xf] %v258
  %285 = vst [vmem:[%s3 + $0x24] sm:$0xf] %v259
  %286 = vst [vmem:[%s3 + $0x28] sm:$0xf] %v260
  %287 = vst [vmem:[%s3 + $0x2c] sm:$0xf] %v261
  %288 = vst [vmem:[%s3 + $0x30] sm:$0x1] %v262
  // Predicated region
  $region14: #{autoencoder_forward.6} parent=0 // pred_check
    _
  $region15: #{autoencoder_forward.6} parent=0 // pred_check_branch
    %290 = sbr.rel (0) target = $region17
  $region16: #{autoencoder_forward.6} parent=0 // pred_region
    _
  $region17: #{autoencoder_forward.6} parent=0 // pred_fallthru
    _
  // Predicated region
  $region18: #{autoencoder_forward.6} parent=0 // pred_check
    _
  $region19: #{autoencoder_forward.6} parent=0 // pred_check_branch
    %292 = sbr.rel (0) target = $region21
  $region20: #{autoencoder_forward.6} parent=0 // pred_region
    _
  $region21: #{autoencoder_forward.6} parent=0 // pred_fallthru
    _

// kernel: autoencoder_forward.7
$region0: #{autoencoder_forward.7}
  #allocation0 [shape = 'u32[]', space=smem, size = 0x4, offset = 0x4, fixed_abs, tag = 'smem constant byte address 0x4 - core index']
  #allocation1 [shape = 'u32[144,128]{1,0:T(1,128)}', space=vmem, size = 0x12000, scoped, tag = 'internal scratch']
  %s0 = inlined_call_operand.vmem [shape: bf16[2,392], index: 0, kind: input, shape index: {}]
  %s1 = inlined_call_operand.vmem [shape: bf16[392,128], index: 1, kind: input, shape index: {}]
  %s2 = inlined_call_operand.vmem [shape: f32[1,128], index: 2, kind: input, shape index: {}]
  %s3 = inlined_call_operand.vmem [shape: bf16[128,392], index: 3, kind: input, shape index: {}]
  %s4 = inlined_call_operand.vmem [shape: f32[1,392], index: 4, kind: input, shape index: {}]
  %s5 = inlined_call_operand.vmem [shape: bf16[2,392], index: 5, kind: output, shape index: {}]
  %s6 = sld [smem:[#allocation0]]
  $region30: #{autoencoder_forward.7} parent=0
    _
  %s8 = ssub.s32 1, %s6
  %s9 = scalar_select 0, %s8, %s6
  // Predicated region
  $region2: #{autoencoder_forward.7} parent=0 // pred_check
    _
  $region3: #{autoencoder_forward.7} parent=0 // pred_check_branch
    %11 = sbr.rel (0) target = $region5
  $region4: #{autoencoder_forward.7} parent=0 // pred_region
    _
  $region5: #{autoencoder_forward.7} parent=0 // pred_fallthru
    _
  // Predicated region
  $region6: #{autoencoder_forward.7} parent=0 // pred_check
    _
  $region7: #{autoencoder_forward.7} parent=0 // pred_check_branch
    %13 = sbr.rel (0) target = $region9
  $region8: #{autoencoder_forward.7} parent=0 // pred_region
    _
  $region9: #{autoencoder_forward.7} parent=0 // pred_fallthru
    _
  // Predicated region
  $region10: #{autoencoder_forward.7} parent=0 // pred_check
    _
  $region11: #{autoencoder_forward.7} parent=0 // pred_check_branch
    %15 = sbr.rel (0) target = $region13
  $region12: #{autoencoder_forward.7} parent=0 // pred_region
    _
  $region13: #{autoencoder_forward.7} parent=0 // pred_fallthru
    _
  // Predicated region
  $region14: #{autoencoder_forward.7} parent=0 // pred_check
    _
  $region15: #{autoencoder_forward.7} parent=0 // pred_check_branch
    %17 = sbr.rel (0) target = $region17
  $region16: #{autoencoder_forward.7} parent=0 // pred_region
    _
  $region17: #{autoencoder_forward.7} parent=0 // pred_fallthru
    _
  // Predicated region
  $region18: #{autoencoder_forward.7} parent=0 // pred_check
    _
  $region19: #{autoencoder_forward.7} parent=0 // pred_check_branch
    %19 = sbr.rel (0) target = $region21
  $region20: #{autoencoder_forward.7} parent=0 // pred_region
    _
  $region21: #{autoencoder_forward.7} parent=0 // pred_fallthru
    _
  %v21 = vld [vmem:[%s0] sm:$0xf]
  %v22 = vld [vmem:[%s1] sm:$0xf]
  %v23 = vld [vmem:[%s1 + $0x4] sm:$0xf]
  %v24 = vld [vmem:[%s1 + $0x8] sm:$0xf]
  %v25 = vld [vmem:[%s1 + $0xc] sm:$0xf]
  %v26 = vld [vmem:[%s1 + $0x10] sm:$0xf]
  %v27 = vld [vmem:[%s1 + $0x14] sm:$0xf]
  %v28 = vld [vmem:[%s1 + $0x18] sm:$0xf]
  %v29 = vld [vmem:[%s1 + $0x1c] sm:$0xf]
  %v30 = vld [vmem:[%s1 + $0x20] sm:$0xf]
  %v31 = vld [vmem:[%s1 + $0x24] sm:$0xf]
  %v32 = vld [vmem:[%s1 + $0x28] sm:$0xf]
  %v33 = vld [vmem:[%s1 + $0x2c] sm:$0xf]
  %v34 = vld [vmem:[%s1 + $0x30] sm:$0xf]
  %v35 = vld [vmem:[%s1 + $0x34] sm:$0xf]
  %v36 = vld [vmem:[%s1 + $0x38] sm:$0xf]
  %v37 = vld [vmem:[%s1 + $0x3c] sm:$0xf]
  %v38 = vld [vmem:[%s1 + $0x40] sm:$0xf]
  %v39 = vld [vmem:[%s1 + $0x44] sm:$0xf]
  %v40 = vld [vmem:[%s1 + $0x48] sm:$0xf]
  %v41 = vld [vmem:[%s1 + $0x4c] sm:$0xf]
  %v42 = vld [vmem:[%s1 + $0x50] sm:$0xf]
  %v43 = vld [vmem:[%s1 + $0x54] sm:$0xf]
  %v44 = vld [vmem:[%s1 + $0x58] sm:$0xf]
  %v45 = vld [vmem:[%s1 + $0x5c] sm:$0xf]
  %v46 = vld [vmem:[%s1 + $0x60] sm:$0xf]
  %v47 = vld [vmem:[%s1 + $0x64] sm:$0xf]
  %v48 = vld [vmem:[%s1 + $0x68] sm:$0xf]
  %v49 = vld [vmem:[%s1 + $0x6c] sm:$0xf]
  %v50 = vld [vmem:[%s1 + $0x70] sm:$0xf]
  %v51 = vld [vmem:[%s1 + $0x74] sm:$0xf]
  %v52 = vld [vmem:[%s1 + $0x78] sm:$0xf]
  %v53 = vld [vmem:[%s1 + $0x7c] sm:$0xf]
  %v54 = vld [vmem:[%s1 + $0x80] sm:$0xf]
  %v55 = vld [vmem:[%s1 + $0x84] sm:$0xf]
  %v56 = vld [vmem:[%s1 + $0x88] sm:$0xf]
  %v57 = vld [vmem:[%s1 + $0x8c] sm:$0xf]
  %v58 = vld [vmem:[%s1 + $0x90] sm:$0xf]
  %v59 = vld [vmem:[%s1 + $0x94] sm:$0xf]
  %v60 = vld [vmem:[%s1 + $0x98] sm:$0xf]
  %v61 = vld [vmem:[%s1 + $0x9c] sm:$0xf]
  %v62 = vld [vmem:[%s1 + $0xa0] sm:$0xf]
  %v63 = vld [vmem:[%s1 + $0xa4] sm:$0xf]
  %v64 = vld [vmem:[%s1 + $0xa8] sm:$0xf]
  %v65 = vld [vmem:[%s1 + $0xac] sm:$0xf]
  %v66 = vld [vmem:[%s1 + $0xb0] sm:$0xf]
  %v67 = vld [vmem:[%s1 + $0xb4] sm:$0xf]
  %v68 = vld [vmem:[%s1 + $0xb8] sm:$0xf]
  %v69 = vld [vmem:[%s1 + $0xbc] sm:$0xf]
  %v70 = vld [vmem:[%s1 + $0xc0] sm:$0xf]
  %v71 = vld [vmem:[%s2] sm:$0x1]
  %v73 = vlaneseq
  %v74 = vshrl.u32 %v73, 7
  %v75 = vsub.s32 0, %v74
  %v76 = vrot.slane %v71, %v75
  %v80 = vunpack.c.l.s4 1966171168
  %v81 = vunpack.c.0.s8 %v80
  %v82 = vlaneseq
  %v83 = vshrl.u32 %v82, 7
  %v84 = vsub.s32 %v81, %v83
  %v85 = vrot.slane %v21, %v84
  %v86 = vcombine.high %v85, %v85
  %v88 = vunpack.c.l.s4 1966171168
  %v89 = vunpack.c.0.s8 %v88
  %v90 = vlaneseq
  %v91 = vshrl.u32 %v90, 7
  %v92 = vsub.s32 %v89, %v91
  %v93 = vrot.slane %v85, %v92
  %v95 = vunpack.c.l.s4 1966171168
  %v96 = vunpack.c.0.s8 %v95
  %v97 = vlaneseq
  %v98 = vshrl.u32 %v97, 7
  %v99 = vsub.s32 %v96, %v98
  %v100 = vrot.slane %v86, %v99
  %v101 = vcombine.high %v93, %v93
  %v102 = vcombine.high %v100, %v100
  %v155 = vunpack.c.l.b16 %v22
  %v156 = vunpack.c.l.b16 %v23
  %v157 = vunpack.c.l.b16 %v24
  %v158 = vunpack.c.l.b16 %v25
  %v159 = vunpack.c.l.b16 %v26
  %v160 = vunpack.c.l.b16 %v27
  %v161 = vunpack.c.l.b16 %v28
  %v162 = vunpack.c.l.b16 %v29
  %v163 = vunpack.c.l.b16 %v30
  %v164 = vunpack.c.l.b16 %v31
  %v165 = vunpack.c.l.b16 %v32
  %v166 = vunpack.c.l.b16 %v33
  %v167 = vunpack.c.l.b16 %v34
  %v168 = vunpack.c.l.b16 %v35
  %v169 = vunpack.c.l.b16 %v36
  %v170 = vunpack.c.l.b16 %v37
  %v171 = vunpack.c.l.b16 %v38
  %v172 = vunpack.c.l.b16 %v39
  %v173 = vunpack.c.l.b16 %v40
  %v174 = vunpack.c.l.b16 %v41
  %v175 = vunpack.c.l.b16 %v42
  %v176 = vunpack.c.l.b16 %v43
  %v177 = vunpack.c.l.b16 %v44
  %v178 = vunpack.c.l.b16 %v45
  %v179 = vunpack.c.l.b16 %v46
  %v180 = vunpack.c.l.b16 %v47
  %v181 = vunpack.c.l.b16 %v48
  %v182 = vunpack.c.l.b16 %v49
  %v183 = vunpack.c.l.b16 %v50
  %v184 = vunpack.c.l.b16 %v51
  %v185 = vunpack.c.l.b16 %v52
  %v186 = vunpack.c.l.b16 %v53
  %v187 = vunpack.c.l.b16 %v54
  %v188 = vunpack.c.l.b16 %v55
  %v189 = vunpack.c.l.b16 %v56
  %v190 = vunpack.c.l.b16 %v57
  %v191 = vunpack.c.l.b16 %v58
  %v192 = vunpack.c.l.b16 %v59
  %v193 = vunpack.c.l.b16 %v60
  %v194 = vunpack.c.l.b16 %v61
  %v195 = vunpack.c.l.b16 %v62
  %v196 = vunpack.c.l.b16 %v63
  %v197 = vunpack.c.l.b16 %v64
  %v198 = vunpack.c.l.b16 %v65
  %v199 = vunpack.c.l.b16 %v66
  %v200 = vunpack.c.l.b16 %v67
  %v201 = vunpack.c.l.b16 %v68
  %v202 = vunpack.c.l.b16 %v69
  %v203 = vunpack.c.l.b16 %v70
  %v204 = vpack.c.b16 %v156, %v155
  %v205 = vpack.c.b16 %v158, %v157
  %v206 = vpack.c.b16 %v160, %v159
  %v207 = vpack.c.b16 %v162, %v161
  %v208 = vpack.c.b16 %v164, %v163
  %v209 = vpack.c.b16 %v166, %v165
  %v210 = vpack.c.b16 %v168, %v167
  %v211 = vpack.c.b16 %v170, %v169
  %v212 = vpack.c.b16 %v172, %v171
  %v213 = vpack.c.b16 %v174, %v173
  %v214 = vpack.c.b16 %v176, %v175
  %v215 = vpack.c.b16 %v178, %v177
  %v216 = vpack.c.b16 %v180, %v179
  %v217 = vpack.c.b16 %v182, %v181
  %v218 = vpack.c.b16 %v184, %v183
  %v219 = vpack.c.b16 %v186, %v185
  %v220 = vpack.c.b16 %v188, %v187
  %v221 = vpack.c.b16 %v190, %v189
  %v222 = vpack.c.b16 %v192, %v191
  %v223 = vpack.c.b16 %v194, %v193
  %v224 = vpack.c.b16 %v196, %v195
  %v225 = vpack.c.b16 %v198, %v197
  %v226 = vpack.c.b16 %v200, %v199
  %v227 = vpack.c.b16 %v202, %v201
  %v228 = vpack.c.b16 %v203, %v203
  %vm253 = vcmask 64512
  %v255 = vsel %vm253, %v102, 0
  %vm257 = vcmask 1043456
  %v259 = vsel %vm257, %v228, 0
  %261 = vmatprep.subr.bf16.mxu0 0
  %262 = vmatpush1.bf16.msra.mxu0 %v204
  %263 = vmatprep.subr.bf16.mxu0 0
  %264 = vmatpush1.bf16.msra.mxu0 %v205
  %265 = vmatprep.subr.bf16.mxu0 0
  %266 = vmatpush1.bf16.msra.mxu0 %v206
  %267 = vmatprep.subr.bf16.mxu0 0
  %268 = vmatpush1.bf16.msra.mxu0 %v207
  %269 = vmatprep.subr.bf16.mxu0 0
  %270 = vmatpush1.bf16.msra.mxu0 %v208
  %271 = vmatprep.subr.bf16.mxu0 0
  %272 = vmatpush1.bf16.msra.mxu0 %v209
  %273 = vmatprep.subr.bf16.mxu0 0
  %274 = vmatpush1.bf16.msra.mxu0 %v210
  %275 = vmatprep.subr.bf16.mxu0 0
  %276 = vmatpush1.bf16.msra.mxu0 %v211
  %277 = vmatprep.subr.bf16.mxu0 0
  %278 = vmatpush1.bf16.msra.mxu0 %v212
  %279 = vmatprep.subr.bf16.mxu0 0
  %280 = vmatpush1.bf16.msra.mxu0 %v213
  %281 = vmatprep.subr.bf16.mxu0 0
  %282 = vmatpush1.bf16.msra.mxu0 %v214
  %283 = vmatprep.subr.bf16.mxu0 0
  %284 = vmatpush1.bf16.msra.mxu0 %v215
  %285 = vmatprep.subr.bf16.mxu0 0
  %286 = vmatpush1.bf16.msra.mxu0 %v216
  %287 = vmatprep.subr.bf16.mxu0 0
  %288 = vmatpush1.bf16.msra.mxu0 %v217
  %289 = vmatprep.subr.bf16.mxu0 0
  %290 = vmatpush1.bf16.msra.mxu0 %v218
  %291 = vmatprep.subr.bf16.mxu0 0
  %292 = vmatpush1.bf16.msra.mxu0 %v219
  %293 = vmatprep.mubr.bf16.mxu0 %v100
  %294 = vmatmul.mubr.bf16.gmra.mrb[0].mxu0 %v93
  %v295 = vpop.f32.mrb[0].mxu0
  %v296 = vadd.f32 %v76, %v295
  %v297 = vpop.f32.mrb[0].mxu0
  %v298 = vpop.f32.mrb[0].mxu0
  %v299 = vpop.f32.mrb[0].mxu0
  %300 = vdwg.mxu0
  %301 = vmatprep.subr.bf16.mxu0 0
  %302 = vmatpush1.bf16.msra.mxu0 %v220
  %303 = vmatprep.subr.bf16.mxu0 0
  %304 = vmatpush1.bf16.msra.mxu0 %v221
  %305 = vmatprep.subr.bf16.mxu0 0
  %306 = vmatpush1.bf16.msra.mxu0 %v222
  %307 = vmatprep.subr.bf16.mxu0 0
  %308 = vmatpush1.bf16.msra.mxu0 %v223
  %309 = vmatprep.subr.bf16.mxu0 0
  %310 = vmatpush1.bf16.msra.mxu0 %v224
  %311 = vmatprep.subr.bf16.mxu0 0
  %312 = vmatpush1.bf16.msra.mxu0 %v225
  %313 = vmatprep.subr.bf16.mxu0 0
  %314 = vmatpush1.bf16.msra.mxu0 %v226
  %315 = vmatprep.subr.bf16.mxu0 0
  %316 = vmatpush1.bf16.msra.mxu0 %v227
  %317 = vmatprep.subr.bf16.mxu0 0
  %318 = vmatpush1.bf16.msra.mxu0 %v259
  %319 = vmatprep.subr.bf16.mxu0 0
  %320 = vmatpush1.bf16.msra.mxu0 0
  %321 = vmatprep.subr.bf16.mxu0 0
  %322 = vmatpush1.bf16.msra.mxu0 0
  %323 = vmatprep.subr.bf16.mxu0 0
  %324 = vmatpush1.bf16.msra.mxu0 0
  %325 = vmatprep.subr.bf16.mxu0 0
  %326 = vmatpush1.bf16.msra.mxu0 0
  %327 = vmatprep.subr.bf16.mxu0 0
  %328 = vmatpush1.bf16.msra.mxu0 0
  %329 = vmatprep.subr.bf16.mxu0 0
  %330 = vmatpush1.bf16.msra.mxu0 0
  %331 = vmatprep.subr.bf16.mxu0 0
  %332 = vmatpush1.bf16.msra.mxu0 0
  %333 = vmatprep.mubr.bf16.mxu0 %v255
  %334 = vmatmul.mubr.bf16.gmra.mrb[0].mxu0 %v101
  %v335 = vpop.f32.mrb[0].mxu0
  %v336 = vadd.f32 %v296, %v335
  %v337 = vpop.f32.mrb[0].mxu0
  %v338 = vpop.f32.mrb[0].mxu0
  %v339 = vpop.f32.mrb[0].mxu0
  %340 = vdwg.mxu0
  %v341 = vpack.c.bf16 %v336, %v336
  %v342 = vld [vmem:[%s3] sm:$0xff]
  %v343 = vld [vmem:[%s3 + $0x8] sm:$0xff]
  %v344 = vld [vmem:[%s3 + $0x10] sm:$0xff]
  %v345 = vld [vmem:[%s3 + $0x18] sm:$0xff]
  %v346 = vld [vmem:[%s3 + $0x20] sm:$0xff]
  %v347 = vld [vmem:[%s3 + $0x28] sm:$0xff]
  %v348 = vld [vmem:[%s3 + $0x30] sm:$0xff]
  %v349 = vld [vmem:[%s3 + $0x38] sm:$0xff]
  %v350 = vld [vmem:[%s3 + $0x40] sm:$0xff]
  %v351 = vld [vmem:[%s3 + $0x48] sm:$0xff]
  %v352 = vld [vmem:[%s3 + $0x50] sm:$0xff]
  %v353 = vld [vmem:[%s3 + $0x58] sm:$0xff]
  %v354 = vld [vmem:[%s3 + $0x60] sm:$0xff]
  %v355 = vld [vmem:[%s3 + $0x68] sm:$0xff]
  %v356 = vld [vmem:[%s3 + $0x70] sm:$0xff]
  %v357 = vld [vmem:[%s3 + $0x78] sm:$0xff]
  %v358 = vld [vmem:[%s3 + $0x80] sm:$0xff]
  %v359 = vld [vmem:[%s3 + $0x88] sm:$0xff]
  %v360 = vld [vmem:[%s3 + $0x90] sm:$0xff]
  %v361 = vld [vmem:[%s3 + $0x98] sm:$0xff]
  %v362 = vld [vmem:[%s3 + $0xa0] sm:$0xff]
  %v363 = vld [vmem:[%s3 + $0xa8] sm:$0xff]
  %v364 = vld [vmem:[%s3 + $0xb0] sm:$0xff]
  %v365 = vld [vmem:[%s3 + $0xb8] sm:$0xff]
  %v366 = vld [vmem:[%s3 + $0xc0] sm:$0xff]
  %v367 = vld [vmem:[%s3 + $0xc8] sm:$0xff]
  %v368 = vld [vmem:[%s3 + $0xd0] sm:$0xff]
  %v369 = vld [vmem:[%s3 + $0xd8] sm:$0xff]
  %v370 = vld [vmem:[%s3 + $0xe0] sm:$0xff]
  %v371 = vld [vmem:[%s3 + $0xe8] sm:$0xff]
  %v372 = vld [vmem:[%s3 + $0xf0] sm:$0xff]
  %v373 = vld [vmem:[%s3 + $0xf8] sm:$0xff]
  %v374 = vld [vmem:[%s4] sm:$0xf]
  %v376 = vlaneseq
  %v377 = vshrl.u32 %v376, 7
  %v378 = vsub.s32 0, %v377
  %v379 = vrot.slane %v374, %v378
  %v380 = vlaneseq
  %v381 = vshrl.u32 %v380, 7
  %v382 = vsub.s32 1, %v381
  %v383 = vrot.slane %v374, %v382
  %v384 = vlaneseq
  %v385 = vshrl.u32 %v384, 7
  %v386 = vsub.s32 2, %v385
  %v387 = vrot.slane %v374, %v386
  %v388 = vlaneseq
  %v389 = vshrl.u32 %v388, 7
  %v390 = vsub.s32 3, %v389
  %v391 = vrot.slane %v374, %v390
  %v428 = vunpack.c.l.b16 %v342
  %v429 = vunpack.c.h.b16 %v342
  %v430 = vunpack.c.l.b16 %v343
  %v431 = vunpack.c.h.b16 %v343
  %v432 = vunpack.c.l.b16 %v344
  %v433 = vunpack.c.h.b16 %v344
  %v434 = vunpack.c.l.b16 %v345
  %v435 = vunpack.c.h.b16 %v345
  %v436 = vunpack.c.l.b16 %v346
  %v437 = vunpack.c.h.b16 %v346
  %v438 = vunpack.c.l.b16 %v347
  %v439 = vunpack.c.h.b16 %v347
  %v440 = vunpack.c.l.b16 %v348
  %v441 = vunpack.c.h.b16 %v348
  %v442 = vunpack.c.l.b16 %v349
  %v443 = vunpack.c.h.b16 %v349
  %v444 = vunpack.c.l.b16 %v350
  %v445 = vunpack.c.h.b16 %v350
  %v446 = vunpack.c.l.b16 %v351
  %v447 = vunpack.c.h.b16 %v351
  %v448 = vunpack.c.l.b16 %v352
  %v449 = vunpack.c.h.b16 %v352
  %v450 = vunpack.c.l.b16 %v353
  %v451 = vunpack.c.h.b16 %v353
  %v452 = vunpack.c.l.b16 %v354
  %v453 = vunpack.c.h.b16 %v354
  %v454 = vunpack.c.l.b16 %v355
  %v455 = vunpack.c.h.b16 %v355
  %v456 = vunpack.c.l.b16 %v356
  %v457 = vunpack.c.h.b16 %v356
  %v458 = vunpack.c.l.b16 %v357
  %v459 = vunpack.c.h.b16 %v357
  %v460 = vunpack.c.l.b16 %v358
  %v461 = vunpack.c.h.b16 %v358
  %v462 = vunpack.c.l.b16 %v359
  %v463 = vunpack.c.h.b16 %v359
  %v464 = vunpack.c.l.b16 %v360
  %v465 = vunpack.c.h.b16 %v360
  %v466 = vunpack.c.l.b16 %v361
  %v467 = vunpack.c.h.b16 %v361
  %v468 = vunpack.c.l.b16 %v362
  %v469 = vunpack.c.h.b16 %v362
  %v470 = vunpack.c.l.b16 %v363
  %v471 = vunpack.c.h.b16 %v363
  %v472 = vunpack.c.l.b16 %v364
  %v473 = vunpack.c.h.b16 %v364
  %v474 = vunpack.c.l.b16 %v365
  %v475 = vunpack.c.h.b16 %v365
  %v476 = vunpack.c.l.b16 %v366
  %v477 = vunpack.c.h.b16 %v366
  %v478 = vunpack.c.l.b16 %v367
  %v479 = vunpack.c.h.b16 %v367
  %v480 = vunpack.c.l.b16 %v368
  %v481 = vunpack.c.h.b16 %v368
  %v482 = vunpack.c.l.b16 %v369
  %v483 = vunpack.c.h.b16 %v369
  %v484 = vunpack.c.l.b16 %v370
  %v485 = vunpack.c.h.b16 %v370
  %v486 = vunpack.c.l.b16 %v371
  %v487 = vunpack.c.h.b16 %v371
  %v488 = vunpack.c.l.b16 %v372
  %v489 = vunpack.c.h.b16 %v372
  %v490 = vunpack.c.l.b16 %v373
  %v491 = vunpack.c.h.b16 %v373
  %v492 = vpack.c.b16 %v432, %v428
  %v493 = vpack.c.b16 %v433, %v429
  %v494 = vpack.c.b16 %v434, %v430
  %v495 = vpack.c.b16 %v435, %v431
  %v496 = vpack.c.b16 %v440, %v436
  %v497 = vpack.c.b16 %v441, %v437
  %v498 = vpack.c.b16 %v442, %v438
  %v499 = vpack.c.b16 %v443, %v439
  %v500 = vpack.c.b16 %v448, %v444
  %v501 = vpack.c.b16 %v449, %v445
  %v502 = vpack.c.b16 %v450, %v446
  %v503 = vpack.c.b16 %v451, %v447
  %v504 = vpack.c.b16 %v456, %v452
  %v505 = vpack.c.b16 %v457, %v453
  %v506 = vpack.c.b16 %v458, %v454
  %v507 = vpack.c.b16 %v459, %v455
  %v508 = vpack.c.b16 %v464, %v460
  %v509 = vpack.c.b16 %v465, %v461
  %v510 = vpack.c.b16 %v466, %v462
  %v511 = vpack.c.b16 %v467, %v463
  %v512 = vpack.c.b16 %v472, %v468
  %v513 = vpack.c.b16 %v473, %v469
  %v514 = vpack.c.b16 %v474, %v470
  %v515 = vpack.c.b16 %v475, %v471
  %v516 = vpack.c.b16 %v480, %v476
  %v517 = vpack.c.b16 %v481, %v477
  %v518 = vpack.c.b16 %v482, %v478
  %v519 = vpack.c.b16 %v483, %v479
  %v520 = vpack.c.b16 %v488, %v484
  %v521 = vpack.c.b16 %v489, %v485
  %v522 = vpack.c.b16 %v490, %v486
  %v523 = vpack.c.b16 %v491, %v487
  %556 = vmatprep.subr.bf16.mxu0 %v493
  %557 = vmatpush1.bf16.msra.mxu0 %v492
  %558 = vmatprep.subr.bf16.mxu0 %v497
  %559 = vmatpush1.bf16.msra.mxu0 %v496
  %560 = vmatprep.subr.bf16.mxu0 %v501
  %561 = vmatpush1.bf16.msra.mxu0 %v500
  %562 = vmatprep.subr.bf16.mxu0 %v505
  %563 = vmatpush1.bf16.msra.mxu0 %v504
  %564 = vmatprep.subr.bf16.mxu0 %v509
  %565 = vmatpush1.bf16.msra.mxu0 %v508
  %566 = vmatprep.subr.bf16.mxu0 %v513
  %567 = vmatpush1.bf16.msra.mxu0 %v512
  %568 = vmatprep.subr.bf16.mxu0 %v517
  %569 = vmatpush1.bf16.msra.mxu0 %v516
  %570 = vmatprep.subr.bf16.mxu0 %v521
  %571 = vmatpush1.bf16.msra.mxu0 %v520
  %572 = vmatprep.subr.bf16.mxu0 0
  %573 = vmatpush1.bf16.msra.mxu0 0
  %574 = vmatprep.subr.bf16.mxu0 0
  %575 = vmatpush1.bf16.msra.mxu0 0
  %576 = vmatprep.subr.bf16.mxu0 0
  %577 = vmatpush1.bf16.msra.mxu0 0
  %578 = vmatprep.subr.bf16.mxu0 0
  %579 = vmatpush1.bf16.msra.mxu0 0
  %580 = vmatprep.subr.bf16.mxu0 0
  %581 = vmatpush1.bf16.msra.mxu0 0
  %582 = vmatprep.subr.bf16.mxu0 0
  %583 = vmatpush1.bf16.msra.mxu0 0
  %584 = vmatprep.subr.bf16.mxu0 0
  %585 = vmatpush1.bf16.msra.mxu0 0
  %586 = vmatprep.subr.bf16.mxu0 0
  %587 = vmatpush1.bf16.msra.mxu0 0
  %588 = vmatprep.mubr.bf16.mxu0 0
  %589 = vmatmul.mubr.bf16.gmra.mrb[0].mxu0 %v341
  %v590 = vpop.f32.mrb[0].mxu0
  %v591 = vadd.f32 %v379, %v590
  %v592 = vpop.f32.mrb[0].mxu0
  %v593 = vadd.f32 %v383, %v592
  %v594 = vpop.f32.mrb[0].mxu0
  %v595 = vpop.f32.mrb[0].mxu0
  %596 = vdwg.mxu0
  %597 = vmatprep.subr.bf16.mxu0 %v495
  %598 = vmatpush1.bf16.msra.mxu0 %v494
  %599 = vmatprep.subr.bf16.mxu0 %v499
  %600 = vmatpush1.bf16.msra.mxu0 %v498
  %601 = vmatprep.subr.bf16.mxu0 %v503
  %602 = vmatpush1.bf16.msra.mxu0 %v502
  %603 = vmatprep.subr.bf16.mxu0 %v507
  %604 = vmatpush1.bf16.msra.mxu0 %v506
  %605 = vmatprep.subr.bf16.mxu0 %v511
  %606 = vmatpush1.bf16.msra.mxu0 %v510
  %607 = vmatprep.subr.bf16.mxu0 %v515
  %608 = vmatpush1.bf16.msra.mxu0 %v514
  %609 = vmatprep.subr.bf16.mxu0 %v519
  %610 = vmatpush1.bf16.msra.mxu0 %v518
  %611 = vmatprep.subr.bf16.mxu0 %v523
  %612 = vmatpush1.bf16.msra.mxu0 %v522
  %613 = vmatprep.subr.bf16.mxu0 0
  %614 = vmatpush1.bf16.msra.mxu0 0
  %615 = vmatprep.subr.bf16.mxu0 0
  %616 = vmatpush1.bf16.msra.mxu0 0
  %617 = vmatprep.subr.bf16.mxu0 0
  %618 = vmatpush1.bf16.msra.mxu0 0
  %619 = vmatprep.subr.bf16.mxu0 0
  %620 = vmatpush1.bf16.msra.mxu0 0
  %621 = vmatprep.subr.bf16.mxu0 0
  %622 = vmatpush1.bf16.msra.mxu0 0
  %623 = vmatprep.subr.bf16.mxu0 0
  %624 = vmatpush1.bf16.msra.mxu0 0
  %625 = vmatprep.subr.bf16.mxu0 0
  %626 = vmatpush1.bf16.msra.mxu0 0
  %627 = vmatprep.subr.bf16.mxu0 0
  %628 = vmatpush1.bf16.msra.mxu0 0
  %629 = vmatprep.mubr.bf16.mxu0 0
  %630 = vmatmul.mubr.bf16.gmra.mrb[0].mxu0 %v341
  %v631 = vpop.f32.mrb[0].mxu0
  %v632 = vadd.f32 %v387, %v631
  %v633 = vpop.f32.mrb[0].mxu0
  %v634 = vadd.f32 %v391, %v633
  %v635 = vpop.f32.mrb[0].mxu0
  %v636 = vpop.f32.mrb[0].mxu0
  %637 = vdwg.mxu0
  %v638 = vpack.c.bf16 %v591, %v591
  %v639 = vpack.c.bf16 %v593, %v593
  %v640 = vpack.c.bf16 %v632, %v632
  %v641 = vpack.c.bf16 %v634, %v634
  %v646 = vcombine.low %v638, %v639
  %v647 = vcombine.low %v640, %v641
  %v649 = vunpack.c.l.s4 1966171168
  %v650 = vunpack.c.0.s8 %v649
  %v651 = vlaneseq
  %v652 = vshrl.u32 %v651, 7
  %v653 = vsub.s32 %v650, %v652
  %v654 = vrot.slane %v646, %v653
  %v656 = vunpack.c.l.s4 1966171168
  %v657 = vunpack.c.0.s8 %v656
  %v658 = vlaneseq
  %v659 = vshrl.u32 %v658, 7
  %v660 = vsub.s32 %v657, %v659
  %v661 = vrot.slane %v647, %v660
  %v662 = vcombine.low %v654, %v661
  %v664 = vunpack.c.l.s4 1966171168
  %v665 = vunpack.c.0.s8 %v664
  %v666 = vlaneseq
  %v667 = vshrl.u32 %v666, 7
  %v668 = vsub.s32 %v665, %v667
  %v669 = vrot.slane %v662, %v668
  %vm671 = vcmask 1040384
  %vm672 = vcmask 1041409
  %vm673 = vmor %vm672, %vm671
  %vm674 = vcmask 1042434
  %vm675 = vmor %vm674, %vm673
  %vm676 = vcmask 60419
  %vm677 = vmor %vm676, %vm675
  %678 = vst.msk [vmem:[%s5] sm:$0xf] %vm677, %v669
  // Predicated region
  $region22: #{autoencoder_forward.7} parent=0 // pred_check
    _
  $region23: #{autoencoder_forward.7} parent=0 // pred_check_branch
    %680 = sbr.rel (0) target = $region25
  $region24: #{autoencoder_forward.7} parent=0 // pred_region
    _
  $region25: #{autoencoder_forward.7} parent=0 // pred_fallthru
    _
  // Predicated region
  $region26: #{autoencoder_forward.7} parent=0 // pred_check
    _
  $region27: #{autoencoder_forward.7} parent=0 // pred_check_branch
    %682 = sbr.rel (0) target = $region29
  $region28: #{autoencoder_forward.7} parent=0 // pred_region
    _
  $region29: #{autoencoder_forward.7} parent=0 // pred_fallthru
    _

// kernel: autoencoder_forward.8
$region0: #{autoencoder_forward.8}
  #allocation0 [shape = 'u32[]', space=smem, size = 0x4, offset = 0x4, fixed_abs, tag = 'smem constant byte address 0x4 - core index']
  #allocation1 [shape = 'u32[144,128]{1,0:T(1,128)}', space=vmem, size = 0x12000, scoped, tag = 'internal scratch']
  %s0 = inlined_call_operand.vmem [shape: bf16[392,128], index: 0, kind: input, shape index: {}]
  %s1 = inlined_call_operand.vmem [shape: bf16[128,128], index: 1, kind: input, shape index: {}]
  %s2 = inlined_call_operand.vmem [shape: f32[1,128], index: 2, kind: input, shape index: {}]
  %s3 = inlined_call_operand.vmem [shape: bf16[392,128], index: 3, kind: output, shape index: {}]
  %s4 = sld [smem:[#allocation0]]
  $region22: #{autoencoder_forward.8} parent=0
    _
  %s6 = ssub.s32 1, %s4
  %s7 = scalar_select 0, %s6, %s4
  // Predicated region
  $region2: #{autoencoder_forward.8} parent=0 // pred_check
    _
  $region3: #{autoencoder_forward.8} parent=0 // pred_check_branch
    %9 = sbr.rel (0) target = $region5
  $region4: #{autoencoder_forward.8} parent=0 // pred_region
    _
  $region5: #{autoencoder_forward.8} parent=0 // pred_fallthru
    _
  // Predicated region
  $region6: #{autoencoder_forward.8} parent=0 // pred_check
    _
  $region7: #{autoencoder_forward.8} parent=0 // pred_check_branch
    %11 = sbr.rel (0) target = $region9
  $region8: #{autoencoder_forward.8} parent=0 // pred_region
    _
  $region9: #{autoencoder_forward.8} parent=0 // pred_fallthru
    _
  // Predicated region
  $region10: #{autoencoder_forward.8} parent=0 // pred_check
    _
  $region11: #{autoencoder_forward.8} parent=0 // pred_check_branch
    %13 = sbr.rel (0) target = $region13
  $region12: #{autoencoder_forward.8} parent=0 // pred_region
    _
  $region13: #{autoencoder_forward.8} parent=0 // pred_fallthru
    _
  %v15 = vld [vmem:[%s0] sm:$0xf]
  %v16 = vld [vmem:[%s0 + $0x4] sm:$0xf]
  %v17 = vld [vmem:[%s0 + $0x8] sm:$0xf]
  %v18 = vld [vmem:[%s0 + $0xc] sm:$0xf]
  %v19 = vld [vmem:[%s0 + $0x10] sm:$0xf]
  %v20 = vld [vmem:[%s0 + $0x14] sm:$0xf]
  %v21 = vld [vmem:[%s0 + $0x18] sm:$0xf]
  %v22 = vld [vmem:[%s0 + $0x1c] sm:$0xf]
  %v23 = vld [vmem:[%s0 + $0x20] sm:$0xf]
  %v24 = vld [vmem:[%s0 + $0x24] sm:$0xf]
  %v25 = vld [vmem:[%s0 + $0x28] sm:$0xf]
  %v26 = vld [vmem:[%s0 + $0x2c] sm:$0xf]
  %v27 = vld [vmem:[%s0 + $0x30] sm:$0xf]
  %v28 = vld [vmem:[%s0 + $0x34] sm:$0xf]
  %v29 = vld [vmem:[%s0 + $0x38] sm:$0xf]
  %v30 = vld [vmem:[%s0 + $0x3c] sm:$0xf]
  %v31 = vld [vmem:[%s0 + $0x40] sm:$0xf]
  %v32 = vld [vmem:[%s0 + $0x44] sm:$0xf]
  %v33 = vld [vmem:[%s0 + $0x48] sm:$0xf]
  %v34 = vld [vmem:[%s0 + $0x4c] sm:$0xf]
  %v35 = vld [vmem:[%s0 + $0x50] sm:$0xf]
  %v36 = vld [vmem:[%s0 + $0x54] sm:$0xf]
  %v37 = vld [vmem:[%s0 + $0x58] sm:$0xf]
  %v38 = vld [vmem:[%s0 + $0x5c] sm:$0xf]
  %v39 = vld [vmem:[%s0 + $0x60] sm:$0xf]
  %v40 = vld [vmem:[%s0 + $0x64] sm:$0xf]
  %v41 = vld [vmem:[%s0 + $0x68] sm:$0xf]
  %v42 = vld [vmem:[%s0 + $0x6c] sm:$0xf]
  %v43 = vld [vmem:[%s0 + $0x70] sm:$0xf]
  %v44 = vld [vmem:[%s0 + $0x74] sm:$0xf]
  %v45 = vld [vmem:[%s0 + $0x78] sm:$0xf]
  %v46 = vld [vmem:[%s0 + $0x7c] sm:$0xf]
  %v47 = vld [vmem:[%s0 + $0x80] sm:$0xf]
  %v48 = vld [vmem:[%s0 + $0x84] sm:$0xf]
  %v49 = vld [vmem:[%s0 + $0x88] sm:$0xf]
  %v50 = vld [vmem:[%s0 + $0x8c] sm:$0xf]
  %v51 = vld [vmem:[%s0 + $0x90] sm:$0xf]
  %v52 = vld [vmem:[%s0 + $0x94] sm:$0xf]
  %v53 = vld [vmem:[%s0 + $0x98] sm:$0xf]
  %v54 = vld [vmem:[%s0 + $0x9c] sm:$0xf]
  %v55 = vld [vmem:[%s0 + $0xa0] sm:$0xf]
  %v56 = vld [vmem:[%s0 + $0xa4] sm:$0xf]
  %v57 = vld [vmem:[%s0 + $0xa8] sm:$0xf]
  %v58 = vld [vmem:[%s0 + $0xac] sm:$0xf]
  %v59 = vld [vmem:[%s0 + $0xb0] sm:$0xf]
  %v60 = vld [vmem:[%s0 + $0xb4] sm:$0xf]
  %v61 = vld [vmem:[%s0 + $0xb8] sm:$0xf]
  %v62 = vld [vmem:[%s0 + $0xbc] sm:$0xf]
  %v63 = vld [vmem:[%s0 + $0xc0] sm:$0xf]
  %v64 = vld [vmem:[%s1] sm:$0xf]
  %v65 = vld [vmem:[%s1 + $0x4] sm:$0xf]
  %v66 = vld [vmem:[%s1 + $0x8] sm:$0xf]
  %v67 = vld [vmem:[%s1 + $0xc] sm:$0xf]
  %v68 = vld [vmem:[%s1 + $0x10] sm:$0xf]
  %v69 = vld [vmem:[%s1 + $0x14] sm:$0xf]
  %v70 = vld [vmem:[%s1 + $0x18] sm:$0xf]
  %v71 = vld [vmem:[%s1 + $0x1c] sm:$0xf]
  %v72 = vld [vmem:[%s1 + $0x20] sm:$0xf]
  %v73 = vld [vmem:[%s1 + $0x24] sm:$0xf]
  %v74 = vld [vmem:[%s1 + $0x28] sm:$0xf]
  %v75 = vld [vmem:[%s1 + $0x2c] sm:$0xf]
  %v76 = vld [vmem:[%s1 + $0x30] sm:$0xf]
  %v77 = vld [vmem:[%s1 + $0x34] sm:$0xf]
  %v78 = vld [vmem:[%s1 + $0x38] sm:$0xf]
  %v79 = vld [vmem:[%s1 + $0x3c] sm:$0xf]
  %v80 = vld [vmem:[%s2] sm:$0x1]
  %v82 = vlaneseq
  %v83 = vshrl.u32 %v82, 7
  %v84 = vsub.s32 0, %v83
  %v85 = vrot.slane %v80, %v84
  %v136 = vunpack.c.l.b16 %v15
  %v137 = vunpack.c.l.b16 %v16
  %v138 = vunpack.c.l.b16 %v17
  %v139 = vunpack.c.l.b16 %v18
  %v140 = vunpack.c.l.b16 %v19
  %v141 = vunpack.c.l.b16 %v20
  %v142 = vunpack.c.l.b16 %v21
  %v143 = vunpack.c.l.b16 %v22
  %v144 = vunpack.c.l.b16 %v23
  %v145 = vunpack.c.l.b16 %v24
  %v146 = vunpack.c.l.b16 %v25
  %v147 = vunpack.c.l.b16 %v26
  %v148 = vunpack.c.l.b16 %v27
  %v149 = vunpack.c.l.b16 %v28
  %v150 = vunpack.c.l.b16 %v29
  %v151 = vunpack.c.l.b16 %v30
  %v152 = vunpack.c.l.b16 %v31
  %v153 = vunpack.c.l.b16 %v32
  %v154 = vunpack.c.l.b16 %v33
  %v155 = vunpack.c.l.b16 %v34
  %v156 = vunpack.c.l.b16 %v35
  %v157 = vunpack.c.l.b16 %v36
  %v158 = vunpack.c.l.b16 %v37
  %v159 = vunpack.c.l.b16 %v38
  %v160 = vunpack.c.l.b16 %v39
  %v161 = vunpack.c.l.b16 %v40
  %v162 = vunpack.c.l.b16 %v41
  %v163 = vunpack.c.l.b16 %v42
  %v164 = vunpack.c.l.b16 %v43
  %v165 = vunpack.c.l.b16 %v44
  %v166 = vunpack.c.l.b16 %v45
  %v167 = vunpack.c.l.b16 %v46
  %v168 = vunpack.c.l.b16 %v47
  %v169 = vunpack.c.l.b16 %v48
  %v170 = vunpack.c.l.b16 %v49
  %v171 = vunpack.c.l.b16 %v50
  %v172 = vunpack.c.l.b16 %v51
  %v173 = vunpack.c.l.b16 %v52
  %v174 = vunpack.c.l.b16 %v53
  %v175 = vunpack.c.l.b16 %v54
  %v176 = vunpack.c.l.b16 %v55
  %v177 = vunpack.c.l.b16 %v56
  %v178 = vunpack.c.l.b16 %v57
  %v179 = vunpack.c.l.b16 %v58
  %v180 = vunpack.c.l.b16 %v59
  %v181 = vunpack.c.l.b16 %v60
  %v182 = vunpack.c.l.b16 %v61
  %v183 = vunpack.c.l.b16 %v62
  %v184 = vunpack.c.l.b16 %v63
  %v185 = vpack.c.b16 %v137, %v136
  %v186 = vpack.c.b16 %v139, %v138
  %v187 = vpack.c.b16 %v141, %v140
  %v188 = vpack.c.b16 %v143, %v142
  %v189 = vpack.c.b16 %v145, %v144
  %v190 = vpack.c.b16 %v147, %v146
  %v191 = vpack.c.b16 %v149, %v148
  %v192 = vpack.c.b16 %v151, %v150
  %v193 = vpack.c.b16 %v153, %v152
  %v194 = vpack.c.b16 %v155, %v154
  %v195 = vpack.c.b16 %v157, %v156
  %v196 = vpack.c.b16 %v159, %v158
  %v197 = vpack.c.b16 %v161, %v160
  %v198 = vpack.c.b16 %v163, %v162
  %v199 = vpack.c.b16 %v165, %v164
  %v200 = vpack.c.b16 %v167, %v166
  %v201 = vpack.c.b16 %v169, %v168
  %v202 = vpack.c.b16 %v171, %v170
  %v203 = vpack.c.b16 %v173, %v172
  %v204 = vpack.c.b16 %v175, %v174
  %v205 = vpack.c.b16 %v177, %v176
  %v206 = vpack.c.b16 %v179, %v178
  %v207 = vpack.c.b16 %v181, %v180
  %v208 = vpack.c.b16 %v183, %v182
  %v209 = vpack.c.b16 %v184, %v184
  %v251 = vunpack.c.l.b16 %v64
  %v252 = vunpack.c.l.b16 %v65
  %v253 = vunpack.c.l.b16 %v66
  %v254 = vunpack.c.l.b16 %v67
  %v255 = vunpack.c.l.b16 %v68
  %v256 = vunpack.c.l.b16 %v69
  %v257 = vunpack.c.l.b16 %v70
  %v258 = vunpack.c.l.b16 %v71
  %v259 = vunpack.c.l.b16 %v72
  %v260 = vunpack.c.l.b16 %v73
  %v261 = vunpack.c.l.b16 %v74
  %v262 = vunpack.c.l.b16 %v75
  %v263 = vunpack.c.l.b16 %v76
  %v264 = vunpack.c.l.b16 %v77
  %v265 = vunpack.c.l.b16 %v78
  %v266 = vunpack.c.l.b16 %v79
  %v267 = vpack.c.b16 %v252, %v251
  %v268 = vpack.c.b16 %v254, %v253
  %v269 = vpack.c.b16 %v256, %v255
  %v270 = vpack.c.b16 %v258, %v257
  %v271 = vpack.c.b16 %v260, %v259
  %v272 = vpack.c.b16 %v262, %v261
  %v273 = vpack.c.b16 %v264, %v263
  %v274 = vpack.c.b16 %v266, %v265
  %283 = vmatprep.subr.bf16.mxu0 0
  %284 = vmatpush1.bf16.msra.mxu0 %v267
  %285 = vmatprep.subr.bf16.mxu0 0
  %286 = vmatpush1.bf16.msra.mxu0 %v268
  %287 = vmatprep.subr.bf16.mxu0 0
  %288 = vmatpush1.bf16.msra.mxu0 %v269
  %289 = vmatprep.subr.bf16.mxu0 0
  %290 = vmatpush1.bf16.msra.mxu0 %v270
  %291 = vmatprep.subr.bf16.mxu0 0
  %292 = vmatpush1.bf16.msra.mxu0 %v271
  %293 = vmatprep.subr.bf16.mxu0 0
  %294 = vmatpush1.bf16.msra.mxu0 %v272
  %295 = vmatprep.subr.bf16.mxu0 0
  %296 = vmatpush1.bf16.msra.mxu0 %v273
  %297 = vmatprep.subr.bf16.mxu0 0
  %298 = vmatpush1.bf16.msra.mxu0 %v274
  %299 = vmatprep.subr.bf16.mxu0 0
  %300 = vmatpush1.bf16.msra.mxu0 0
  %301 = vmatprep.subr.bf16.mxu0 0
  %302 = vmatpush1.bf16.msra.mxu0 0
  %303 = vmatprep.subr.bf16.mxu0 0
  %304 = vmatpush1.bf16.msra.mxu0 0
  %305 = vmatprep.subr.bf16.mxu0 0
  %306 = vmatpush1.bf16.msra.mxu0 0
  %307 = vmatprep.subr.bf16.mxu0 0
  %308 = vmatpush1.bf16.msra.mxu0 0
  %309 = vmatprep.subr.bf16.mxu0 0
  %310 = vmatpush1.bf16.msra.mxu0 0
  %311 = vmatprep.subr.bf16.mxu0 0
  %312 = vmatpush1.bf16.msra.mxu0 0
  %313 = vmatprep.subr.bf16.mxu0 0
  %314 = vmatpush1.bf16.msra.mxu0 0
  %315 = vmatprep.mubr.bf16.mxu0 0
  %316 = vmatmul.mubr.bf16.gmra.mrb[0].mxu0 %v185
  %v317 = vpop.f32.mrb[0].mxu0
  %v318 = vadd.f32 %v85, %v317
  %v319 = vpop.f32.mrb[0].mxu0
  %v320 = vpop.f32.mrb[0].mxu0
  %v321 = vadd.f32 %v85, %v320
  %v322 = vpop.f32.mrb[0].mxu0
  %323 = vmatprep.mubr.bf16.mxu0 0
  %324 = vmatmul.mubr.bf16.gmra.mrb[0].mxu0 %v186
  %v325 = vpop.f32.mrb[0].mxu0
  %v326 = vadd.f32 %v85, %v325
  %v327 = vpop.f32.mrb[0].mxu0
  %v328 = vpop.f32.mrb[0].mxu0
  %v329 = vadd.f32 %v85, %v328
  %v330 = vpop.f32.mrb[0].mxu0
  %331 = vmatprep.mubr.bf16.mxu0 0
  %332 = vmatmul.mubr.bf16.gmra.mrb[0].mxu0 %v187
  %v333 = vpop.f32.mrb[0].mxu0
  %v334 = vadd.f32 %v85, %v333
  %v335 = vpop.f32.mrb[0].mxu0
  %v336 = vpop.f32.mrb[0].mxu0
  %v337 = vadd.f32 %v85, %v336
  %v338 = vpop.f32.mrb[0].mxu0
  %339 = vmatprep.mubr.bf16.mxu0 0
  %340 = vmatmul.mubr.bf16.gmra.mrb[0].mxu0 %v188
  %v341 = vpop.f32.mrb[0].mxu0
  %v342 = vadd.f32 %v85, %v341
  %v343 = vpop.f32.mrb[0].mxu0
  %v344 = vpop.f32.mrb[0].mxu0
  %v345 = vadd.f32 %v85, %v344
  %v346 = vpop.f32.mrb[0].mxu0
  %347 = vmatprep.mubr.bf16.mxu0 0
  %348 = vmatmul.mubr.bf16.gmra.mrb[0].mxu0 %v189
  %v349 = vpop.f32.mrb[0].mxu0
  %v350 = vadd.f32 %v85, %v349
  %v351 = vpop.f32.mrb[0].mxu0
  %v352 = vpop.f32.mrb[0].mxu0
  %v353 = vadd.f32 %v85, %v352
  %v354 = vpop.f32.mrb[0].mxu0
  %355 = vmatprep.mubr.bf16.mxu0 0
  %356 = vmatmul.mubr.bf16.gmra.mrb[0].mxu0 %v190
  %v357 = vpop.f32.mrb[0].mxu0
  %v358 = vadd.f32 %v85, %v357
  %v359 = vpop.f32.mrb[0].mxu0
  %v360 = vpop.f32.mrb[0].mxu0
  %v361 = vadd.f32 %v85, %v360
  %v362 = vpop.f32.mrb[0].mxu0
  %363 = vmatprep.mubr.bf16.mxu0 0
  %364 = vmatmul.mubr.bf16.gmra.mrb[0].mxu0 %v191
  %v365 = vpop.f32.mrb[0].mxu0
  %v366 = vadd.f32 %v85, %v365
  %v367 = vpop.f32.mrb[0].mxu0
  %v368 = vpop.f32.mrb[0].mxu0
  %v369 = vadd.f32 %v85, %v368
  %v370 = vpop.f32.mrb[0].mxu0
  %371 = vmatprep.mubr.bf16.mxu0 0
  %372 = vmatmul.mubr.bf16.gmra.mrb[0].mxu0 %v192
  %v373 = vpop.f32.mrb[0].mxu0
  %v374 = vadd.f32 %v85, %v373
  %v375 = vpop.f32.mrb[0].mxu0
  %v376 = vpop.f32.mrb[0].mxu0
  %v377 = vadd.f32 %v85, %v376
  %v378 = vpop.f32.mrb[0].mxu0
  %379 = vmatprep.mubr.bf16.mxu0 0
  %380 = vmatmul.mubr.bf16.gmra.mrb[0].mxu0 %v193
  %v381 = vpop.f32.mrb[0].mxu0
  %v382 = vadd.f32 %v85, %v381
  %v383 = vpop.f32.mrb[0].mxu0
  %v384 = vpop.f32.mrb[0].mxu0
  %v385 = vadd.f32 %v85, %v384
  %v386 = vpop.f32.mrb[0].mxu0
  %387 = vmatprep.mubr.bf16.mxu0 0
  %388 = vmatmul.mubr.bf16.gmra.mrb[0].mxu0 %v194
  %v389 = vpop.f32.mrb[0].mxu0
  %v390 = vadd.f32 %v85, %v389
  %v391 = vpop.f32.mrb[0].mxu0
  %v392 = vpop.f32.mrb[0].mxu0
  %v393 = vadd.f32 %v85, %v392
  %v394 = vpop.f32.mrb[0].mxu0
  %395 = vmatprep.mubr.bf16.mxu0 0
  %396 = vmatmul.mubr.bf16.gmra.mrb[0].mxu0 %v195
  %v397 = vpop.f32.mrb[0].mxu0
  %v398 = vadd.f32 %v85, %v397
  %v399 = vpop.f32.mrb[0].mxu0
  %v400 = vpop.f32.mrb[0].mxu0
  %v401 = vadd.f32 %v85, %v400
  %v402 = vpop.f32.mrb[0].mxu0
  %403 = vmatprep.mubr.bf16.mxu0 0
  %404 = vmatmul.mubr.bf16.gmra.mrb[0].mxu0 %v196
  %v405 = vpop.f32.mrb[0].mxu0
  %v406 = vadd.f32 %v85, %v405
  %v407 = vpop.f32.mrb[0].mxu0
  %v408 = vpop.f32.mrb[0].mxu0
  %v409 = vadd.f32 %v85, %v408
  %v410 = vpop.f32.mrb[0].mxu0
  %411 = vmatprep.mubr.bf16.mxu0 0
  %412 = vmatmul.mubr.bf16.gmra.mrb[0].mxu0 %v197
  %v413 = vpop.f32.mrb[0].mxu0
  %v414 = vadd.f32 %v85, %v413
  %v415 = vpop.f32.mrb[0].mxu0
  %v416 = vpop.f32.mrb[0].mxu0
  %v417 = vadd.f32 %v85, %v416
  %v418 = vpop.f32.mrb[0].mxu0
  %419 = vmatprep.mubr.bf16.mxu0 0
  %420 = vmatmul.mubr.bf16.gmra.mrb[0].mxu0 %v198
  %v421 = vpop.f32.mrb[0].mxu0
  %v422 = vadd.f32 %v85, %v421
  %v423 = vpop.f32.mrb[0].mxu0
  %v424 = vpop.f32.mrb[0].mxu0
  %v425 = vadd.f32 %v85, %v424
  %v426 = vpop.f32.mrb[0].mxu0
  %427 = vmatprep.mubr.bf16.mxu0 0
  %428 = vmatmul.mubr.bf16.gmra.mrb[0].mxu0 %v199
  %v429 = vpop.f32.mrb[0].mxu0
  %v430 = vadd.f32 %v85, %v429
  %v431 = vpop.f32.mrb[0].mxu0
  %v432 = vpop.f32.mrb[0].mxu0
  %v433 = vadd.f32 %v85, %v432
  %v434 = vpop.f32.mrb[0].mxu0
  %435 = vmatprep.mubr.bf16.mxu0 0
  %436 = vmatmul.mubr.bf16.gmra.mrb[0].mxu0 %v200
  %v437 = vpop.f32.mrb[0].mxu0
  %v438 = vadd.f32 %v85, %v437
  %v439 = vpop.f32.mrb[0].mxu0
  %v440 = vpop.f32.mrb[0].mxu0
  %v441 = vadd.f32 %v85, %v440
  %v442 = vpop.f32.mrb[0].mxu0
  %443 = vmatprep.mubr.bf16.mxu0 0
  %444 = vmatmul.mubr.bf16.gmra.mrb[0].mxu0 %v201
  %v445 = vpop.f32.mrb[0].mxu0
  %v446 = vadd.f32 %v85, %v445
  %v447 = vpop.f32.mrb[0].mxu0
  %v448 = vpop.f32.mrb[0].mxu0
  %v449 = vadd.f32 %v85, %v448
  %v450 = vpop.f32.mrb[0].mxu0
  %451 = vmatprep.mubr.bf16.mxu0 0
  %452 = vmatmul.mubr.bf16.gmra.mrb[0].mxu0 %v202
  %v453 = vpop.f32.mrb[0].mxu0
  %v454 = vadd.f32 %v85, %v453
  %v455 = vpop.f32.mrb[0].mxu0
  %v456 = vpop.f32.mrb[0].mxu0
  %v457 = vadd.f32 %v85, %v456
  %v458 = vpop.f32.mrb[0].mxu0
  %459 = vmatprep.mubr.bf16.mxu0 0
  %460 = vmatmul.mubr.bf16.gmra.mrb[0].mxu0 %v203
  %v461 = vpop.f32.mrb[0].mxu0
  %v462 = vadd.f32 %v85, %v461
  %v463 = vpop.f32.mrb[0].mxu0
  %v464 = vpop.f32.mrb[0].mxu0
  %v465 = vadd.f32 %v85, %v464
  %v466 = vpop.f32.mrb[0].mxu0
  %467 = vmatprep.mubr.bf16.mxu0 0
  %468 = vmatmul.mubr.bf16.gmra.mrb[0].mxu0 %v204
  %v469 = vpop.f32.mrb[0].mxu0
  %v470 = vadd.f32 %v85, %v469
  %v471 = vpop.f32.mrb[0].mxu0
  %v472 = vpop.f32.mrb[0].mxu0
  %v473 = vadd.f32 %v85, %v472
  %v474 = vpop.f32.mrb[0].mxu0
  %475 = vmatprep.mubr.bf16.mxu0 0
  %476 = vmatmul.mubr.bf16.gmra.mrb[0].mxu0 %v205
  %v477 = vpop.f32.mrb[0].mxu0
  %v478 = vadd.f32 %v85, %v477
  %v479 = vpop.f32.mrb[0].mxu0
  %v480 = vpop.f32.mrb[0].mxu0
  %v481 = vadd.f32 %v85, %v480
  %v482 = vpop.f32.mrb[0].mxu0
  %483 = vmatprep.mubr.bf16.mxu0 0
  %484 = vmatmul.mubr.bf16.gmra.mrb[0].mxu0 %v206
  %v485 = vpop.f32.mrb[0].mxu0
  %v486 = vadd.f32 %v85, %v485
  %v487 = vpop.f32.mrb[0].mxu0
  %v488 = vpop.f32.mrb[0].mxu0
  %v489 = vadd.f32 %v85, %v488
  %v490 = vpop.f32.mrb[0].mxu0
  %491 = vmatprep.mubr.bf16.mxu0 0
  %492 = vmatmul.mubr.bf16.gmra.mrb[0].mxu0 %v207
  %v493 = vpop.f32.mrb[0].mxu0
  %v494 = vadd.f32 %v85, %v493
  %v495 = vpop.f32.mrb[0].mxu0
  %v496 = vpop.f32.mrb[0].mxu0
  %v497 = vadd.f32 %v85, %v496
  %v498 = vpop.f32.mrb[0].mxu0
  %499 = vmatprep.mubr.bf16.mxu0 0
  %500 = vmatmul.mubr.bf16.gmra.mrb[0].mxu0 %v208
  %v501 = vpop.f32.mrb[0].mxu0
  %v502 = vadd.f32 %v85, %v501
  %v503 = vpop.f32.mrb[0].mxu0
  %v504 = vpop.f32.mrb[0].mxu0
  %v505 = vadd.f32 %v85, %v504
  %v506 = vpop.f32.mrb[0].mxu0
  %507 = vmatprep.mubr.bf16.mxu0 0
  %508 = vmatmul.mubr.bf16.gmra.mrb[0].mxu0 %v209
  %v509 = vpop.f32.mrb[0].mxu0
  %v510 = vadd.f32 %v85, %v509
  %v511 = vpop.f32.mrb[0].mxu0
  %v512 = vpop.f32.mrb[0].mxu0
  %v513 = vpop.f32.mrb[0].mxu0
  %514 = vdwg.mxu0
  %v515 = vmax.f32 %v318, 0.0
  %v516 = vmax.f32 %v321, 0.0
  %v517 = vmax.f32 %v326, 0.0
  %v518 = vmax.f32 %v329, 0.0
  %v519 = vmax.f32 %v334, 0.0
  %v520 = vmax.f32 %v337, 0.0
  %v521 = vmax.f32 %v342, 0.0
  %v522 = vmax.f32 %v345, 0.0
  %v523 = vmax.f32 %v350, 0.0
  %v524 = vmax.f32 %v353, 0.0
  %v525 = vmax.f32 %v358, 0.0
  %v526 = vmax.f32 %v361, 0.0
  %v527 = vmax.f32 %v366, 0.0
  %v528 = vmax.f32 %v369, 0.0
  %v529 = vmax.f32 %v374, 0.0
  %v530 = vmax.f32 %v377, 0.0
  %v531 = vmax.f32 %v382, 0.0
  %v532 = vmax.f32 %v385, 0.0
  %v533 = vmax.f32 %v390, 0.0
  %v534 = vmax.f32 %v393, 0.0
  %v535 = vmax.f32 %v398, 0.0
  %v536 = vmax.f32 %v401, 0.0
  %v537 = vmax.f32 %v406, 0.0
  %v538 = vmax.f32 %v409, 0.0
  %v539 = vmax.f32 %v414, 0.0
  %v540 = vmax.f32 %v417, 0.0
  %v541 = vmax.f32 %v422, 0.0
  %v542 = vmax.f32 %v425, 0.0
  %v543 = vmax.f32 %v430, 0.0
  %v544 = vmax.f32 %v433, 0.0
  %v545 = vmax.f32 %v438, 0.0
  %v546 = vmax.f32 %v441, 0.0
  %v547 = vmax.f32 %v446, 0.0
  %v548 = vmax.f32 %v449, 0.0
  %v549 = vmax.f32 %v454, 0.0
  %v550 = vmax.f32 %v457, 0.0
  %v551 = vmax.f32 %v462, 0.0
  %v552 = vmax.f32 %v465, 0.0
  %v553 = vmax.f32 %v470, 0.0
  %v554 = vmax.f32 %v473, 0.0
  %v555 = vmax.f32 %v478, 0.0
  %v556 = vmax.f32 %v481, 0.0
  %v557 = vmax.f32 %v486, 0.0
  %v558 = vmax.f32 %v489, 0.0
  %v559 = vmax.f32 %v494, 0.0
  %v560 = vmax.f32 %v497, 0.0
  %v561 = vmax.f32 %v502, 0.0
  %v562 = vmax.f32 %v505, 0.0
  %v563 = vmax.f32 %v510, 0.0
  %v564 = vpack.c.bf16 %v516, %v515
  %v565 = vpack.c.bf16 %v518, %v517
  %v566 = vpack.c.bf16 %v520, %v519
  %v567 = vpack.c.bf16 %v522, %v521
  %v568 = vpack.c.bf16 %v524, %v523
  %v569 = vpack.c.bf16 %v526, %v525
  %v570 = vpack.c.bf16 %v528, %v527
  %v571 = vpack.c.bf16 %v530, %v529
  %v572 = vpack.c.bf16 %v532, %v531
  %v573 = vpack.c.bf16 %v534, %v533
  %v574 = vpack.c.bf16 %v536, %v535
  %v575 = vpack.c.bf16 %v538, %v537
  %v576 = vpack.c.bf16 %v540, %v539
  %v577 = vpack.c.bf16 %v542, %v541
  %v578 = vpack.c.bf16 %v544, %v543
  %v579 = vpack.c.bf16 %v546, %v545
  %v580 = vpack.c.bf16 %v548, %v547
  %v581 = vpack.c.bf16 %v550, %v549
  %v582 = vpack.c.bf16 %v552, %v551
  %v583 = vpack.c.bf16 %v554, %v553
  %v584 = vpack.c.bf16 %v556, %v555
  %v585 = vpack.c.bf16 %v558, %v557
  %v586 = vpack.c.bf16 %v560, %v559
  %v587 = vpack.c.bf16 %v562, %v561
  %v588 = vpack.c.bf16 %v563, %v563
  %v614 = vunpack.c.l.b16 %v564
  %v615 = vunpack.c.h.b16 %v564
  %v616 = vunpack.c.l.b16 %v565
  %v617 = vunpack.c.h.b16 %v565
  %v618 = vunpack.c.l.b16 %v566
  %v619 = vunpack.c.h.b16 %v566
  %v620 = vunpack.c.l.b16 %v567
  %v621 = vunpack.c.h.b16 %v567
  %v622 = vunpack.c.l.b16 %v568
  %v623 = vunpack.c.h.b16 %v568
  %v624 = vunpack.c.l.b16 %v569
  %v625 = vunpack.c.h.b16 %v569
  %v626 = vunpack.c.l.b16 %v570
  %v627 = vunpack.c.h.b16 %v570
  %v628 = vunpack.c.l.b16 %v571
  %v629 = vunpack.c.h.b16 %v571
  %v630 = vunpack.c.l.b16 %v572
  %v631 = vunpack.c.h.b16 %v572
  %v632 = vunpack.c.l.b16 %v573
  %v633 = vunpack.c.h.b16 %v573
  %v634 = vunpack.c.l.b16 %v574
  %v635 = vunpack.c.h.b16 %v574
  %v636 = vunpack.c.l.b16 %v575
  %v637 = vunpack.c.h.b16 %v575
  %v638 = vunpack.c.l.b16 %v576
  %v639 = vunpack.c.h.b16 %v576
  %v640 = vunpack.c.l.b16 %v577
  %v641 = vunpack.c.h.b16 %v577
  %v642 = vunpack.c.l.b16 %v578
  %v643 = vunpack.c.h.b16 %v578
  %v644 = vunpack.c.l.b16 %v579
  %v645 = vunpack.c.h.b16 %v579
  %v646 = vunpack.c.l.b16 %v580
  %v647 = vunpack.c.h.b16 %v580
  %v648 = vunpack.c.l.b16 %v581
  %v649 = vunpack.c.h.b16 %v581
  %v650 = vunpack.c.l.b16 %v582
  %v651 = vunpack.c.h.b16 %v582
  %v652 = vunpack.c.l.b16 %v583
  %v653 = vunpack.c.h.b16 %v583
  %v654 = vunpack.c.l.b16 %v584
  %v655 = vunpack.c.h.b16 %v584
  %v656 = vunpack.c.l.b16 %v585
  %v657 = vunpack.c.h.b16 %v585
  %v658 = vunpack.c.l.b16 %v586
  %v659 = vunpack.c.h.b16 %v586
  %v660 = vunpack.c.l.b16 %v587
  %v661 = vunpack.c.h.b16 %v587
  %v662 = vunpack.c.l.b16 %v588
  %v663 = vpack.c.b16 %v614, %v614
  %v664 = vpack.c.b16 %v615, %v615
  %v665 = vpack.c.b16 %v616, %v616
  %v666 = vpack.c.b16 %v617, %v617
  %v667 = vpack.c.b16 %v618, %v618
  %v668 = vpack.c.b16 %v619, %v619
  %v669 = vpack.c.b16 %v620, %v620
  %v670 = vpack.c.b16 %v621, %v621
  %v671 = vpack.c.b16 %v622, %v622
  %v672 = vpack.c.b16 %v623, %v623
  %v673 = vpack.c.b16 %v624, %v624
  %v674 = vpack.c.b16 %v625, %v625
  %v675 = vpack.c.b16 %v626, %v626
  %v676 = vpack.c.b16 %v627, %v627
  %v677 = vpack.c.b16 %v628, %v628
  %v678 = vpack.c.b16 %v629, %v629
  %v679 = vpack.c.b16 %v630, %v630
  %v680 = vpack.c.b16 %v631, %v631
  %v681 = vpack.c.b16 %v632, %v632
  %v682 = vpack.c.b16 %v633, %v633
  %v683 = vpack.c.b16 %v634, %v634
  %v684 = vpack.c.b16 %v635, %v635
  %v685 = vpack.c.b16 %v636, %v636
  %v686 = vpack.c.b16 %v637, %v637
  %v687 = vpack.c.b16 %v638, %v638
  %v688 = vpack.c.b16 %v639, %v639
  %v689 = vpack.c.b16 %v640, %v640
  %v690 = vpack.c.b16 %v641, %v641
  %v691 = vpack.c.b16 %v642, %v642
  %v692 = vpack.c.b16 %v643, %v643
  %v693 = vpack.c.b16 %v644, %v644
  %v694 = vpack.c.b16 %v645, %v645
  %v695 = vpack.c.b16 %v646, %v646
  %v696 = vpack.c.b16 %v647, %v647
  %v697 = vpack.c.b16 %v648, %v648
  %v698 = vpack.c.b16 %v649, %v649
  %v699 = vpack.c.b16 %v650, %v650
  %v700 = vpack.c.b16 %v651, %v651
  %v701 = vpack.c.b16 %v652, %v652
  %v702 = vpack.c.b16 %v653, %v653
  %v703 = vpack.c.b16 %v654, %v654
  %v704 = vpack.c.b16 %v655, %v655
  %v705 = vpack.c.b16 %v656, %v656
  %v706 = vpack.c.b16 %v657, %v657
  %v707 = vpack.c.b16 %v658, %v658
  %v708 = vpack.c.b16 %v659, %v659
  %v709 = vpack.c.b16 %v660, %v660
  %v710 = vpack.c.b16 %v661, %v661
  %v711 = vpack.c.b16 %v662, %v662
  %761 = vst [vmem:[%s3] sm:$0xf] %v663
  %762 = vst [vmem:[%s3 + $0x4] sm:$0xf] %v664
  %763 = vst [vmem:[%s3 + $0x8] sm:$0xf] %v665
  %764 = vst [vmem:[%s3 + $0xc] sm:$0xf] %v666
  %765 = vst [vmem:[%s3 + $0x10] sm:$0xf] %v667
  %766 = vst [vmem:[%s3 + $0x14] sm:$0xf] %v668
  %767 = vst [vmem:[%s3 + $0x18] sm:$0xf] %v669
  %768 = vst [vmem:[%s3 + $0x1c] sm:$0xf] %v670
  %769 = vst [vmem:[%s3 + $0x20] sm:$0xf] %v671
  %770 = vst [vmem:[%s3 + $0x24] sm:$0xf] %v672
  %771 = vst [vmem:[%s3 + $0x28] sm:$0xf] %v673
  %772 = vst [vmem:[%s3 + $0x2c] sm:$0xf] %v674
  %773 = vst [vmem:[%s3 + $0x30] sm:$0xf] %v675
  %774 = vst [vmem:[%s3 + $0x34] sm:$0xf] %v676
  %775 = vst [vmem:[%s3 + $0x38] sm:$0xf] %v677
  %776 = vst [vmem:[%s3 + $0x3c] sm:$0xf] %v678
  %777 = vst [vmem:[%s3 + $0x40] sm:$0xf] %v679
  %778 = vst [vmem:[%s3 + $0x44] sm:$0xf] %v680
  %779 = vst [vmem:[%s3 + $0x48] sm:$0xf] %v681
  %780 = vst [vmem:[%s3 + $0x4c] sm:$0xf] %v682
  %781 = vst [vmem:[%s3 + $0x50] sm:$0xf] %v683
  %782 = vst [vmem:[%s3 + $0x54] sm:$0xf] %v684
  %783 = vst [vmem:[%s3 + $0x58] sm:$0xf] %v685
  %784 = vst [vmem:[%s3 + $0x5c] sm:$0xf] %v686
  %785 = vst [vmem:[%s3 + $0x60] sm:$0xf] %v687
  %786 = vst [vmem:[%s3 + $0x64] sm:$0xf] %v688
  %787 = vst [vmem:[%s3 + $0x68] sm:$0xf] %v689
  %788 = vst [vmem:[%s3 + $0x6c] sm:$0xf] %v690
  %789 = vst [vmem:[%s3 + $0x70] sm:$0xf] %v691
  %790 = vst [vmem:[%s3 + $0x74] sm:$0xf] %v692
  %791 = vst [vmem:[%s3 + $0x78] sm:$0xf] %v693
  %792 = vst [vmem:[%s3 + $0x7c] sm:$0xf] %v694
  %793 = vst [vmem:[%s3 + $0x80] sm:$0xf] %v695
  %794 = vst [vmem:[%s3 + $0x84] sm:$0xf] %v696
  %795 = vst [vmem:[%s3 + $0x88] sm:$0xf] %v697
  %796 = vst [vmem:[%s3 + $0x8c] sm:$0xf] %v698
  %797 = vst [vmem:[%s3 + $0x90] sm:$0xf] %v699
  %798 = vst [vmem:[%s3 + $0x94] sm:$0xf] %v700
  %799 = vst [vmem:[%s3 + $0x98] sm:$0xf] %v701
  %800 = vst [vmem:[%s3 + $0x9c] sm:$0xf] %v702
  %801 = vst [vmem:[%s3 + $0xa0] sm:$0xf] %v703
  %802 = vst [vmem:[%s3 + $0xa4] sm:$0xf] %v704
  %803 = vst [vmem:[%s3 + $0xa8] sm:$0xf] %v705
  %804 = vst [vmem:[%s3 + $0xac] sm:$0xf] %v706
  %805 = vst [vmem:[%s3 + $0xb0] sm:$0xf] %v707
  %806 = vst [vmem:[%s3 + $0xb4] sm:$0xf] %v708
  %807 = vst [vmem:[%s3 + $0xb8] sm:$0xf] %v709
  %808 = vst [vmem:[%s3 + $0xbc] sm:$0xf] %v710
  %809 = vst [vmem:[%s3 + $0xc0] sm:$0xf] %v711
  // Predicated region
  $region14: #{autoencoder_forward.8} parent=0 // pred_check
    _
  $region15: #{autoencoder_forward.8} parent=0 // pred_check_branch
    %811 = sbr.rel (0) target = $region17
  $region16: #{autoencoder_forward.8} parent=0 // pred_region
    _
  $region17: #{autoencoder_forward.8} parent=0 // pred_fallthru
    _
  // Predicated region
  $region18: #{autoencoder_forward.8} parent=0 // pred_check
    _
  $region19: #{autoencoder_forward.8} parent=0 // pred_check_branch
    %813 = sbr.rel (0) target = $region21
  $region20: #{autoencoder_forward.8} parent=0 // pred_region
    _
  $region21: #{autoencoder_forward.8} parent=0 // pred_fallthru
    _

// kernel: autoencoder_forward.9
$region0: #{autoencoder_forward.9}
  #allocation0 [shape = 'u32[]', space=smem, size = 0x4, offset = 0x4, fixed_abs, tag = 'smem constant byte address 0x4 - core index']
  #allocation1 [shape = 'u32[144,128]{1,0:T(1,128)}', space=vmem, size = 0x12000, scoped, tag = 'internal scratch']
  %s0 = inlined_call_operand.vmem [shape: bf16[1568,64], index: 0, kind: input, shape index: {}]
  %s1 = inlined_call_operand.vmem [shape: bf16[64,128], index: 1, kind: input, shape index: {}]
  %s2 = inlined_call_operand.vmem [shape: f32[1,128], index: 2, kind: input, shape index: {}]
  %s3 = inlined_call_operand.vmem [shape: f32[1568,128], index: 3, kind: output, shape index: {}]
  %s4 = sld [smem:[#allocation0]]
  $region45: #{autoencoder_forward.9} parent=0
    _
  %s6 = ssub.s32 1, %s4
  %s7 = scalar_select 0, %s6, %s4
  loop: start=0, step=1, limit=6
  $region2: #{autoencoder_forward.9} parent=0 // loop_pre_header
    _
  $region3: #{autoencoder_forward.9} parent=0 // loop_header
    %s9 = sphi 0, %s13
    %p10 = scmp.ge.s32.totalorder %s9, 6
    %s19 = sphi 0, %s21
    %s22 = sphi 0, %s19
    %s23 = sphi 0, %s22
    %s39 = sphi 0, %s23
    %s43 = sphi 0, %s43
    %s45 = sphi 0, %s43
    %s46 = sphi 0, %s45
    %s60 = sphi 0, %s46
    %s64 = sphi 0, %s64
    %s66 = sphi 0, %s64
    %s67 = sphi 0, %s66
    %s81 = sphi 0, %s67
    %s87 = sphi 0, %s89
    %s90 = sphi 0, %s87
    %s91 = sphi 0, %s90
    %s107 = sphi 0, %s91
  $region4: #{autoencoder_forward.9} parent=0 // loop_header_branch
    %12 = sbr.rel (%p10) target = $region8
  $region5: #{autoencoder_forward.9} parent=0 // loop_body
    %s14 = ssub.s32 %s9, 1
    %s15 = ssub.s32 %s9, 2
    %s16 = sadd.s32 %s9, 1
    %s17 = ssub.s32 %s9, %s16
    %p18 = scmp.eq.s32.totalorder %s17, 0
    %s20 = sadd.s32 %s19, 1
    %s21 = scalar_select %p18, %s19, %s20
    %p24 = pneg %p18
    %p25 = scmp.eq.s32.totalorder %s9, 3
    %p26 = por %p24, %p25
    %p27 = scmp.ne.s32.totalorder %s19, %s22
    %p28 = scmp.eq.s32.totalorder %s9, 0
    %p29 = por %p27, %p28
    %p30 = scmp.ne.s32.totalorder %s19, %s22
    %p31 = scmp.eq.s32.totalorder %s14, 3
    %p32 = por %p30, %p31
    %p33 = scmp.ne.s32.totalorder %s22, %s23
    %p34 = scmp.eq.s32.totalorder %s14, 0
    %p35 = por %p33, %p34
    %p36 = scmp.ne.s32.totalorder %s22, %s23
    %p37 = scmp.eq.s32.totalorder %s15, 3
    %p38 = por %p36, %p37
    %p40 = scmp.ne.s32.totalorder %s23, %s39
    %p41 = scmp.eq.s32.totalorder %s15, 0
    %p42 = por %p40, %p41
    %s44 = sadd.s32 %s43, 1
    %p47 = scmp.eq.s32.totalorder %s9, 3
    %p48 = scmp.ne.s32.totalorder %s43, %s45
    %p49 = scmp.eq.s32.totalorder %s9, 0
    %p50 = por %p48, %p49
    %p51 = scmp.ne.s32.totalorder %s43, %s45
    %p52 = scmp.eq.s32.totalorder %s14, 3
    %p53 = por %p51, %p52
    %p54 = scmp.ne.s32.totalorder %s45, %s46
    %p55 = scmp.eq.s32.totalorder %s14, 0
    %p56 = por %p54, %p55
    %p57 = scmp.ne.s32.totalorder %s45, %s46
    %p58 = scmp.eq.s32.totalorder %s15, 3
    %p59 = por %p57, %p58
    %p61 = scmp.ne.s32.totalorder %s46, %s60
    %p62 = scmp.eq.s32.totalorder %s15, 0
    %p63 = por %p61, %p62
    %s65 = sadd.s32 %s64, 1
    %p68 = scmp.eq.s32.totalorder %s9, 3
    %p69 = scmp.ne.s32.totalorder %s64, %s66
    %p70 = scmp.eq.s32.totalorder %s9, 0
    %p71 = por %p69, %p70
    %p72 = scmp.ne.s32.totalorder %s64, %s66
    %p73 = scmp.eq.s32.totalorder %s14, 3
    %p74 = por %p72, %p73
    %p75 = scmp.ne.s32.totalorder %s66, %s67
    %p76 = scmp.eq.s32.totalorder %s14, 0
    %p77 = por %p75, %p76
    %p78 = scmp.ne.s32.totalorder %s66, %s67
    %p79 = scmp.eq.s32.totalorder %s15, 3
    %p80 = por %p78, %p79
    %p82 = scmp.ne.s32.totalorder %s67, %s81
    %p83 = scmp.eq.s32.totalorder %s15, 0
    %p84 = por %p82, %p83
    %s85 = ssub.s32 %s9, %s16
    %p86 = scmp.eq.s32.totalorder %s85, 0
    %s88 = sadd.s32 %s87, 1
    %s89 = scalar_select %p86, %s87, %s88
    %p92 = pneg %p86
    %p93 = scmp.eq.s32.totalorder %s9, 3
    %p94 = por %p92, %p93
    %p95 = scmp.ne.s32.totalorder %s87, %s90
    %p96 = scmp.eq.s32.totalorder %s9, 0
    %p97 = por %p95, %p96
    %p98 = scmp.ne.s32.totalorder %s87, %s90
    %p99 = scmp.eq.s32.totalorder %s14, 3
    %p100 = por %p98, %p99
    %p101 = scmp.ne.s32.totalorder %s90, %s91
    %p102 = scmp.eq.s32.totalorder %s14, 0
    %p103 = por %p101, %p102
    %p104 = scmp.ne.s32.totalorder %s90, %s91
    %p105 = scmp.eq.s32.totalorder %s15, 3
    %p106 = por %p104, %p105
    %p108 = scmp.ne.s32.totalorder %s91, %s107
    %p109 = scmp.eq.s32.totalorder %s15, 0
    %p110 = por %p108, %p109
    %p111 = scmp.le.s32.totalorder 1, %s9
    %p112 = scmp.lt.s32.totalorder %s9, 5
    %p113 = pnand %p111, %p112
    %p114 = pneg %p113
    // Predicated region
    $region9: #{autoencoder_forward.9} parent=5 // pred_check
      _
    $region10: #{autoencoder_forward.9} parent=5 // pred_check_branch
      %116 = sbr.rel (%p113) target = $region12
    $region11: #{autoencoder_forward.9} parent=5 // pred_region
      %s117 = ssub.s32 %s9, 1
      // Predicated region
      $region13: #{autoencoder_forward.9} parent=11 // pred_check
        %p118 = pneg %p56
      $region14: #{autoencoder_forward.9} parent=11 // pred_check_branch
        %120 = sbr.rel (%p118) target = $region16
      $region15: #{autoencoder_forward.9} parent=11 // pred_region
        _
      $region16: #{autoencoder_forward.9} parent=11 // pred_fallthru
        _
      // Predicated region
      $region17: #{autoencoder_forward.9} parent=11 // pred_check
        %p121 = pneg %p77
      $region18: #{autoencoder_forward.9} parent=11 // pred_check_branch
        %123 = sbr.rel (%p121) target = $region20
      $region19: #{autoencoder_forward.9} parent=11 // pred_region
        _
      $region20: #{autoencoder_forward.9} parent=11 // pred_fallthru
        _
    $region12: #{autoencoder_forward.9} parent=5 // pred_fallthru
      _
    %p124 = scmp.lt.s32.totalorder %s9, 4
    // Predicated region
    $region21: #{autoencoder_forward.9} parent=5 // pred_check
      %p125 = pneg %p124
    $region22: #{autoencoder_forward.9} parent=5 // pred_check_branch
      %127 = sbr.rel (%p125) target = $region24
    $region23: #{autoencoder_forward.9} parent=5 // pred_region
      // Predicated region
      $region25: #{autoencoder_forward.9} parent=23 // pred_check
        %p128 = pneg %p29
      $region26: #{autoencoder_forward.9} parent=23 // pred_check_branch
        %130 = sbr.rel (%p128) target = $region28
      $region27: #{autoencoder_forward.9} parent=23 // pred_region
        %s131 = smul.u32 49, %s9
        %p132 = scmp.lt.s32.totalorder %s131, 195
        %s133 = scalar_select %p132, %s131, 195
        %s134 = smul.addr %s133, 4
        %s135 = scalar_lea.vmem %s0, %s134
        %s136 = smul.u32 49, %s9
      $region28: #{autoencoder_forward.9} parent=23 // pred_fallthru
        _
    $region24: #{autoencoder_forward.9} parent=5 // pred_fallthru
      _
    %p137 = scmp.le.s32.totalorder 1, %s9
    %p138 = scmp.lt.s32.totalorder %s9, 5
    %p139 = pnand %p137, %p138
    %p140 = pneg %p139
    // Predicated region
    $region29: #{autoencoder_forward.9} parent=5 // pred_check
      _
    $region30: #{autoencoder_forward.9} parent=5 // pred_check_branch
      %142 = sbr.rel (%p139) target = $region32
    $region31: #{autoencoder_forward.9} parent=5 // pred_region
      %s143 = ssub.s32 %s9, 1
      %s144 = smul.u32 49, %s14
      %p145 = scmp.lt.s32.totalorder %s144, 195
      %s146 = scalar_select %p145, %s144, 195
      %s147 = smul.addr %s146, 4
      %s148 = scalar_lea.vmem %s0, %s147
      %p149 = pneg %p35
      %p150 = pneg %p32
      %p151 = pneg %p56
      %p152 = pneg %p53
      %p153 = pneg %p77
      %p154 = pneg %p74
      %p155 = pneg %p103
      %p156 = pneg %p100
      %s157 = smul.u32 49, %s14
      %p158 = scmp.lt.s32.totalorder %s157, 195
      %s159 = scalar_select %p158, %s157, 195
      %s160 = smul.addr %s159, 8
      %s161 = scalar_lea.vmem %s3, %s160
      %s162 = smul.u32 49, %s14
      %p163 = scmp.lt.s32.totalorder %s162, 195
      %s164 = scalar_select %p163, %s162, 195
      %s165 = smul.addr %s164, 4
      %s166 = scalar_lea.vmem %s0, %s165
      %s167 = smul.u32 49, %s14
      %s168 = smul.u32 49, %s14
      %p169 = scmp.lt.s32.totalorder %s168, 195
      %s170 = scalar_select %p169, %s168, 195
      %s171 = smul.addr %s170, 8
      %s172 = scalar_lea.vmem %s3, %s171
      %s173 = smul.u32 49, %s14
      %v175 = vld [vmem:[%s166] sm:$0xf]
      %v176 = vld [vmem:[%s166 + $0x4] sm:$0xf]
      %v177 = vld [vmem:[%s166 + $0x8] sm:$0xf]
      %v178 = vld [vmem:[%s166 + $0xc] sm:$0xf]
      %v179 = vld [vmem:[%s166 + $0x10] sm:$0xf]
      %v180 = vld [vmem:[%s166 + $0x14] sm:$0xf]
      %v181 = vld [vmem:[%s166 + $0x18] sm:$0xf]
      %v182 = vld [vmem:[%s166 + $0x1c] sm:$0xf]
      %v183 = vld [vmem:[%s166 + $0x20] sm:$0xf]
      %v184 = vld [vmem:[%s166 + $0x24] sm:$0xf]
      %v185 = vld [vmem:[%s166 + $0x28] sm:$0xf]
      %v186 = vld [vmem:[%s166 + $0x2c] sm:$0xf]
      %v187 = vld [vmem:[%s166 + $0x30] sm:$0xf]
      %v188 = vld [vmem:[%s166 + $0x34] sm:$0xf]
      %v189 = vld [vmem:[%s166 + $0x38] sm:$0xf]
      %v190 = vld [vmem:[%s166 + $0x3c] sm:$0xf]
      %v191 = vld [vmem:[%s166 + $0x40] sm:$0xf]
      %v192 = vld [vmem:[%s166 + $0x44] sm:$0xf]
      %v193 = vld [vmem:[%s166 + $0x48] sm:$0xf]
      %v194 = vld [vmem:[%s166 + $0x4c] sm:$0xf]
      %v195 = vld [vmem:[%s166 + $0x50] sm:$0xf]
      %v196 = vld [vmem:[%s166 + $0x54] sm:$0xf]
      %v197 = vld [vmem:[%s166 + $0x58] sm:$0xf]
      %v198 = vld [vmem:[%s166 + $0x5c] sm:$0xf]
      %v199 = vld [vmem:[%s166 + $0x60] sm:$0xf]
      %v200 = vld [vmem:[%s166 + $0x64] sm:$0xf]
      %v201 = vld [vmem:[%s166 + $0x68] sm:$0xf]
      %v202 = vld [vmem:[%s166 + $0x6c] sm:$0xf]
      %v203 = vld [vmem:[%s166 + $0x70] sm:$0xf]
      %v204 = vld [vmem:[%s166 + $0x74] sm:$0xf]
      %v205 = vld [vmem:[%s166 + $0x78] sm:$0xf]
      %v206 = vld [vmem:[%s166 + $0x7c] sm:$0xf]
      %v207 = vld [vmem:[%s166 + $0x80] sm:$0xf]
      %v208 = vld [vmem:[%s166 + $0x84] sm:$0xf]
      %v209 = vld [vmem:[%s166 + $0x88] sm:$0xf]
      %v210 = vld [vmem:[%s166 + $0x8c] sm:$0xf]
      %v211 = vld [vmem:[%s166 + $0x90] sm:$0xf]
      %v212 = vld [vmem:[%s166 + $0x94] sm:$0xf]
      %v213 = vld [vmem:[%s166 + $0x98] sm:$0xf]
      %v214 = vld [vmem:[%s166 + $0x9c] sm:$0xf]
      %v215 = vld [vmem:[%s166 + $0xa0] sm:$0xf]
      %v216 = vld [vmem:[%s166 + $0xa4] sm:$0xf]
      %v217 = vld [vmem:[%s166 + $0xa8] sm:$0xf]
      %v218 = vld [vmem:[%s166 + $0xac] sm:$0xf]
      %v219 = vld [vmem:[%s166 + $0xb0] sm:$0xf]
      %v220 = vld [vmem:[%s166 + $0xb4] sm:$0xf]
      %v221 = vld [vmem:[%s166 + $0xb8] sm:$0xf]
      %v222 = vld [vmem:[%s166 + $0xbc] sm:$0xf]
      %v223 = vld [vmem:[%s166 + $0xc0] sm:$0xf]
      %v224 = vld [vmem:[%s1] sm:$0xf]
      %v225 = vld [vmem:[%s1 + $0x4] sm:$0xf]
      %v226 = vld [vmem:[%s1 + $0x8] sm:$0xf]
      %v227 = vld [vmem:[%s1 + $0xc] sm:$0xf]
      %v228 = vld [vmem:[%s1 + $0x10] sm:$0xf]
      %v229 = vld [vmem:[%s1 + $0x14] sm:$0xf]
      %v230 = vld [vmem:[%s1 + $0x18] sm:$0xf]
      %v231 = vld [vmem:[%s1 + $0x1c] sm:$0xf]
      %v232 = vld [vmem:[%s2] sm:$0x1]
      %v234 = vlaneseq
      %v235 = vshrl.u32 %v234, 7
      %v236 = vsub.s32 0, %v235
      %v237 = vrot.slane %v232, %v236
      %v288 = vunpack.c.l.b16 %v175
      %v289 = vunpack.c.l.b16 %v176
      %v290 = vunpack.c.l.b16 %v177
      %v291 = vunpack.c.l.b16 %v178
      %v292 = vunpack.c.l.b16 %v179
      %v293 = vunpack.c.l.b16 %v180
      %v294 = vunpack.c.l.b16 %v181
      %v295 = vunpack.c.l.b16 %v182
      %v296 = vunpack.c.l.b16 %v183
      %v297 = vunpack.c.l.b16 %v184
      %v298 = vunpack.c.l.b16 %v185
      %v299 = vunpack.c.l.b16 %v186
      %v300 = vunpack.c.l.b16 %v187
      %v301 = vunpack.c.l.b16 %v188
      %v302 = vunpack.c.l.b16 %v189
      %v303 = vunpack.c.l.b16 %v190
      %v304 = vunpack.c.l.b16 %v191
      %v305 = vunpack.c.l.b16 %v192
      %v306 = vunpack.c.l.b16 %v193
      %v307 = vunpack.c.l.b16 %v194
      %v308 = vunpack.c.l.b16 %v195
      %v309 = vunpack.c.l.b16 %v196
      %v310 = vunpack.c.l.b16 %v197
      %v311 = vunpack.c.l.b16 %v198
      %v312 = vunpack.c.l.b16 %v199
      %v313 = vunpack.c.l.b16 %v200
      %v314 = vunpack.c.l.b16 %v201
      %v315 = vunpack.c.l.b16 %v202
      %v316 = vunpack.c.l.b16 %v203
      %v317 = vunpack.c.l.b16 %v204
      %v318 = vunpack.c.l.b16 %v205
      %v319 = vunpack.c.l.b16 %v206
      %v320 = vunpack.c.l.b16 %v207
      %v321 = vunpack.c.l.b16 %v208
      %v322 = vunpack.c.l.b16 %v209
      %v323 = vunpack.c.l.b16 %v210
      %v324 = vunpack.c.l.b16 %v211
      %v325 = vunpack.c.l.b16 %v212
      %v326 = vunpack.c.l.b16 %v213
      %v327 = vunpack.c.l.b16 %v214
      %v328 = vunpack.c.l.b16 %v215
      %v329 = vunpack.c.l.b16 %v216
      %v330 = vunpack.c.l.b16 %v217
      %v331 = vunpack.c.l.b16 %v218
      %v332 = vunpack.c.l.b16 %v219
      %v333 = vunpack.c.l.b16 %v220
      %v334 = vunpack.c.l.b16 %v221
      %v335 = vunpack.c.l.b16 %v222
      %v336 = vunpack.c.l.b16 %v223
      %v337 = vpack.c.b16 %v289, %v288
      %v338 = vpack.c.b16 %v291, %v290
      %v339 = vpack.c.b16 %v293, %v292
      %v340 = vpack.c.b16 %v295, %v294
      %v341 = vpack.c.b16 %v297, %v296
      %v342 = vpack.c.b16 %v299, %v298
      %v343 = vpack.c.b16 %v301, %v300
      %v344 = vpack.c.b16 %v303, %v302
      %v345 = vpack.c.b16 %v305, %v304
      %v346 = vpack.c.b16 %v307, %v306
      %v347 = vpack.c.b16 %v309, %v308
      %v348 = vpack.c.b16 %v311, %v310
      %v349 = vpack.c.b16 %v313, %v312
      %v350 = vpack.c.b16 %v315, %v314
      %v351 = vpack.c.b16 %v317, %v316
      %v352 = vpack.c.b16 %v319, %v318
      %v353 = vpack.c.b16 %v321, %v320
      %v354 = vpack.c.b16 %v323, %v322
      %v355 = vpack.c.b16 %v325, %v324
      %v356 = vpack.c.b16 %v327, %v326
      %v357 = vpack.c.b16 %v329, %v328
      %v358 = vpack.c.b16 %v331, %v330
      %v359 = vpack.c.b16 %v333, %v332
      %v360 = vpack.c.b16 %v335, %v334
      %v361 = vpack.c.b16 %v336, %v336
      %v370 = vunpack.c.l.b16 %v224
      %v371 = vunpack.c.l.b16 %v225
      %v372 = vunpack.c.l.b16 %v226
      %v373 = vunpack.c.l.b16 %v227
      %v374 = vunpack.c.l.b16 %v228
      %v375 = vunpack.c.l.b16 %v229
      %v376 = vunpack.c.l.b16 %v230
      %v377 = vunpack.c.l.b16 %v231
      %v378 = vpack.c.b16 %v371, %v370
      %v379 = vpack.c.b16 %v373, %v372
      %v380 = vpack.c.b16 %v375, %v374
      %v381 = vpack.c.b16 %v377, %v376
      %vm386 = vcmask 523264
      %v388 = vsel %vm386, %v337, 0
      %v391 = vsel %vm386, %v338, 0
      %v394 = vsel %vm386, %v339, 0
      %v397 = vsel %vm386, %v340, 0
      %v400 = vsel %vm386, %v341, 0
      %v403 = vsel %vm386, %v342, 0
      %v406 = vsel %vm386, %v343, 0
      %v409 = vsel %vm386, %v344, 0
      %v412 = vsel %vm386, %v345, 0
      %v415 = vsel %vm386, %v346, 0
      %v418 = vsel %vm386, %v347, 0
      %v421 = vsel %vm386, %v348, 0
      %v424 = vsel %vm386, %v349, 0
      %v427 = vsel %vm386, %v350, 0
      %v430 = vsel %vm386, %v351, 0
      %v433 = vsel %vm386, %v352, 0
      %v436 = vsel %vm386, %v353, 0
      %v439 = vsel %vm386, %v354, 0
      %v442 = vsel %vm386, %v355, 0
      %v445 = vsel %vm386, %v356, 0
      %v448 = vsel %vm386, %v357, 0
      %v451 = vsel %vm386, %v358, 0
      %v454 = vsel %vm386, %v359, 0
      %v457 = vsel %vm386, %v360, 0
      %v460 = vsel %vm386, %v361, 0
      %462 = vmatprep.subr.bf16.mxu0 0
      %463 = vmatpush1.bf16.msra.mxu0 %v378
      %464 = vmatprep.subr.bf16.mxu0 0
      %465 = vmatpush1.bf16.msra.mxu0 %v379
      %466 = vmatprep.subr.bf16.mxu0 0
      %467 = vmatpush1.bf16.msra.mxu0 %v380
      %468 = vmatprep.subr.bf16.mxu0 0
      %469 = vmatpush1.bf16.msra.mxu0 %v381
      %470 = vmatprep.subr.bf16.mxu0 0
      %471 = vmatpush1.bf16.msra.mxu0 0
      %472 = vmatprep.subr.bf16.mxu0 0
      %473 = vmatpush1.bf16.msra.mxu0 0
      %474 = vmatprep.subr.bf16.mxu0 0
      %475 = vmatpush1.bf16.msra.mxu0 0
      %476 = vmatprep.subr.bf16.mxu0 0
      %477 = vmatpush1.bf16.msra.mxu0 0
      %478 = vmatprep.subr.bf16.mxu0 0
      %479 = vmatpush1.bf16.msra.mxu0 0
      %480 = vmatprep.subr.bf16.mxu0 0
      %481 = vmatpush1.bf16.msra.mxu0 0
      %482 = vmatprep.subr.bf16.mxu0 0
      %483 = vmatpush1.bf16.msra.mxu0 0
      %484 = vmatprep.subr.bf16.mxu0 0
      %485 = vmatpush1.bf16.msra.mxu0 0
      %486 = vmatprep.subr.bf16.mxu0 0
      %487 = vmatpush1.bf16.msra.mxu0 0
      %488 = vmatprep.subr.bf16.mxu0 0
      %489 = vmatpush1.bf16.msra.mxu0 0
      %490 = vmatprep.subr.bf16.mxu0 0
      %491 = vmatpush1.bf16.msra.mxu0 0
      %492 = vmatprep.subr.bf16.mxu0 0
      %493 = vmatpush1.bf16.msra.mxu0 0
      %494 = vmatprep.mubr.bf16.mxu0 0
      %495 = vmatmul.mubr.bf16.gmra.mrb[0].mxu0 %v388
      %v496 = vpop.f32.mrb[0].mxu0
      %v497 = vadd.f32 %v237, %v496
      %v498 = vpop.f32.mrb[0].mxu0
      %v499 = vpop.f32.mrb[0].mxu0
      %v500 = vadd.f32 %v237, %v499
      %v501 = vpop.f32.mrb[0].mxu0
      %502 = vmatprep.mubr.bf16.mxu0 0
      %503 = vmatmul.mubr.bf16.gmra.mrb[0].mxu0 %v391
      %v504 = vpop.f32.mrb[0].mxu0
      %v505 = vadd.f32 %v237, %v504
      %v506 = vpop.f32.mrb[0].mxu0
      %v507 = vpop.f32.mrb[0].mxu0
      %v508 = vadd.f32 %v237, %v507
      %v509 = vpop.f32.mrb[0].mxu0
      %510 = vmatprep.mubr.bf16.mxu0 0
      %511 = vmatmul.mubr.bf16.gmra.mrb[0].mxu0 %v394
      %v512 = vpop.f32.mrb[0].mxu0
      %v513 = vadd.f32 %v237, %v512
      %v514 = vpop.f32.mrb[0].mxu0
      %v515 = vpop.f32.mrb[0].mxu0
      %v516 = vadd.f32 %v237, %v515
      %v517 = vpop.f32.mrb[0].mxu0
      %518 = vmatprep.mubr.bf16.mxu0 0
      %519 = vmatmul.mubr.bf16.gmra.mrb[0].mxu0 %v397
      %v520 = vpop.f32.mrb[0].mxu0
      %v521 = vadd.f32 %v237, %v520
      %v522 = vpop.f32.mrb[0].mxu0
      %v523 = vpop.f32.mrb[0].mxu0
      %v524 = vadd.f32 %v237, %v523
      %v525 = vpop.f32.mrb[0].mxu0
      %526 = vmatprep.mubr.bf16.mxu0 0
      %527 = vmatmul.mubr.bf16.gmra.mrb[0].mxu0 %v400
      %v528 = vpop.f32.mrb[0].mxu0
      %v529 = vadd.f32 %v237, %v528
      %v530 = vpop.f32.mrb[0].mxu0
      %v531 = vpop.f32.mrb[0].mxu0
      %v532 = vadd.f32 %v237, %v531
      %v533 = vpop.f32.mrb[0].mxu0
      %534 = vmatprep.mubr.bf16.mxu0 0
      %535 = vmatmul.mubr.bf16.gmra.mrb[0].mxu0 %v403
      %v536 = vpop.f32.mrb[0].mxu0
      %v537 = vadd.f32 %v237, %v536
      %v538 = vpop.f32.mrb[0].mxu0
      %v539 = vpop.f32.mrb[0].mxu0
      %v540 = vadd.f32 %v237, %v539
      %v541 = vpop.f32.mrb[0].mxu0
      %542 = vmatprep.mubr.bf16.mxu0 0
      %543 = vmatmul.mubr.bf16.gmra.mrb[0].mxu0 %v406
      %v544 = vpop.f32.mrb[0].mxu0
      %v545 = vadd.f32 %v237, %v544
      %v546 = vpop.f32.mrb[0].mxu0
      %v547 = vpop.f32.mrb[0].mxu0
      %v548 = vadd.f32 %v237, %v547
      %v549 = vpop.f32.mrb[0].mxu0
      %550 = vmatprep.mubr.bf16.mxu0 0
      %551 = vmatmul.mubr.bf16.gmra.mrb[0].mxu0 %v409
      %v552 = vpop.f32.mrb[0].mxu0
      %v553 = vadd.f32 %v237, %v552
      %v554 = vpop.f32.mrb[0].mxu0
      %v555 = vpop.f32.mrb[0].mxu0
      %v556 = vadd.f32 %v237, %v555
      %v557 = vpop.f32.mrb[0].mxu0
      %558 = vmatprep.mubr.bf16.mxu0 0
      %559 = vmatmul.mubr.bf16.gmra.mrb[0].mxu0 %v412
      %v560 = vpop.f32.mrb[0].mxu0
      %v561 = vadd.f32 %v237, %v560
      %v562 = vpop.f32.mrb[0].mxu0
      %v563 = vpop.f32.mrb[0].mxu0
      %v564 = vadd.f32 %v237, %v563
      %v565 = vpop.f32.mrb[0].mxu0
      %566 = vmatprep.mubr.bf16.mxu0 0
      %567 = vmatmul.mubr.bf16.gmra.mrb[0].mxu0 %v415
      %v568 = vpop.f32.mrb[0].mxu0
      %v569 = vadd.f32 %v237, %v568
      %v570 = vpop.f32.mrb[0].mxu0
      %v571 = vpop.f32.mrb[0].mxu0
      %v572 = vadd.f32 %v237, %v571
      %v573 = vpop.f32.mrb[0].mxu0
      %574 = vmatprep.mubr.bf16.mxu0 0
      %575 = vmatmul.mubr.bf16.gmra.mrb[0].mxu0 %v418
      %v576 = vpop.f32.mrb[0].mxu0
      %v577 = vadd.f32 %v237, %v576
      %v578 = vpop.f32.mrb[0].mxu0
      %v579 = vpop.f32.mrb[0].mxu0
      %v580 = vadd.f32 %v237, %v579
      %v581 = vpop.f32.mrb[0].mxu0
      %582 = vmatprep.mubr.bf16.mxu0 0
      %583 = vmatmul.mubr.bf16.gmra.mrb[0].mxu0 %v421
      %v584 = vpop.f32.mrb[0].mxu0
      %v585 = vadd.f32 %v237, %v584
      %v586 = vpop.f32.mrb[0].mxu0
      %v587 = vpop.f32.mrb[0].mxu0
      %v588 = vadd.f32 %v237, %v587
      %v589 = vpop.f32.mrb[0].mxu0
      %590 = vmatprep.mubr.bf16.mxu0 0
      %591 = vmatmul.mubr.bf16.gmra.mrb[0].mxu0 %v424
      %v592 = vpop.f32.mrb[0].mxu0
      %v593 = vadd.f32 %v237, %v592
      %v594 = vpop.f32.mrb[0].mxu0
      %v595 = vpop.f32.mrb[0].mxu0
      %v596 = vadd.f32 %v237, %v595
      %v597 = vpop.f32.mrb[0].mxu0
      %598 = vmatprep.mubr.bf16.mxu0 0
      %599 = vmatmul.mubr.bf16.gmra.mrb[0].mxu0 %v427
      %v600 = vpop.f32.mrb[0].mxu0
      %v601 = vadd.f32 %v237, %v600
      %v602 = vpop.f32.mrb[0].mxu0
      %v603 = vpop.f32.mrb[0].mxu0
      %v604 = vadd.f32 %v237, %v603
      %v605 = vpop.f32.mrb[0].mxu0
      %606 = vmatprep.mubr.bf16.mxu0 0
      %607 = vmatmul.mubr.bf16.gmra.mrb[0].mxu0 %v430
      %v608 = vpop.f32.mrb[0].mxu0
      %v609 = vadd.f32 %v237, %v608
      %v610 = vpop.f32.mrb[0].mxu0
      %v611 = vpop.f32.mrb[0].mxu0
      %v612 = vadd.f32 %v237, %v611
      %v613 = vpop.f32.mrb[0].mxu0
      %614 = vmatprep.mubr.bf16.mxu0 0
      %615 = vmatmul.mubr.bf16.gmra.mrb[0].mxu0 %v433
      %v616 = vpop.f32.mrb[0].mxu0
      %v617 = vadd.f32 %v237, %v616
      %v618 = vpop.f32.mrb[0].mxu0
      %v619 = vpop.f32.mrb[0].mxu0
      %v620 = vadd.f32 %v237, %v619
      %v621 = vpop.f32.mrb[0].mxu0
      %622 = vmatprep.mubr.bf16.mxu0 0
      %623 = vmatmul.mubr.bf16.gmra.mrb[0].mxu0 %v436
      %v624 = vpop.f32.mrb[0].mxu0
      %v625 = vadd.f32 %v237, %v624
      %v626 = vpop.f32.mrb[0].mxu0
      %v627 = vpop.f32.mrb[0].mxu0
      %v628 = vadd.f32 %v237, %v627
      %v629 = vpop.f32.mrb[0].mxu0
      %630 = vmatprep.mubr.bf16.mxu0 0
      %631 = vmatmul.mubr.bf16.gmra.mrb[0].mxu0 %v439
      %v632 = vpop.f32.mrb[0].mxu0
      %v633 = vadd.f32 %v237, %v632
      %v634 = vpop.f32.mrb[0].mxu0
      %v635 = vpop.f32.mrb[0].mxu0
      %v636 = vadd.f32 %v237, %v635
      %v637 = vpop.f32.mrb[0].mxu0
      %638 = vmatprep.mubr.bf16.mxu0 0
      %639 = vmatmul.mubr.bf16.gmra.mrb[0].mxu0 %v442
      %v640 = vpop.f32.mrb[0].mxu0
      %v641 = vadd.f32 %v237, %v640
      %v642 = vpop.f32.mrb[0].mxu0
      %v643 = vpop.f32.mrb[0].mxu0
      %v644 = vadd.f32 %v237, %v643
      %v645 = vpop.f32.mrb[0].mxu0
      %646 = vmatprep.mubr.bf16.mxu0 0
      %647 = vmatmul.mubr.bf16.gmra.mrb[0].mxu0 %v445
      %v648 = vpop.f32.mrb[0].mxu0
      %v649 = vadd.f32 %v237, %v648
      %v650 = vpop.f32.mrb[0].mxu0
      %v651 = vpop.f32.mrb[0].mxu0
      %v652 = vadd.f32 %v237, %v651
      %v653 = vpop.f32.mrb[0].mxu0
      %654 = vmatprep.mubr.bf16.mxu0 0
      %655 = vmatmul.mubr.bf16.gmra.mrb[0].mxu0 %v448
      %v656 = vpop.f32.mrb[0].mxu0
      %v657 = vadd.f32 %v237, %v656
      %v658 = vpop.f32.mrb[0].mxu0
      %v659 = vpop.f32.mrb[0].mxu0
      %v660 = vadd.f32 %v237, %v659
      %v661 = vpop.f32.mrb[0].mxu0
      %662 = vmatprep.mubr.bf16.mxu0 0
      %663 = vmatmul.mubr.bf16.gmra.mrb[0].mxu0 %v451
      %v664 = vpop.f32.mrb[0].mxu0
      %v665 = vadd.f32 %v237, %v664
      %v666 = vpop.f32.mrb[0].mxu0
      %v667 = vpop.f32.mrb[0].mxu0
      %v668 = vadd.f32 %v237, %v667
      %v669 = vpop.f32.mrb[0].mxu0
      %670 = vmatprep.mubr.bf16.mxu0 0
      %671 = vmatmul.mubr.bf16.gmra.mrb[0].mxu0 %v454
      %v672 = vpop.f32.mrb[0].mxu0
      %v673 = vadd.f32 %v237, %v672
      %v674 = vpop.f32.mrb[0].mxu0
      %v675 = vpop.f32.mrb[0].mxu0
      %v676 = vadd.f32 %v237, %v675
      %v677 = vpop.f32.mrb[0].mxu0
      %678 = vmatprep.mubr.bf16.mxu0 0
      %679 = vmatmul.mubr.bf16.gmra.mrb[0].mxu0 %v457
      %v680 = vpop.f32.mrb[0].mxu0
      %v681 = vadd.f32 %v237, %v680
      %v682 = vpop.f32.mrb[0].mxu0
      %v683 = vpop.f32.mrb[0].mxu0
      %v684 = vadd.f32 %v237, %v683
      %v685 = vpop.f32.mrb[0].mxu0
      %686 = vmatprep.mubr.bf16.mxu0 0
      %687 = vmatmul.mubr.bf16.gmra.mrb[0].mxu0 %v460
      %v688 = vpop.f32.mrb[0].mxu0
      %v689 = vadd.f32 %v237, %v688
      %v690 = vpop.f32.mrb[0].mxu0
      %v691 = vpop.f32.mrb[0].mxu0
      %v692 = vpop.f32.mrb[0].mxu0
      %693 = vdwg.mxu0
      %v694 = vtanh.pop %v497
      %v695 = vtanh.pop %v500
      %v696 = vtanh.pop %v505
      %v697 = vtanh.pop %v508
      %v698 = vtanh.pop %v513
      %v699 = vtanh.pop %v516
      %v700 = vtanh.pop %v521
      %v701 = vtanh.pop %v524
      %v702 = vtanh.pop %v529
      %v703 = vtanh.pop %v532
      %v704 = vtanh.pop %v537
      %v705 = vtanh.pop %v540
      %v706 = vtanh.pop %v545
      %v707 = vtanh.pop %v548
      %v708 = vtanh.pop %v553
      %v709 = vtanh.pop %v556
      %v710 = vtanh.pop %v561
      %v711 = vtanh.pop %v564
      %v712 = vtanh.pop %v569
      %v713 = vtanh.pop %v572
      %v714 = vtanh.pop %v577
      %v715 = vtanh.pop %v580
      %v716 = vtanh.pop %v585
      %v717 = vtanh.pop %v588
      %v718 = vtanh.pop %v593
      %v719 = vtanh.pop %v596
      %v720 = vtanh.pop %v601
      %v721 = vtanh.pop %v604
      %v722 = vtanh.pop %v609
      %v723 = vtanh.pop %v612
      %v724 = vtanh.pop %v617
      %v725 = vtanh.pop %v620
      %v726 = vtanh.pop %v625
      %v727 = vtanh.pop %v628
      %v728 = vtanh.pop %v633
      %v729 = vtanh.pop %v636
      %v730 = vtanh.pop %v641
      %v731 = vtanh.pop %v644
      %v732 = vtanh.pop %v649
      %v733 = vtanh.pop %v652
      %v734 = vtanh.pop %v657
      %v735 = vtanh.pop %v660
      %v736 = vtanh.pop %v665
      %v737 = vtanh.pop %v668
      %v738 = vtanh.pop %v673
      %v739 = vtanh.pop %v676
      %v740 = vtanh.pop %v681
      %v741 = vtanh.pop %v684
      %v742 = vtanh.pop %v689
      %743 = vst [vmem:[%s172] sm:$0xff] %v694
      %744 = vst [vmem:[%s172 + $0x8] sm:$0xff] %v695
      %745 = vst [vmem:[%s172 + $0x10] sm:$0xff] %v696
      %746 = vst [vmem:[%s172 + $0x18] sm:$0xff] %v697
      %747 = vst [vmem:[%s172 + $0x20] sm:$0xff] %v698
      %748 = vst [vmem:[%s172 + $0x28] sm:$0xff] %v699
      %749 = vst [vmem:[%s172 + $0x30] sm:$0xff] %v700
      %750 = vst [vmem:[%s172 + $0x38] sm:$0xff] %v701
      %751 = vst [vmem:[%s172 + $0x40] sm:$0xff] %v702
      %752 = vst [vmem:[%s172 + $0x48] sm:$0xff] %v703
      %753 = vst [vmem:[%s172 + $0x50] sm:$0xff] %v704
      %754 = vst [vmem:[%s172 + $0x58] sm:$0xff] %v705
      %755 = vst [vmem:[%s172 + $0x60] sm:$0xff] %v706
      %756 = vst [vmem:[%s172 + $0x68] sm:$0xff] %v707
      %757 = vst [vmem:[%s172 + $0x70] sm:$0xff] %v708
      %758 = vst [vmem:[%s172 + $0x78] sm:$0xff] %v709
      %759 = vst [vmem:[%s172 + $0x80] sm:$0xff] %v710
      %760 = vst [vmem:[%s172 + $0x88] sm:$0xff] %v711
      %761 = vst [vmem:[%s172 + $0x90] sm:$0xff] %v712
      %762 = vst [vmem:[%s172 + $0x98] sm:$0xff] %v713
      %763 = vst [vmem:[%s172 + $0xa0] sm:$0xff] %v714
      %764 = vst [vmem:[%s172 + $0xa8] sm:$0xff] %v715
      %765 = vst [vmem:[%s172 + $0xb0] sm:$0xff] %v716
      %766 = vst [vmem:[%s172 + $0xb8] sm:$0xff] %v717
      %767 = vst [vmem:[%s172 + $0xc0] sm:$0xff] %v718
      %768 = vst [vmem:[%s172 + $0xc8] sm:$0xff] %v719
      %769 = vst [vmem:[%s172 + $0xd0] sm:$0xff] %v720
      %770 = vst [vmem:[%s172 + $0xd8] sm:$0xff] %v721
      %771 = vst [vmem:[%s172 + $0xe0] sm:$0xff] %v722
      %772 = vst [vmem:[%s172 + $0xe8] sm:$0xff] %v723
      %773 = vst [vmem:[%s172 + $0xf0] sm:$0xff] %v724
      %774 = vst [vmem:[%s172 + $0xf8] sm:$0xff] %v725
      %775 = vst [vmem:[%s172 + $0x100] sm:$0xff] %v726
      %776 = vst [vmem:[%s172 + $0x108] sm:$0xff] %v727
      %777 = vst [vmem:[%s172 + $0x110] sm:$0xff] %v728
      %778 = vst [vmem:[%s172 + $0x118] sm:$0xff] %v729
      %779 = vst [vmem:[%s172 + $0x120] sm:$0xff] %v730
      %780 = vst [vmem:[%s172 + $0x128] sm:$0xff] %v731
      %781 = vst [vmem:[%s172 + $0x130] sm:$0xff] %v732
      %782 = vst [vmem:[%s172 + $0x138] sm:$0xff] %v733
      %783 = vst [vmem:[%s172 + $0x140] sm:$0xff] %v734
      %784 = vst [vmem:[%s172 + $0x148] sm:$0xff] %v735
      %785 = vst [vmem:[%s172 + $0x150] sm:$0xff] %v736
      %786 = vst [vmem:[%s172 + $0x158] sm:$0xff] %v737
      %787 = vst [vmem:[%s172 + $0x160] sm:$0xff] %v738
      %788 = vst [vmem:[%s172 + $0x168] sm:$0xff] %v739
      %789 = vst [vmem:[%s172 + $0x170] sm:$0xff] %v740
      %790 = vst [vmem:[%s172 + $0x178] sm:$0xff] %v741
      %791 = vst [vmem:[%s172 + $0x180] sm:$0xff] %v742
      %s792 = smul.u32 49, %s14
      %p793 = scmp.lt.s32.totalorder %s792, 195
      %s794 = scalar_select %p793, %s792, 195
      %s795 = smul.addr %s794, 8
      %s796 = scalar_lea.vmem %s3, %s795
      // Predicated region
      $region33: #{autoencoder_forward.9} parent=31 // pred_check
        %p797 = pneg %p100
      $region34: #{autoencoder_forward.9} parent=31 // pred_check_branch
        %799 = sbr.rel (%p797) target = $region36
      $region35: #{autoencoder_forward.9} parent=31 // pred_region
        %s800 = smul.u32 49, %s14
      $region36: #{autoencoder_forward.9} parent=31 // pred_fallthru
        _
    $region32: #{autoencoder_forward.9} parent=5 // pred_fallthru
      _
    %p801 = scmp.le.s32.totalorder 2, %s9
    // Predicated region
    $region37: #{autoencoder_forward.9} parent=5 // pred_check
      %p802 = pneg %p801
    $region38: #{autoencoder_forward.9} parent=5 // pred_check_branch
      %804 = sbr.rel (%p802) target = $region40
    $region39: #{autoencoder_forward.9} parent=5 // pred_region
      %s805 = ssub.s32 %s9, 2
      // Predicated region
      $region41: #{autoencoder_forward.9} parent=39 // pred_check
        %p806 = pneg %p106
      $region42: #{autoencoder_forward.9} parent=39 // pred_check_branch
        %808 = sbr.rel (%p806) target = $region44
      $region43: #{autoencoder_forward.9} parent=39 // pred_region
        %s809 = smul.u32 49, %s15
        %p810 = scmp.lt.s32.totalorder %s809, 195
        %s811 = scalar_select %p810, %s809, 195
        %s812 = smul.addr %s811, 8
        %s813 = scalar_lea.vmem %s3, %s812
      $region44: #{autoencoder_forward.9} parent=39 // pred_fallthru
        _
    $region40: #{autoencoder_forward.9} parent=5 // pred_fallthru
      _
  $region6: #{autoencoder_forward.9} parent=0 // loop_footer
    %s13 = sadd.s32 1, %s9
  $region7: #{autoencoder_forward.9} parent=0 // loop_footer_branch
    %8 = sbr.rel target = $region3
  $region8: #{autoencoder_forward.9} parent=0 // loop_exit
    _

</llo_original>
